<compile_context>
chip_gen: v5e
topology: v5e:2x2
jax: 0.10.0
libtpu: 0.0.40
codegen_flags: <defaults>
</compile_context>

<pallas_src>
import functools

import jax
import jax.numpy as jnp
from jax.experimental import pallas as pl
from jax.experimental.pallas import tpu as pltpu

K = 7            # conv kernel size
PAD = K // 2     # padding = 3


def _round_up(x, m):
    return -(-x // m) * m


def spatial_attention_kernel(x_ref, w_ref, b_ref, o_ref,
                             maxacc_ref, sumacc_ref, pad_ref, *, C, H, W):
    # x_ref:      (1, block_c, H*W)       VMEM  channel tile (lane-dense)
    # w_ref:      (2*K*K,)                SMEM  flattened conv weights [c, kh, kw]
    # b_ref:      (1,)                    SMEM  conv bias
    # o_ref:      (1, 1, H, W)            VMEM  attention map (written at finalize)
    # maxacc_ref: (1, H*W) f32            VMEM  running channel max
    # sumacc_ref: (1, H*W) f32            VMEM  running channel sum
    # pad_ref:    (2, H+2P, W+2P) f32     VMEM  zero-padded [max; mean] conv scratch
    cb = pl.program_id(1)
    n_cb = pl.num_programs(1)
    Hp = H + 2 * PAD
    Wp = W + 2 * PAD

    x = x_ref[0]                                              # (block_c, H*W), input dtype
    block_max = jnp.max(x, axis=0, keepdims=True)             # (1, H*W) input dtype (exact)
    block_sum = jnp.sum(x.astype(jnp.float32), axis=0, keepdims=True)  # (1, H*W) f32

    @pl.when(cb == 0)
    def _init():
        maxacc_ref[...] = block_max.astype(jnp.float32)
        sumacc_ref[...] = block_sum
        # Zero only the 3-wide border of the conv scratch (once per batch
        # element, overlapped with the reduction pipeline); the interior is
        # fully overwritten at finalize.
        pad_ref[:, 0:PAD, :] = jnp.zeros((2, PAD, Wp), jnp.float32)
        pad_ref[:, Hp - PAD:Hp, :] = jnp.zeros((2, PAD, Wp), jnp.float32)
        pad_ref[:, :, 0:PAD] = jnp.zeros((2, Hp, PAD), jnp.float32)
        pad_ref[:, :, Wp - PAD:Wp] = jnp.zeros((2, Hp, PAD), jnp.float32)

    @pl.when(cb > 0)
    def _accumulate():
        maxacc_ref[...] = jnp.maximum(maxacc_ref[...], block_max.astype(jnp.float32))
        sumacc_ref[...] = sumacc_ref[...] + block_sum

    @pl.when(cb == n_cb - 1)
    def _finalize():
        inv_c = 1.0 / C
        # Move the flat pooled maps into the padded 2D conv scratch row by row
        # (static lane-offset slices; runs once per batch element).
        for r in range(H):
            row = slice(r * W, (r + 1) * W)
            pad_ref[0, PAD + r:PAD + r + 1, PAD:PAD + W] = maxacc_ref[:, row]
            pad_ref[1, PAD + r:PAD + r + 1, PAD:PAD + W] = sumacc_ref[:, row] * inv_c

        # Conv2d(2 -> 1, k=7, pad=3): 14 row-slab loads; 7 kw taps per slab are
        # in-register lane-offset slices.  4 partial accumulators break the
        # 98-MAC serial chain; bias is added once at the end.
        n_parts = 4
        parts = [None] * n_parts
        slab_idx = 0
        for c in range(2):
            for kh in range(K):
                slab = pad_ref[c, kh:kh + H, :]               # (H, W + 2*PAD) f32
                p = slab_idx % n_parts
                acc = parts[p]
                for kw in range(K):
                    w = w_ref[c * K * K + kh * K + kw]        # scalar from SMEM
                    term = slab[:, kw:kw + W] * w
                    acc = term if acc is None else acc + term
                parts[p] = acc
                slab_idx += 1
        conv = (parts[0] + parts[1]) + (parts[2] + parts[3]) + b_ref[0]
        o_ref[0, 0] = jax.nn.sigmoid(conv).astype(o_ref.dtype)


def _vmem_budgets(H, W, HW, in_itemsize, out_itemsize):
    """(vmem_limit_bytes, per-input-buffer budget) from the chip's VMEM capacity."""
    try:
        cap = int(pltpu.get_tpu_info().vmem_capacity_bytes)
    except Exception:
        cap = 64 * 1024 * 1024                                # conservative (v7x)
    vmem_limit = min(cap * 3 // 4, 96 * 1024 * 1024)          # 48 MiB v7x, 96 MiB v5e/v6e
    Hp, Wp = H + 2 * PAD, W + 2 * PAD
    fixed = (
        2 * _round_up(Hp, 8) * _round_up(Wp, 128) * 4             # padded conv scratch
        + 2 * 8 * _round_up(HW, 128) * 4                          # max/sum accumulators
        + 2 * _round_up(H, 8) * _round_up(W, 128) * out_itemsize  # output block (x2 buffers)
    )
    per_buffer = (vmem_limit - fixed - (2 << 20)) // 2            # double-buffered input + slack
    per_buffer = max(min(per_buffer, 24 * 1024 * 1024), 128 * 1024)
    return vmem_limit, per_buffer


def _pick_block_c(C, HW, itemsize, per_buffer_budget):
    """Largest divisor of C whose *padded* (block_c, HW) tile fits the budget."""
    sub_tile = 8 * max(1, 4 // itemsize)                      # 8 (f32), 16 (bf16), 32 (int8)
    lane_bytes = _round_up(HW, 128) * itemsize
    allowed_sub = max(per_buffer_budget // lane_bytes, 1)
    if allowed_sub >= sub_tile:
        bc_cap = (allowed_sub // sub_tile) * sub_tile
    else:
        bc_cap = allowed_sub                                   # best effort for tiny budgets
    bc = max(1, min(C, int(bc_cap)))
    while C % bc:
        bc -= 1
    return max(bc, 1)


def spatial_attention(x, conv_w, conv_b, *, block_c=None):
    """x: (N, C, H, W); conv_w: (1, 2, K, K); conv_b: (1,). Returns (N, 1, H, W)."""
    N, C, H, W = x.shape
    HW = H * W
    x_flat = x.reshape(N, C, HW)                              # free: NCHW is contiguous
    w_flat = conv_w.reshape(-1).astype(jnp.float32)           # (2*K*K,)
    b = conv_b.astype(jnp.float32)                            # (1,)

    vmem_limit, per_buffer = _vmem_budgets(H, W, HW, x.dtype.itemsize, x.dtype.itemsize)
    if block_c is None:
        block_c = _pick_block_c(C, HW, x.dtype.itemsize, per_buffer)
    assert C % block_c == 0, (C, block_c)
    n_cb = C // block_c

    kernel = functools.partial(spatial_attention_kernel, C=C, H=H, W=W)
    return pl.pallas_call(
        kernel,
        out_shape=jax.ShapeDtypeStruct((N, 1, H, W), x.dtype),
        grid=(N, n_cb),                                        # reduction axis last
        in_specs=[
            pl.BlockSpec((1, block_c, HW), lambda n, cb: (n, cb, 0)),
            pl.BlockSpec(memory_space=pltpu.MemorySpace.SMEM),   # conv weights
            pl.BlockSpec(memory_space=pltpu.MemorySpace.SMEM),   # conv bias
        ],
        # Output block is constant across the C axis -> VMEM-resident, flushed
        # to HBM once per batch element after the last channel block.
        out_specs=pl.BlockSpec((1, 1, H, W), lambda n, cb: (n, 0, 0, 0)),
        scratch_shapes=[
            pltpu.VMEM((1, HW), jnp.float32),                         # running max
            pltpu.VMEM((1, HW), jnp.float32),                         # running sum
            pltpu.VMEM((2, H + 2 * PAD, W + 2 * PAD), jnp.float32),   # padded pooled maps
        ],
        compiler_params=pltpu.CompilerParams(
            dimension_semantics=("parallel", "arbitrary"),
            vmem_limit_bytes=int(vmem_limit),
        ),
    )(x_flat, w_flat, b)


def spatial_attention_ref(x, conv_w, conv_b):
    """Pure-JAX reference matching the PyTorch module."""
    max_r = jnp.max(x, axis=1, keepdims=True)
    avg_r = jnp.mean(x, axis=1, keepdims=True)
    res = jnp.concatenate([max_r, avg_r], axis=1)
    out = jax.lax.conv_general_dilated(
        res, conv_w, window_strides=(1, 1),
        padding=[(PAD, PAD), (PAD, PAD)],
        dimension_numbers=("NCHW", "OIHW", "NCHW"),
    ) + conv_b.reshape(1, -1, 1, 1)
    return jax.nn.sigmoid(out)


if __name__ == "__main__":
    key = jax.random.PRNGKey(0)
    kx, kw, kb, kx2 = jax.random.split(key, 4)

    # Deterministic parameter init (synthetic; shapes from nn.Conv2d(2, 1, 7)).
    fan_in = 2 * K * K
    bound = 1.0 / (fan_in ** 0.5)
    conv_w = jax.random.uniform(kw, (1, 2, K, K), jnp.float32, -bound, bound)
    conv_b = jax.random.uniform(kb, (1,), jnp.float32, -bound, bound)

    # Case 1: small shape from the module spec (single channel block).
    N, C, H, W = 2, 4, 16, 16
    x = jax.random.normal(kx, (N, C, H, W), dtype=jnp.float32)
    out = jax.block_until_ready(spatial_attention(x, conv_w, conv_b))
    ref = jax.block_until_ready(spatial_attention_ref(x, conv_w, conv_b))
    assert out.shape == (N, 1, H, W), out.shape
    assert jnp.allclose(out, ref, atol=1e-5, rtol=1e-5), \
        float(jnp.max(jnp.abs(out - ref)))

    # Case 2: exercise the tiled channel reduction (4 channel blocks of 4).
    C2 = 16
    x2 = jax.random.normal(kx2, (N, C2, H, W), dtype=jnp.float32)
    out2 = jax.block_until_ready(spatial_attention(x2, conv_w, conv_b, block_c=4))
    ref2 = jax.block_until_ready(spatial_attention_ref(x2, conv_w, conv_b))
    assert out2.shape == (N, 1, H, W), out2.shape
    assert jnp.allclose(out2, ref2, atol=1e-5, rtol=1e-5), \
        float(jnp.max(jnp.abs(out2 - ref2)))

    # Case 3: bf16 input path (half the HBM traffic; f32 accumulation inside).
    x3 = x2.astype(jnp.bfloat16)
    out3 = jax.block_until_ready(spatial_attention(x3, conv_w, conv_b, block_c=8))
    ref3 = jax.block_until_ready(
        spatial_attention_ref(x3.astype(jnp.float32), conv_w, conv_b))
    assert out3.shape == (N, 1, H, W), out3.shape
    assert jnp.allclose(out3.astype(jnp.float32), ref3, atol=2e-2), \
        float(jnp.max(jnp.abs(out3.astype(jnp.float32) - ref3)))

    print("KERNEL_OK")
</pallas_src>

<mosaic_0001>
module attributes {stable_mosaic.version = 11 : i64} {
  func.func @spatial_attention_kernel(%arg0: i32, %arg1: i32, %arg2: memref<1x4x256xf32, #tpu.memory_space<vmem>>, %arg3: memref<98xf32, #tpu.memory_space<smem>>, %arg4: memref<1xf32, #tpu.memory_space<smem>>, %arg5: memref<1x1x16x16xf32, #tpu.memory_space<vmem>>, %arg6: memref<1x256xf32, #tpu.memory_space<vmem>>, %arg7: memref<1x256xf32, #tpu.memory_space<vmem>>, %arg8: memref<2x22x22xf32, #tpu.memory_space<vmem>>) attributes {dimension_semantics = [#tpu.dimension_semantics<parallel>, #tpu.dimension_semantics<arbitrary>], iteration_bounds = array<i64: 2, 1>, scalar_prefetch = 0 : i64, scratch_operands = 3 : i64, tpu.core_type = #tpu.core_type<tc>, window_params = [{transform_indices = @transform_0, window_bounds = array<i64: 1, 4, 256>}, {transform_indices = @transform_1, window_bounds = array<i64: 98>}, {transform_indices = @transform_2, window_bounds = array<i64: 1>}, {transform_indices = @transform_3, window_bounds = array<i64: 1, 1, 16, 16>}]} {
    %c0 = arith.constant 0 : index
    %c0_0 = arith.constant 0 : index
    %c0_1 = arith.constant 0 : index
    %0 = vector.load %arg2[%c0, %c0_0, %c0_1] : memref<1x4x256xf32, #tpu.memory_space<vmem>>, vector<1x4x256xf32>
    %1 = vector.shape_cast %0 : vector<1x4x256xf32> to vector<4x256xf32>
    %cst = arith.constant dense<0xFF800000> : vector<256xf32>
    %2 = vector.multi_reduction <maximumf>, %1, %cst [0] : vector<4x256xf32> to vector<256xf32>
    %3 = vector.shape_cast %2 : vector<256xf32> to vector<1x256xf32>
    %cst_2 = arith.constant dense<0.000000e+00> : vector<256xf32>
    %4 = vector.multi_reduction <add>, %1, %cst_2 [0] : vector<4x256xf32> to vector<256xf32>
    %5 = vector.shape_cast %4 : vector<256xf32> to vector<1x256xf32>
    %c0_i32 = arith.constant 0 : i32
    %6 = arith.cmpi eq, %arg1, %c0_i32 : i32
    %7 = arith.extui %6 : i1 to i32
    %c0_i32_3 = arith.constant 0 : i32
    %8 = arith.cmpi ne, %7, %c0_i32_3 : i32
    scf.if %8 {
      %c0_8 = arith.constant 0 : index
      %c0_9 = arith.constant 0 : index
      %15 = vector.load %arg6[%c0_8, %c0_9] : memref<1x256xf32, #tpu.memory_space<vmem>>, vector<1x256xf32>
      tpu.vector_store %arg6[%c0_8, %c0_9], %3 {strides = array<i32>} : memref<1x256xf32, #tpu.memory_space<vmem>>, vector<1x256xf32>,
      %c0_10 = arith.constant 0 : index
      %c0_11 = arith.constant 0 : index
      %16 = vector.load %arg7[%c0_10, %c0_11] : memref<1x256xf32, #tpu.memory_space<vmem>>, vector<1x256xf32>
      tpu.vector_store %arg7[%c0_10, %c0_11], %5 {strides = array<i32>} : memref<1x256xf32, #tpu.memory_space<vmem>>, vector<1x256xf32>,
      %cst_12 = arith.constant 0.000000e+00 : f32
      %17 = vector.broadcast %cst_12 : f32 to vector<2x3x22xf32>
      %c0_13 = arith.constant 0 : index
      %c0_14 = arith.constant 0 : index
      %c0_15 = arith.constant 0 : index
      %18 = vector.load %arg8[%c0_13, %c0_14, %c0_15] : memref<2x22x22xf32, #tpu.memory_space<vmem>>, vector<2x3x22xf32>
      tpu.vector_store %arg8[%c0_13, %c0_14, %c0_15], %17 {strides = array<i32>} : memref<2x22x22xf32, #tpu.memory_space<vmem>>, vector<2x3x22xf32>,
      %cst_16 = arith.constant 0.000000e+00 : f32
      %19 = vector.broadcast %cst_16 : f32 to vector<2x3x22xf32>
      %c0_17 = arith.constant 0 : index
      %c19 = arith.constant 19 : index
      %c0_18 = arith.constant 0 : index
      %20 = vector.load %arg8[%c0_17, %c19, %c0_18] : memref<2x22x22xf32, #tpu.memory_space<vmem>>, vector<2x3x22xf32>
      tpu.vector_store %arg8[%c0_17, %c19, %c0_18], %19 {strides = array<i32>} : memref<2x22x22xf32, #tpu.memory_space<vmem>>, vector<2x3x22xf32>,
      %cst_19 = arith.constant 0.000000e+00 : f32
      %21 = vector.broadcast %cst_19 : f32 to vector<2x22x3xf32>
      %c0_20 = arith.constant 0 : index
      %c0_21 = arith.constant 0 : index
      %c0_22 = arith.constant 0 : index
      %22 = vector.load %arg8[%c0_20, %c0_21, %c0_22] : memref<2x22x22xf32, #tpu.memory_space<vmem>>, vector<2x22x3xf32>
      tpu.vector_store %arg8[%c0_20, %c0_21, %c0_22], %21 {strides = array<i32>} : memref<2x22x22xf32, #tpu.memory_space<vmem>>, vector<2x22x3xf32>,
      %cst_23 = arith.constant 0.000000e+00 : f32
      %23 = vector.broadcast %cst_23 : f32 to vector<2x22x3xf32>
      %c0_24 = arith.constant 0 : index
      %c0_25 = arith.constant 0 : index
      %c19_26 = arith.constant 19 : index
      %24 = vector.load %arg8[%c0_24, %c0_25, %c19_26] : memref<2x22x22xf32, #tpu.memory_space<vmem>>, vector<2x22x3xf32>
      tpu.vector_store %arg8[%c0_24, %c0_25, %c19_26], %23 {strides = array<i32>} : memref<2x22x22xf32, #tpu.memory_space<vmem>>, vector<2x22x3xf32>,
    } else {
    }
    %c0_i32_4 = arith.constant 0 : i32
    %9 = arith.cmpi sgt, %arg1, %c0_i32_4 : i32
    %10 = arith.extui %9 : i1 to i32
    %c0_i32_5 = arith.constant 0 : i32
    %11 = arith.cmpi ne, %10, %c0_i32_5 : i32
    scf.if %11 {
      %c0_8 = arith.constant 0 : index
      %c0_9 = arith.constant 0 : index
      %15 = vector.load %arg6[%c0_8, %c0_9] : memref<1x256xf32, #tpu.memory_space<vmem>>, vector<1x256xf32>
      %16 = arith.maximumf %15, %3 : vector<1x256xf32>
      %c0_10 = arith.constant 0 : index
      %c0_11 = arith.constant 0 : index
      %17 = vector.load %arg6[%c0_10, %c0_11] : memref<1x256xf32, #tpu.memory_space<vmem>>, vector<1x256xf32>
      tpu.vector_store %arg6[%c0_10, %c0_11], %16 {strides = array<i32>} : memref<1x256xf32, #tpu.memory_space<vmem>>, vector<1x256xf32>,
      %c0_12 = arith.constant 0 : index
      %c0_13 = arith.constant 0 : index
      %18 = vector.load %arg7[%c0_12, %c0_13] : memref<1x256xf32, #tpu.memory_space<vmem>>, vector<1x256xf32>
      %19 = arith.addf %18, %5 : vector<1x256xf32>
      %c0_14 = arith.constant 0 : index
      %c0_15 = arith.constant 0 : index
      %20 = vector.load %arg7[%c0_14, %c0_15] : memref<1x256xf32, #tpu.memory_space<vmem>>, vector<1x256xf32>
      tpu.vector_store %arg7[%c0_14, %c0_15], %19 {strides = array<i32>} : memref<1x256xf32, #tpu.memory_space<vmem>>, vector<1x256xf32>,
    } else {
    }
    %c0_i32_6 = arith.constant 0 : i32
    %12 = arith.cmpi eq, %arg1, %c0_i32_6 : i32
    %13 = arith.extui %12 : i1 to i32
    %c0_i32_7 = arith.constant 0 : i32
    %14 = arith.cmpi ne, %13, %c0_i32_7 : i32
    scf.if %14 {
      %c0_8 = arith.constant 0 : index
      %c0_9 = arith.constant 0 : index
      %15 = vector.load %arg6[%c0_8, %c0_9] : memref<1x256xf32, #tpu.memory_space<vmem>>, vector<1x16xf32>
      %c0_10 = arith.constant 0 : index
      %c3 = arith.constant 3 : index
      %c3_11 = arith.constant 3 : index
      %16 = vector.load %arg8[%c0_10, %c3, %c3_11] : memref<2x22x22xf32, #tpu.memory_space<vmem>>, vector<1x1x16xf32>
      %17 = vector.shape_cast %16 : vector<1x1x16xf32> to vector<1x16xf32>
      %18 = vector.shape_cast %15 : vector<1x16xf32> to vector<1x1x16xf32>
      tpu.vector_store %arg8[%c0_10, %c3, %c3_11], %18 {strides = array<i32>} : memref<2x22x22xf32, #tpu.memory_space<vmem>>, vector<1x1x16xf32>,
      %c0_12 = arith.constant 0 : index
      %c0_13 = arith.constant 0 : index
      %19 = vector.load %arg7[%c0_12, %c0_13] : memref<1x256xf32, #tpu.memory_space<vmem>>, vector<1x16xf32>
      %cst_14 = arith.constant 2.500000e-01 : f32
      %20 = vector.broadcast %cst_14 : f32 to vector<1x16xf32>
      %21 = arith.mulf %19, %20 : vector<1x16xf32>
      %c1 = arith.constant 1 : index
      %c3_15 = arith.constant 3 : index
      %c3_16 = arith.constant 3 : index
      %22 = vector.load %arg8[%c1, %c3_15, %c3_16] : memref<2x22x22xf32, #tpu.memory_space<vmem>>, vector<1x1x16xf32>
      %23 = vector.shape_cast %22 : vector<1x1x16xf32> to vector<1x16xf32>
      %24 = vector.shape_cast %21 : vector<1x16xf32> to vector<1x1x16xf32>
      tpu.vector_store %arg8[%c1, %c3_15, %c3_16], %24 {strides = array<i32>} : memref<2x22x22xf32, #tpu.memory_space<vmem>>, vector<1x1x16xf32>,
      %c0_17 = arith.constant 0 : index
      %c16 = arith.constant 16 : index
      %25 = vector.load %arg6[%c0_17, %c16] : memref<1x256xf32, #tpu.memory_space<vmem>>, vector<1x16xf32>
      %c0_18 = arith.constant 0 : index
      %c4 = arith.constant 4 : index
      %c3_19 = arith.constant 3 : index
      %26 = vector.load %arg8[%c0_18, %c4, %c3_19] : memref<2x22x22xf32, #tpu.memory_space<vmem>>, vector<1x1x16xf32>
      %27 = vector.shape_cast %26 : vector<1x1x16xf32> to vector<1x16xf32>
      %28 = vector.shape_cast %25 : vector<1x16xf32> to vector<1x1x16xf32>
      tpu.vector_store %arg8[%c0_18, %c4, %c3_19], %28 {strides = array<i32>} : memref<2x22x22xf32, #tpu.memory_space<vmem>>, vector<1x1x16xf32>,
      %c0_20 = arith.constant 0 : index
      %c16_21 = arith.constant 16 : index
      %29 = vector.load %arg7[%c0_20, %c16_21] : memref<1x256xf32, #tpu.memory_space<vmem>>, vector<1x16xf32>
      %cst_22 = arith.constant 2.500000e-01 : f32
      %30 = vector.broadcast %cst_22 : f32 to vector<1x16xf32>
      %31 = arith.mulf %29, %30 : vector<1x16xf32>
      %c1_23 = arith.constant 1 : index
      %c4_24 = arith.constant 4 : index
      %c3_25 = arith.constant 3 : index
      %32 = vector.load %arg8[%c1_23, %c4_24, %c3_25] : memref<2x22x22xf32, #tpu.memory_space<vmem>>, vector<1x1x16xf32>
      %33 = vector.shape_cast %32 : vector<1x1x16xf32> to vector<1x16xf32>
      %34 = vector.shape_cast %31 : vector<1x16xf32> to vector<1x1x16xf32>
      tpu.vector_store %arg8[%c1_23, %c4_24, %c3_25], %34 {strides = array<i32>} : memref<2x22x22xf32, #tpu.memory_space<vmem>>, vector<1x1x16xf32>,
      %c0_26 = arith.constant 0 : index
      %c32 = arith.constant 32 : index
      %35 = vector.load %arg6[%c0_26, %c32] : memref<1x256xf32, #tpu.memory_space<vmem>>, vector<1x16xf32>
      %c0_27 = arith.constant 0 : index
      %c5 = arith.constant 5 : index
      %c3_28 = arith.constant 3 : index
      %36 = vector.load %arg8[%c0_27, %c5, %c3_28] : memref<2x22x22xf32, #tpu.memory_space<vmem>>, vector<1x1x16xf32>
      %37 = vector.shape_cast %36 : vector<1x1x16xf32> to vector<1x16xf32>
      %38 = vector.shape_cast %35 : vector<1x16xf32> to vector<1x1x16xf32>
      tpu.vector_store %arg8[%c0_27, %c5, %c3_28], %38 {strides = array<i32>} : memref<2x22x22xf32, #tpu.memory_space<vmem>>, vector<1x1x16xf32>,
      %c0_29 = arith.constant 0 : index
      %c32_30 = arith.constant 32 : index
      %39 = vector.load %arg7[%c0_29, %c32_30] : memref<1x256xf32, #tpu.memory_space<vmem>>, vector<1x16xf32>
      %cst_31 = arith.constant 2.500000e-01 : f32
      %40 = vector.broadcast %cst_31 : f32 to vector<1x16xf32>
      %41 = arith.mulf %39, %40 : vector<1x16xf32>
      %c1_32 = arith.constant 1 : index
      %c5_33 = arith.constant 5 : index
      %c3_34 = arith.constant 3 : index
      %42 = vector.load %arg8[%c1_32, %c5_33, %c3_34] : memref<2x22x22xf32, #tpu.memory_space<vmem>>, vector<1x1x16xf32>
      %43 = vector.shape_cast %42 : vector<1x1x16xf32> to vector<1x16xf32>
      %44 = vector.shape_cast %41 : vector<1x16xf32> to vector<1x1x16xf32>
      tpu.vector_store %arg8[%c1_32, %c5_33, %c3_34], %44 {strides = array<i32>} : memref<2x22x22xf32, #tpu.memory_space<vmem>>, vector<1x1x16xf32>,
      %c0_35 = arith.constant 0 : index
      %c48 = arith.constant 48 : index
      %45 = vector.load %arg6[%c0_35, %c48] : memref<1x256xf32, #tpu.memory_space<vmem>>, vector<1x16xf32>
      %c0_36 = arith.constant 0 : index
      %c6 = arith.constant 6 : index
      %c3_37 = arith.constant 3 : index
      %46 = vector.load %arg8[%c0_36, %c6, %c3_37] : memref<2x22x22xf32, #tpu.memory_space<vmem>>, vector<1x1x16xf32>
      %47 = vector.shape_cast %46 : vector<1x1x16xf32> to vector<1x16xf32>
      %48 = vector.shape_cast %45 : vector<1x16xf32> to vector<1x1x16xf32>
      tpu.vector_store %arg8[%c0_36, %c6, %c3_37], %48 {strides = array<i32>} : memref<2x22x22xf32, #tpu.memory_space<vmem>>, vector<1x1x16xf32>,
      %c0_38 = arith.constant 0 : index
      %c48_39 = arith.constant 48 : index
      %49 = vector.load %arg7[%c0_38, %c48_39] : memref<1x256xf32, #tpu.memory_space<vmem>>, vector<1x16xf32>
      %cst_40 = arith.constant 2.500000e-01 : f32
      %50 = vector.broadcast %cst_40 : f32 to vector<1x16xf32>
      %51 = arith.mulf %49, %50 : vector<1x16xf32>
      %c1_41 = arith.constant 1 : index
      %c6_42 = arith.constant 6 : index
      %c3_43 = arith.constant 3 : index
      %52 = vector.load %arg8[%c1_41, %c6_42, %c3_43] : memref<2x22x22xf32, #tpu.memory_space<vmem>>, vector<1x1x16xf32>
      %53 = vector.shape_cast %52 : vector<1x1x16xf32> to vector<1x16xf32>
      %54 = vector.shape_cast %51 : vector<1x16xf32> to vector<1x1x16xf32>
      tpu.vector_store %arg8[%c1_41, %c6_42, %c3_43], %54 {strides = array<i32>} : memref<2x22x22xf32, #tpu.memory_space<vmem>>, vector<1x1x16xf32>,
      %c0_44 = arith.constant 0 : index
      %c64 = arith.constant 64 : index
      %55 = vector.load %arg6[%c0_44, %c64] : memref<1x256xf32, #tpu.memory_space<vmem>>, vector<1x16xf32>
      %c0_45 = arith.constant 0 : index
      %c7 = arith.constant 7 : index
      %c3_46 = arith.constant 3 : index
      %56 = vector.load %arg8[%c0_45, %c7, %c3_46] : memref<2x22x22xf32, #tpu.memory_space<vmem>>, vector<1x1x16xf32>
      %57 = vector.shape_cast %56 : vector<1x1x16xf32> to vector<1x16xf32>
      %58 = vector.shape_cast %55 : vector<1x16xf32> to vector<1x1x16xf32>
      tpu.vector_store %arg8[%c0_45, %c7, %c3_46], %58 {strides = array<i32>} : memref<2x22x22xf32, #tpu.memory_space<vmem>>, vector<1x1x16xf32>,
      %c0_47 = arith.constant 0 : index
      %c64_48 = arith.constant 64 : index
      %59 = vector.load %arg7[%c0_47, %c64_48] : memref<1x256xf32, #tpu.memory_space<vmem>>, vector<1x16xf32>
      %cst_49 = arith.constant 2.500000e-01 : f32
      %60 = vector.broadcast %cst_49 : f32 to vector<1x16xf32>
      %61 = arith.mulf %59, %60 : vector<1x16xf32>
      %c1_50 = arith.constant 1 : index
      %c7_51 = arith.constant 7 : index
      %c3_52 = arith.constant 3 : index
      %62 = vector.load %arg8[%c1_50, %c7_51, %c3_52] : memref<2x22x22xf32, #tpu.memory_space<vmem>>, vector<1x1x16xf32>
      %63 = vector.shape_cast %62 : vector<1x1x16xf32> to vector<1x16xf32>
      %64 = vector.shape_cast %61 : vector<1x16xf32> to vector<1x1x16xf32>
      tpu.vector_store %arg8[%c1_50, %c7_51, %c3_52], %64 {strides = array<i32>} : memref<2x22x22xf32, #tpu.memory_space<vmem>>, vector<1x1x16xf32>,
      %c0_53 = arith.constant 0 : index
      %c80 = arith.constant 80 : index
      %65 = vector.load %arg6[%c0_53, %c80] : memref<1x256xf32, #tpu.memory_space<vmem>>, vector<1x16xf32>
      %c0_54 = arith.constant 0 : index
      %c8 = arith.constant 8 : index
      %c3_55 = arith.constant 3 : index
      %66 = vector.load %arg8[%c0_54, %c8, %c3_55] : memref<2x22x22xf32, #tpu.memory_space<vmem>>, vector<1x1x16xf32>
      %67 = vector.shape_cast %66 : vector<1x1x16xf32> to vector<1x16xf32>
      %68 = vector.shape_cast %65 : vector<1x16xf32> to vector<1x1x16xf32>
      tpu.vector_store %arg8[%c0_54, %c8, %c3_55], %68 {strides = array<i32>} : memref<2x22x22xf32, #tpu.memory_space<vmem>>, vector<1x1x16xf32>,
      %c0_56 = arith.constant 0 : index
      %c80_57 = arith.constant 80 : index
      %69 = vector.load %arg7[%c0_56, %c80_57] : memref<1x256xf32, #tpu.memory_space<vmem>>, vector<1x16xf32>
      %cst_58 = arith.constant 2.500000e-01 : f32
      %70 = vector.broadcast %cst_58 : f32 to vector<1x16xf32>
      %71 = arith.mulf %69, %70 : vector<1x16xf32>
      %c1_59 = arith.constant 1 : index
      %c8_60 = arith.constant 8 : index
      %c3_61 = arith.constant 3 : index
      %72 = vector.load %arg8[%c1_59, %c8_60, %c3_61] : memref<2x22x22xf32, #tpu.memory_space<vmem>>, vector<1x1x16xf32>
      %73 = vector.shape_cast %72 : vector<1x1x16xf32> to vector<1x16xf32>
      %74 = vector.shape_cast %71 : vector<1x16xf32> to vector<1x1x16xf32>
      tpu.vector_store %arg8[%c1_59, %c8_60, %c3_61], %74 {strides = array<i32>} : memref<2x22x22xf32, #tpu.memory_space<vmem>>, vector<1x1x16xf32>,
      %c0_62 = arith.constant 0 : index
      %c96 = arith.constant 96 : index
      %75 = vector.load %arg6[%c0_62, %c96] : memref<1x256xf32, #tpu.memory_space<vmem>>, vector<1x16xf32>
      %c0_63 = arith.constant 0 : index
      %c9 = arith.constant 9 : index
      %c3_64 = arith.constant 3 : index
      %76 = vector.load %arg8[%c0_63, %c9, %c3_64] : memref<2x22x22xf32, #tpu.memory_space<vmem>>, vector<1x1x16xf32>
      %77 = vector.shape_cast %76 : vector<1x1x16xf32> to vector<1x16xf32>
      %78 = vector.shape_cast %75 : vector<1x16xf32> to vector<1x1x16xf32>
      tpu.vector_store %arg8[%c0_63, %c9, %c3_64], %78 {strides = array<i32>} : memref<2x22x22xf32, #tpu.memory_space<vmem>>, vector<1x1x16xf32>,
      %c0_65 = arith.constant 0 : index
      %c96_66 = arith.constant 96 : index
      %79 = vector.load %arg7[%c0_65, %c96_66] : memref<1x256xf32, #tpu.memory_space<vmem>>, vector<1x16xf32>
      %cst_67 = arith.constant 2.500000e-01 : f32
      %80 = vector.broadcast %cst_67 : f32 to vector<1x16xf32>
      %81 = arith.mulf %79, %80 : vector<1x16xf32>
      %c1_68 = arith.constant 1 : index
      %c9_69 = arith.constant 9 : index
      %c3_70 = arith.constant 3 : index
      %82 = vector.load %arg8[%c1_68, %c9_69, %c3_70] : memref<2x22x22xf32, #tpu.memory_space<vmem>>, vector<1x1x16xf32>
      %83 = vector.shape_cast %82 : vector<1x1x16xf32> to vector<1x16xf32>
      %84 = vector.shape_cast %81 : vector<1x16xf32> to vector<1x1x16xf32>
      tpu.vector_store %arg8[%c1_68, %c9_69, %c3_70], %84 {strides = array<i32>} : memref<2x22x22xf32, #tpu.memory_space<vmem>>, vector<1x1x16xf32>,
      %c0_71 = arith.constant 0 : index
      %c112 = arith.constant 112 : index
      %85 = vector.load %arg6[%c0_71, %c112] : memref<1x256xf32, #tpu.memory_space<vmem>>, vector<1x16xf32>
      %c0_72 = arith.constant 0 : index
      %c10 = arith.constant 10 : index
      %c3_73 = arith.constant 3 : index
      %86 = vector.load %arg8[%c0_72, %c10, %c3_73] : memref<2x22x22xf32, #tpu.memory_space<vmem>>, vector<1x1x16xf32>
      %87 = vector.shape_cast %86 : vector<1x1x16xf32> to vector<1x16xf32>
      %88 = vector.shape_cast %85 : vector<1x16xf32> to vector<1x1x16xf32>
      tpu.vector_store %arg8[%c0_72, %c10, %c3_73], %88 {strides = array<i32>} : memref<2x22x22xf32, #tpu.memory_space<vmem>>, vector<1x1x16xf32>,
      %c0_74 = arith.constant 0 : index
      %c112_75 = arith.constant 112 : index
      %89 = vector.load %arg7[%c0_74, %c112_75] : memref<1x256xf32, #tpu.memory_space<vmem>>, vector<1x16xf32>
      %cst_76 = arith.constant 2.500000e-01 : f32
      %90 = vector.broadcast %cst_76 : f32 to vector<1x16xf32>
      %91 = arith.mulf %89, %90 : vector<1x16xf32>
      %c1_77 = arith.constant 1 : index
      %c10_78 = arith.constant 10 : index
      %c3_79 = arith.constant 3 : index
      %92 = vector.load %arg8[%c1_77, %c10_78, %c3_79] : memref<2x22x22xf32, #tpu.memory_space<vmem>>, vector<1x1x16xf32>
      %93 = vector.shape_cast %92 : vector<1x1x16xf32> to vector<1x16xf32>
      %94 = vector.shape_cast %91 : vector<1x16xf32> to vector<1x1x16xf32>
      tpu.vector_store %arg8[%c1_77, %c10_78, %c3_79], %94 {strides = array<i32>} : memref<2x22x22xf32, #tpu.memory_space<vmem>>, vector<1x1x16xf32>,
      %c0_80 = arith.constant 0 : index
      %c128 = arith.constant 128 : index
      %95 = vector.load %arg6[%c0_80, %c128] : memref<1x256xf32, #tpu.memory_space<vmem>>, vector<1x16xf32>
      %c0_81 = arith.constant 0 : index
      %c11 = arith.constant 11 : index
      %c3_82 = arith.constant 3 : index
      %96 = vector.load %arg8[%c0_81, %c11, %c3_82] : memref<2x22x22xf32, #tpu.memory_space<vmem>>, vector<1x1x16xf32>
      %97 = vector.shape_cast %96 : vector<1x1x16xf32> to vector<1x16xf32>
      %98 = vector.shape_cast %95 : vector<1x16xf32> to vector<1x1x16xf32>
      tpu.vector_store %arg8[%c0_81, %c11, %c3_82], %98 {strides = array<i32>} : memref<2x22x22xf32, #tpu.memory_space<vmem>>, vector<1x1x16xf32>,
      %c0_83 = arith.constant 0 : index
      %c128_84 = arith.constant 128 : index
      %99 = vector.load %arg7[%c0_83, %c128_84] : memref<1x256xf32, #tpu.memory_space<vmem>>, vector<1x16xf32>
      %cst_85 = arith.constant 2.500000e-01 : f32
      %100 = vector.broadcast %cst_85 : f32 to vector<1x16xf32>
      %101 = arith.mulf %99, %100 : vector<1x16xf32>
      %c1_86 = arith.constant 1 : index
      %c11_87 = arith.constant 11 : index
      %c3_88 = arith.constant 3 : index
      %102 = vector.load %arg8[%c1_86, %c11_87, %c3_88] : memref<2x22x22xf32, #tpu.memory_space<vmem>>, vector<1x1x16xf32>
      %103 = vector.shape_cast %102 : vector<1x1x16xf32> to vector<1x16xf32>
      %104 = vector.shape_cast %101 : vector<1x16xf32> to vector<1x1x16xf32>
      tpu.vector_store %arg8[%c1_86, %c11_87, %c3_88], %104 {strides = array<i32>} : memref<2x22x22xf32, #tpu.memory_space<vmem>>, vector<1x1x16xf32>,
      %c0_89 = arith.constant 0 : index
      %c144 = arith.constant 144 : index
      %105 = vector.load %arg6[%c0_89, %c144] : memref<1x256xf32, #tpu.memory_space<vmem>>, vector<1x16xf32>
      %c0_90 = arith.constant 0 : index
      %c12 = arith.constant 12 : index
      %c3_91 = arith.constant 3 : index
      %106 = vector.load %arg8[%c0_90, %c12, %c3_91] : memref<2x22x22xf32, #tpu.memory_space<vmem>>, vector<1x1x16xf32>
      %107 = vector.shape_cast %106 : vector<1x1x16xf32> to vector<1x16xf32>
      %108 = vector.shape_cast %105 : vector<1x16xf32> to vector<1x1x16xf32>
      tpu.vector_store %arg8[%c0_90, %c12, %c3_91], %108 {strides = array<i32>} : memref<2x22x22xf32, #tpu.memory_space<vmem>>, vector<1x1x16xf32>,
      %c0_92 = arith.constant 0 : index
      %c144_93 = arith.constant 144 : index
      %109 = vector.load %arg7[%c0_92, %c144_93] : memref<1x256xf32, #tpu.memory_space<vmem>>, vector<1x16xf32>
      %cst_94 = arith.constant 2.500000e-01 : f32
      %110 = vector.broadcast %cst_94 : f32 to vector<1x16xf32>
      %111 = arith.mulf %109, %110 : vector<1x16xf32>
      %c1_95 = arith.constant 1 : index
      %c12_96 = arith.constant 12 : index
      %c3_97 = arith.constant 3 : index
      %112 = vector.load %arg8[%c1_95, %c12_96, %c3_97] : memref<2x22x22xf32, #tpu.memory_space<vmem>>, vector<1x1x16xf32>
      %113 = vector.shape_cast %112 : vector<1x1x16xf32> to vector<1x16xf32>
      %114 = vector.shape_cast %111 : vector<1x16xf32> to vector<1x1x16xf32>
      tpu.vector_store %arg8[%c1_95, %c12_96, %c3_97], %114 {strides = array<i32>} : memref<2x22x22xf32, #tpu.memory_space<vmem>>, vector<1x1x16xf32>,
      %c0_98 = arith.constant 0 : index
      %c160 = arith.constant 160 : index
      %115 = vector.load %arg6[%c0_98, %c160] : memref<1x256xf32, #tpu.memory_space<vmem>>, vector<1x16xf32>
      %c0_99 = arith.constant 0 : index
      %c13 = arith.constant 13 : index
      %c3_100 = arith.constant 3 : index
      %116 = vector.load %arg8[%c0_99, %c13, %c3_100] : memref<2x22x22xf32, #tpu.memory_space<vmem>>, vector<1x1x16xf32>
      %117 = vector.shape_cast %116 : vector<1x1x16xf32> to vector<1x16xf32>
      %118 = vector.shape_cast %115 : vector<1x16xf32> to vector<1x1x16xf32>
      tpu.vector_store %arg8[%c0_99, %c13, %c3_100], %118 {strides = array<i32>} : memref<2x22x22xf32, #tpu.memory_space<vmem>>, vector<1x1x16xf32>,
      %c0_101 = arith.constant 0 : index
      %c160_102 = arith.constant 160 : index
      %119 = vector.load %arg7[%c0_101, %c160_102] : memref<1x256xf32, #tpu.memory_space<vmem>>, vector<1x16xf32>
      %cst_103 = arith.constant 2.500000e-01 : f32
      %120 = vector.broadcast %cst_103 : f32 to vector<1x16xf32>
      %121 = arith.mulf %119, %120 : vector<1x16xf32>
      %c1_104 = arith.constant 1 : index
      %c13_105 = arith.constant 13 : index
      %c3_106 = arith.constant 3 : index
      %122 = vector.load %arg8[%c1_104, %c13_105, %c3_106] : memref<2x22x22xf32, #tpu.memory_space<vmem>>, vector<1x1x16xf32>
      %123 = vector.shape_cast %122 : vector<1x1x16xf32> to vector<1x16xf32>
      %124 = vector.shape_cast %121 : vector<1x16xf32> to vector<1x1x16xf32>
      tpu.vector_store %arg8[%c1_104, %c13_105, %c3_106], %124 {strides = array<i32>} : memref<2x22x22xf32, #tpu.memory_space<vmem>>, vector<1x1x16xf32>,
      %c0_107 = arith.constant 0 : index
      %c176 = arith.constant 176 : index
      %125 = vector.load %arg6[%c0_107, %c176] : memref<1x256xf32, #tpu.memory_space<vmem>>, vector<1x16xf32>
      %c0_108 = arith.constant 0 : index
      %c14 = arith.constant 14 : index
      %c3_109 = arith.constant 3 : index
      %126 = vector.load %arg8[%c0_108, %c14, %c3_109] : memref<2x22x22xf32, #tpu.memory_space<vmem>>, vector<1x1x16xf32>
      %127 = vector.shape_cast %126 : vector<1x1x16xf32> to vector<1x16xf32>
      %128 = vector.shape_cast %125 : vector<1x16xf32> to vector<1x1x16xf32>
      tpu.vector_store %arg8[%c0_108, %c14, %c3_109], %128 {strides = array<i32>} : memref<2x22x22xf32, #tpu.memory_space<vmem>>, vector<1x1x16xf32>,
      %c0_110 = arith.constant 0 : index
      %c176_111 = arith.constant 176 : index
      %129 = vector.load %arg7[%c0_110, %c176_111] : memref<1x256xf32, #tpu.memory_space<vmem>>, vector<1x16xf32>
      %cst_112 = arith.constant 2.500000e-01 : f32
      %130 = vector.broadcast %cst_112 : f32 to vector<1x16xf32>
      %131 = arith.mulf %129, %130 : vector<1x16xf32>
      %c1_113 = arith.constant 1 : index
      %c14_114 = arith.constant 14 : index
      %c3_115 = arith.constant 3 : index
      %132 = vector.load %arg8[%c1_113, %c14_114, %c3_115] : memref<2x22x22xf32, #tpu.memory_space<vmem>>, vector<1x1x16xf32>
      %133 = vector.shape_cast %132 : vector<1x1x16xf32> to vector<1x16xf32>
      %134 = vector.shape_cast %131 : vector<1x16xf32> to vector<1x1x16xf32>
      tpu.vector_store %arg8[%c1_113, %c14_114, %c3_115], %134 {strides = array<i32>} : memref<2x22x22xf32, #tpu.memory_space<vmem>>, vector<1x1x16xf32>,
      %c0_116 = arith.constant 0 : index
      %c192 = arith.constant 192 : index
      %135 = vector.load %arg6[%c0_116, %c192] : memref<1x256xf32, #tpu.memory_space<vmem>>, vector<1x16xf32>
      %c0_117 = arith.constant 0 : index
      %c15 = arith.constant 15 : index
      %c3_118 = arith.constant 3 : index
      %136 = vector.load %arg8[%c0_117, %c15, %c3_118] : memref<2x22x22xf32, #tpu.memory_space<vmem>>, vector<1x1x16xf32>
      %137 = vector.shape_cast %136 : vector<1x1x16xf32> to vector<1x16xf32>
      %138 = vector.shape_cast %135 : vector<1x16xf32> to vector<1x1x16xf32>
      tpu.vector_store %arg8[%c0_117, %c15, %c3_118], %138 {strides = array<i32>} : memref<2x22x22xf32, #tpu.memory_space<vmem>>, vector<1x1x16xf32>,
      %c0_119 = arith.constant 0 : index
      %c192_120 = arith.constant 192 : index
      %139 = vector.load %arg7[%c0_119, %c192_120] : memref<1x256xf32, #tpu.memory_space<vmem>>, vector<1x16xf32>
      %cst_121 = arith.constant 2.500000e-01 : f32
      %140 = vector.broadcast %cst_121 : f32 to vector<1x16xf32>
      %141 = arith.mulf %139, %140 : vector<1x16xf32>
      %c1_122 = arith.constant 1 : index
      %c15_123 = arith.constant 15 : index
      %c3_124 = arith.constant 3 : index
      %142 = vector.load %arg8[%c1_122, %c15_123, %c3_124] : memref<2x22x22xf32, #tpu.memory_space<vmem>>, vector<1x1x16xf32>
      %143 = vector.shape_cast %142 : vector<1x1x16xf32> to vector<1x16xf32>
      %144 = vector.shape_cast %141 : vector<1x16xf32> to vector<1x1x16xf32>
      tpu.vector_store %arg8[%c1_122, %c15_123, %c3_124], %144 {strides = array<i32>} : memref<2x22x22xf32, #tpu.memory_space<vmem>>, vector<1x1x16xf32>,
      %c0_125 = arith.constant 0 : index
      %c208 = arith.constant 208 : index
      %145 = vector.load %arg6[%c0_125, %c208] : memref<1x256xf32, #tpu.memory_space<vmem>>, vector<1x16xf32>
      %c0_126 = arith.constant 0 : index
      %c16_127 = arith.constant 16 : index
      %c3_128 = arith.constant 3 : index
      %146 = vector.load %arg8[%c0_126, %c16_127, %c3_128] : memref<2x22x22xf32, #tpu.memory_space<vmem>>, vector<1x1x16xf32>
      %147 = vector.shape_cast %146 : vector<1x1x16xf32> to vector<1x16xf32>
      %148 = vector.shape_cast %145 : vector<1x16xf32> to vector<1x1x16xf32>
      tpu.vector_store %arg8[%c0_126, %c16_127, %c3_128], %148 {strides = array<i32>} : memref<2x22x22xf32, #tpu.memory_space<vmem>>, vector<1x1x16xf32>,
      %c0_129 = arith.constant 0 : index
      %c208_130 = arith.constant 208 : index
      %149 = vector.load %arg7[%c0_129, %c208_130] : memref<1x256xf32, #tpu.memory_space<vmem>>, vector<1x16xf32>
      %cst_131 = arith.constant 2.500000e-01 : f32
      %150 = vector.broadcast %cst_131 : f32 to vector<1x16xf32>
      %151 = arith.mulf %149, %150 : vector<1x16xf32>
      %c1_132 = arith.constant 1 : index
      %c16_133 = arith.constant 16 : index
      %c3_134 = arith.constant 3 : index
      %152 = vector.load %arg8[%c1_132, %c16_133, %c3_134] : memref<2x22x22xf32, #tpu.memory_space<vmem>>, vector<1x1x16xf32>
      %153 = vector.shape_cast %152 : vector<1x1x16xf32> to vector<1x16xf32>
      %154 = vector.shape_cast %151 : vector<1x16xf32> to vector<1x1x16xf32>
      tpu.vector_store %arg8[%c1_132, %c16_133, %c3_134], %154 {strides = array<i32>} : memref<2x22x22xf32, #tpu.memory_space<vmem>>, vector<1x1x16xf32>,
      %c0_135 = arith.constant 0 : index
      %c224 = arith.constant 224 : index
      %155 = vector.load %arg6[%c0_135, %c224] : memref<1x256xf32, #tpu.memory_space<vmem>>, vector<1x16xf32>
      %c0_136 = arith.constant 0 : index
      %c17 = arith.constant 17 : index
      %c3_137 = arith.constant 3 : index
      %156 = vector.load %arg8[%c0_136, %c17, %c3_137] : memref<2x22x22xf32, #tpu.memory_space<vmem>>, vector<1x1x16xf32>
      %157 = vector.shape_cast %156 : vector<1x1x16xf32> to vector<1x16xf32>
      %158 = vector.shape_cast %155 : vector<1x16xf32> to vector<1x1x16xf32>
      tpu.vector_store %arg8[%c0_136, %c17, %c3_137], %158 {strides = array<i32>} : memref<2x22x22xf32, #tpu.memory_space<vmem>>, vector<1x1x16xf32>,
      %c0_138 = arith.constant 0 : index
      %c224_139 = arith.constant 224 : index
      %159 = vector.load %arg7[%c0_138, %c224_139] : memref<1x256xf32, #tpu.memory_space<vmem>>, vector<1x16xf32>
      %cst_140 = arith.constant 2.500000e-01 : f32
      %160 = vector.broadcast %cst_140 : f32 to vector<1x16xf32>
      %161 = arith.mulf %159, %160 : vector<1x16xf32>
      %c1_141 = arith.constant 1 : index
      %c17_142 = arith.constant 17 : index
      %c3_143 = arith.constant 3 : index
      %162 = vector.load %arg8[%c1_141, %c17_142, %c3_143] : memref<2x22x22xf32, #tpu.memory_space<vmem>>, vector<1x1x16xf32>
      %163 = vector.shape_cast %162 : vector<1x1x16xf32> to vector<1x16xf32>
      %164 = vector.shape_cast %161 : vector<1x16xf32> to vector<1x1x16xf32>
      tpu.vector_store %arg8[%c1_141, %c17_142, %c3_143], %164 {strides = array<i32>} : memref<2x22x22xf32, #tpu.memory_space<vmem>>, vector<1x1x16xf32>,
      %c0_144 = arith.constant 0 : index
      %c240 = arith.constant 240 : index
      %165 = vector.load %arg6[%c0_144, %c240] : memref<1x256xf32, #tpu.memory_space<vmem>>, vector<1x16xf32>
      %c0_145 = arith.constant 0 : index
      %c18 = arith.constant 18 : index
      %c3_146 = arith.constant 3 : index
      %166 = vector.load %arg8[%c0_145, %c18, %c3_146] : memref<2x22x22xf32, #tpu.memory_space<vmem>>, vector<1x1x16xf32>
      %167 = vector.shape_cast %166 : vector<1x1x16xf32> to vector<1x16xf32>
      %168 = vector.shape_cast %165 : vector<1x16xf32> to vector<1x1x16xf32>
      tpu.vector_store %arg8[%c0_145, %c18, %c3_146], %168 {strides = array<i32>} : memref<2x22x22xf32, #tpu.memory_space<vmem>>, vector<1x1x16xf32>,
      %c0_147 = arith.constant 0 : index
      %c240_148 = arith.constant 240 : index
      %169 = vector.load %arg7[%c0_147, %c240_148] : memref<1x256xf32, #tpu.memory_space<vmem>>, vector<1x16xf32>
      %cst_149 = arith.constant 2.500000e-01 : f32
      %170 = vector.broadcast %cst_149 : f32 to vector<1x16xf32>
      %171 = arith.mulf %169, %170 : vector<1x16xf32>
      %c1_150 = arith.constant 1 : index
      %c18_151 = arith.constant 18 : index
      %c3_152 = arith.constant 3 : index
      %172 = vector.load %arg8[%c1_150, %c18_151, %c3_152] : memref<2x22x22xf32, #tpu.memory_space<vmem>>, vector<1x1x16xf32>
      %173 = vector.shape_cast %172 : vector<1x1x16xf32> to vector<1x16xf32>
      %174 = vector.shape_cast %171 : vector<1x16xf32> to vector<1x1x16xf32>
      tpu.vector_store %arg8[%c1_150, %c18_151, %c3_152], %174 {strides = array<i32>} : memref<2x22x22xf32, #tpu.memory_space<vmem>>, vector<1x1x16xf32>,
      %c0_153 = arith.constant 0 : index
      %c0_154 = arith.constant 0 : index
      %c0_155 = arith.constant 0 : index
      %175 = vector.load %arg8[%c0_153, %c0_154, %c0_155] : memref<2x22x22xf32, #tpu.memory_space<vmem>>, vector<1x16x22xf32>
      %176 = vector.shape_cast %175 : vector<1x16x22xf32> to vector<16x22xf32>
      %c0_156 = arith.constant 0 : index
      %177 = memref.load %arg3[%c0_156] : memref<98xf32, #tpu.memory_space<smem>>
      %178 = vector.extract_strided_slice %176 {offsets = [0, 0], sizes = [16, 16], strides = [1, 1]} : vector<16x22xf32> to vector<16x16xf32>
      %179 = vector.broadcast %177 : f32 to vector<16x16xf32>
      %180 = arith.mulf %178, %179 : vector<16x16xf32>
      %c1_157 = arith.constant 1 : index
      %181 = memref.load %arg3[%c1_157] : memref<98xf32, #tpu.memory_space<smem>>
      %182 = vector.extract_strided_slice %176 {offsets = [0, 1], sizes = [16, 16], strides = [1, 1]} : vector<16x22xf32> to vector<16x16xf32>
      %183 = vector.broadcast %181 : f32 to vector<16x16xf32>
      %184 = arith.mulf %182, %183 : vector<16x16xf32>
      %185 = arith.addf %180, %184 : vector<16x16xf32>
      %c2 = arith.constant 2 : index
      %186 = memref.load %arg3[%c2] : memref<98xf32, #tpu.memory_space<smem>>
      %187 = vector.extract_strided_slice %176 {offsets = [0, 2], sizes = [16, 16], strides = [1, 1]} : vector<16x22xf32> to vector<16x16xf32>
      %188 = vector.broadcast %186 : f32 to vector<16x16xf32>
      %189 = arith.mulf %187, %188 : vector<16x16xf32>
      %190 = arith.addf %185, %189 : vector<16x16xf32>
      %c3_158 = arith.constant 3 : index
      %191 = memref.load %arg3[%c3_158] : memref<98xf32, #tpu.memory_space<smem>>
      %192 = vector.extract_strided_slice %176 {offsets = [0, 3], sizes = [16, 16], strides = [1, 1]} : vector<16x22xf32> to vector<16x16xf32>
      %193 = vector.broadcast %191 : f32 to vector<16x16xf32>
      %194 = arith.mulf %192, %193 : vector<16x16xf32>
      %195 = arith.addf %190, %194 : vector<16x16xf32>
      %c4_159 = arith.constant 4 : index
      %196 = memref.load %arg3[%c4_159] : memref<98xf32, #tpu.memory_space<smem>>
      %197 = vector.extract_strided_slice %176 {offsets = [0, 4], sizes = [16, 16], strides = [1, 1]} : vector<16x22xf32> to vector<16x16xf32>
      %198 = vector.broadcast %196 : f32 to vector<16x16xf32>
      %199 = arith.mulf %197, %198 : vector<16x16xf32>
      %200 = arith.addf %195, %199 : vector<16x16xf32>
      %c5_160 = arith.constant 5 : index
      %201 = memref.load %arg3[%c5_160] : memref<98xf32, #tpu.memory_space<smem>>
      %202 = vector.extract_strided_slice %176 {offsets = [0, 5], sizes = [16, 16], strides = [1, 1]} : vector<16x22xf32> to vector<16x16xf32>
      %203 = vector.broadcast %201 : f32 to vector<16x16xf32>
      %204 = arith.mulf %202, %203 : vector<16x16xf32>
      %205 = arith.addf %200, %204 : vector<16x16xf32>
      %c6_161 = arith.constant 6 : index
      %206 = memref.load %arg3[%c6_161] : memref<98xf32, #tpu.memory_space<smem>>
      %207 = vector.extract_strided_slice %176 {offsets = [0, 6], sizes = [16, 16], strides = [1, 1]} : vector<16x22xf32> to vector<16x16xf32>
      %208 = vector.broadcast %206 : f32 to vector<16x16xf32>
      %209 = arith.mulf %207, %208 : vector<16x16xf32>
      %210 = arith.addf %205, %209 : vector<16x16xf32>
      %c0_162 = arith.constant 0 : index
      %c1_163 = arith.constant 1 : index
      %c0_164 = arith.constant 0 : index
      %211 = vector.load %arg8[%c0_162, %c1_163, %c0_164] : memref<2x22x22xf32, #tpu.memory_space<vmem>>, vector<1x16x22xf32>
      %212 = vector.shape_cast %211 : vector<1x16x22xf32> to vector<16x22xf32>
      %c7_165 = arith.constant 7 : index
      %213 = memref.load %arg3[%c7_165] : memref<98xf32, #tpu.memory_space<smem>>
      %214 = vector.extract_strided_slice %212 {offsets = [0, 0], sizes = [16, 16], strides = [1, 1]} : vector<16x22xf32> to vector<16x16xf32>
      %215 = vector.broadcast %213 : f32 to vector<16x16xf32>
      %216 = arith.mulf %214, %215 : vector<16x16xf32>
      %c8_166 = arith.constant 8 : index
      %217 = memref.load %arg3[%c8_166] : memref<98xf32, #tpu.memory_space<smem>>
      %218 = vector.extract_strided_slice %212 {offsets = [0, 1], sizes = [16, 16], strides = [1, 1]} : vector<16x22xf32> to vector<16x16xf32>
      %219 = vector.broadcast %217 : f32 to vector<16x16xf32>
      %220 = arith.mulf %218, %219 : vector<16x16xf32>
      %221 = arith.addf %216, %220 : vector<16x16xf32>
      %c9_167 = arith.constant 9 : index
      %222 = memref.load %arg3[%c9_167] : memref<98xf32, #tpu.memory_space<smem>>
      %223 = vector.extract_strided_slice %212 {offsets = [0, 2], sizes = [16, 16], strides = [1, 1]} : vector<16x22xf32> to vector<16x16xf32>
      %224 = vector.broadcast %222 : f32 to vector<16x16xf32>
      %225 = arith.mulf %223, %224 : vector<16x16xf32>
      %226 = arith.addf %221, %225 : vector<16x16xf32>
      %c10_168 = arith.constant 10 : index
      %227 = memref.load %arg3[%c10_168] : memref<98xf32, #tpu.memory_space<smem>>
      %228 = vector.extract_strided_slice %212 {offsets = [0, 3], sizes = [16, 16], strides = [1, 1]} : vector<16x22xf32> to vector<16x16xf32>
      %229 = vector.broadcast %227 : f32 to vector<16x16xf32>
      %230 = arith.mulf %228, %229 : vector<16x16xf32>
      %231 = arith.addf %226, %230 : vector<16x16xf32>
      %c11_169 = arith.constant 11 : index
      %232 = memref.load %arg3[%c11_169] : memref<98xf32, #tpu.memory_space<smem>>
      %233 = vector.extract_strided_slice %212 {offsets = [0, 4], sizes = [16, 16], strides = [1, 1]} : vector<16x22xf32> to vector<16x16xf32>
      %234 = vector.broadcast %232 : f32 to vector<16x16xf32>
      %235 = arith.mulf %233, %234 : vector<16x16xf32>
      %236 = arith.addf %231, %235 : vector<16x16xf32>
      %c12_170 = arith.constant 12 : index
      %237 = memref.load %arg3[%c12_170] : memref<98xf32, #tpu.memory_space<smem>>
      %238 = vector.extract_strided_slice %212 {offsets = [0, 5], sizes = [16, 16], strides = [1, 1]} : vector<16x22xf32> to vector<16x16xf32>
      %239 = vector.broadcast %237 : f32 to vector<16x16xf32>
      %240 = arith.mulf %238, %239 : vector<16x16xf32>
      %241 = arith.addf %236, %240 : vector<16x16xf32>
      %c13_171 = arith.constant 13 : index
      %242 = memref.load %arg3[%c13_171] : memref<98xf32, #tpu.memory_space<smem>>
      %243 = vector.extract_strided_slice %212 {offsets = [0, 6], sizes = [16, 16], strides = [1, 1]} : vector<16x22xf32> to vector<16x16xf32>
      %244 = vector.broadcast %242 : f32 to vector<16x16xf32>
      %245 = arith.mulf %243, %244 : vector<16x16xf32>
      %246 = arith.addf %241, %245 : vector<16x16xf32>
      %c0_172 = arith.constant 0 : index
      %c2_173 = arith.constant 2 : index
      %c0_174 = arith.constant 0 : index
      %247 = vector.load %arg8[%c0_172, %c2_173, %c0_174] : memref<2x22x22xf32, #tpu.memory_space<vmem>>, vector<1x16x22xf32>
      %248 = vector.shape_cast %247 : vector<1x16x22xf32> to vector<16x22xf32>
      %c14_175 = arith.constant 14 : index
      %249 = memref.load %arg3[%c14_175] : memref<98xf32, #tpu.memory_space<smem>>
      %250 = vector.extract_strided_slice %248 {offsets = [0, 0], sizes = [16, 16], strides = [1, 1]} : vector<16x22xf32> to vector<16x16xf32>
      %251 = vector.broadcast %249 : f32 to vector<16x16xf32>
      %252 = arith.mulf %250, %251 : vector<16x16xf32>
      %c15_176 = arith.constant 15 : index
      %253 = memref.load %arg3[%c15_176] : memref<98xf32, #tpu.memory_space<smem>>
      %254 = vector.extract_strided_slice %248 {offsets = [0, 1], sizes = [16, 16], strides = [1, 1]} : vector<16x22xf32> to vector<16x16xf32>
      %255 = vector.broadcast %253 : f32 to vector<16x16xf32>
      %256 = arith.mulf %254, %255 : vector<16x16xf32>
      %257 = arith.addf %252, %256 : vector<16x16xf32>
      %c16_177 = arith.constant 16 : index
      %258 = memref.load %arg3[%c16_177] : memref<98xf32, #tpu.memory_space<smem>>
      %259 = vector.extract_strided_slice %248 {offsets = [0, 2], sizes = [16, 16], strides = [1, 1]} : vector<16x22xf32> to vector<16x16xf32>
      %260 = vector.broadcast %258 : f32 to vector<16x16xf32>
      %261 = arith.mulf %259, %260 : vector<16x16xf32>
      %262 = arith.addf %257, %261 : vector<16x16xf32>
      %c17_178 = arith.constant 17 : index
      %263 = memref.load %arg3[%c17_178] : memref<98xf32, #tpu.memory_space<smem>>
      %264 = vector.extract_strided_slice %248 {offsets = [0, 3], sizes = [16, 16], strides = [1, 1]} : vector<16x22xf32> to vector<16x16xf32>
      %265 = vector.broadcast %263 : f32 to vector<16x16xf32>
      %266 = arith.mulf %264, %265 : vector<16x16xf32>
      %267 = arith.addf %262, %266 : vector<16x16xf32>
      %c18_179 = arith.constant 18 : index
      %268 = memref.load %arg3[%c18_179] : memref<98xf32, #tpu.memory_space<smem>>
      %269 = vector.extract_strided_slice %248 {offsets = [0, 4], sizes = [16, 16], strides = [1, 1]} : vector<16x22xf32> to vector<16x16xf32>
      %270 = vector.broadcast %268 : f32 to vector<16x16xf32>
      %271 = arith.mulf %269, %270 : vector<16x16xf32>
      %272 = arith.addf %267, %271 : vector<16x16xf32>
      %c19 = arith.constant 19 : index
      %273 = memref.load %arg3[%c19] : memref<98xf32, #tpu.memory_space<smem>>
      %274 = vector.extract_strided_slice %248 {offsets = [0, 5], sizes = [16, 16], strides = [1, 1]} : vector<16x22xf32> to vector<16x16xf32>
      %275 = vector.broadcast %273 : f32 to vector<16x16xf32>
      %276 = arith.mulf %274, %275 : vector<16x16xf32>
      %277 = arith.addf %272, %276 : vector<16x16xf32>
      %c20 = arith.constant 20 : index
      %278 = memref.load %arg3[%c20] : memref<98xf32, #tpu.memory_space<smem>>
      %279 = vector.extract_strided_slice %248 {offsets = [0, 6], sizes = [16, 16], strides = [1, 1]} : vector<16x22xf32> to vector<16x16xf32>
      %280 = vector.broadcast %278 : f32 to vector<16x16xf32>
      %281 = arith.mulf %279, %280 : vector<16x16xf32>
      %282 = arith.addf %277, %281 : vector<16x16xf32>
      %c0_180 = arith.constant 0 : index
      %c3_181 = arith.constant 3 : index
      %c0_182 = arith.constant 0 : index
      %283 = vector.load %arg8[%c0_180, %c3_181, %c0_182] : memref<2x22x22xf32, #tpu.memory_space<vmem>>, vector<1x16x22xf32>
      %284 = vector.shape_cast %283 : vector<1x16x22xf32> to vector<16x22xf32>
      %c21 = arith.constant 21 : index
      %285 = memref.load %arg3[%c21] : memref<98xf32, #tpu.memory_space<smem>>
      %286 = vector.extract_strided_slice %284 {offsets = [0, 0], sizes = [16, 16], strides = [1, 1]} : vector<16x22xf32> to vector<16x16xf32>
      %287 = vector.broadcast %285 : f32 to vector<16x16xf32>
      %288 = arith.mulf %286, %287 : vector<16x16xf32>
      %c22 = arith.constant 22 : index
      %289 = memref.load %arg3[%c22] : memref<98xf32, #tpu.memory_space<smem>>
      %290 = vector.extract_strided_slice %284 {offsets = [0, 1], sizes = [16, 16], strides = [1, 1]} : vector<16x22xf32> to vector<16x16xf32>
      %291 = vector.broadcast %289 : f32 to vector<16x16xf32>
      %292 = arith.mulf %290, %291 : vector<16x16xf32>
      %293 = arith.addf %288, %292 : vector<16x16xf32>
      %c23 = arith.constant 23 : index
      %294 = memref.load %arg3[%c23] : memref<98xf32, #tpu.memory_space<smem>>
      %295 = vector.extract_strided_slice %284 {offsets = [0, 2], sizes = [16, 16], strides = [1, 1]} : vector<16x22xf32> to vector<16x16xf32>
      %296 = vector.broadcast %294 : f32 to vector<16x16xf32>
      %297 = arith.mulf %295, %296 : vector<16x16xf32>
      %298 = arith.addf %293, %297 : vector<16x16xf32>
      %c24 = arith.constant 24 : index
      %299 = memref.load %arg3[%c24] : memref<98xf32, #tpu.memory_space<smem>>
      %300 = vector.extract_strided_slice %284 {offsets = [0, 3], sizes = [16, 16], strides = [1, 1]} : vector<16x22xf32> to vector<16x16xf32>
      %301 = vector.broadcast %299 : f32 to vector<16x16xf32>
      %302 = arith.mulf %300, %301 : vector<16x16xf32>
      %303 = arith.addf %298, %302 : vector<16x16xf32>
      %c25 = arith.constant 25 : index
      %304 = memref.load %arg3[%c25] : memref<98xf32, #tpu.memory_space<smem>>
      %305 = vector.extract_strided_slice %284 {offsets = [0, 4], sizes = [16, 16], strides = [1, 1]} : vector<16x22xf32> to vector<16x16xf32>
      %306 = vector.broadcast %304 : f32 to vector<16x16xf32>
      %307 = arith.mulf %305, %306 : vector<16x16xf32>
      %308 = arith.addf %303, %307 : vector<16x16xf32>
      %c26 = arith.constant 26 : index
      %309 = memref.load %arg3[%c26] : memref<98xf32, #tpu.memory_space<smem>>
      %310 = vector.extract_strided_slice %284 {offsets = [0, 5], sizes = [16, 16], strides = [1, 1]} : vector<16x22xf32> to vector<16x16xf32>
      %311 = vector.broadcast %309 : f32 to vector<16x16xf32>
      %312 = arith.mulf %310, %311 : vector<16x16xf32>
      %313 = arith.addf %308, %312 : vector<16x16xf32>
      %c27 = arith.constant 27 : index
      %314 = memref.load %arg3[%c27] : memref<98xf32, #tpu.memory_space<smem>>
      %315 = vector.extract_strided_slice %284 {offsets = [0, 6], sizes = [16, 16], strides = [1, 1]} : vector<16x22xf32> to vector<16x16xf32>
      %316 = vector.broadcast %314 : f32 to vector<16x16xf32>
      %317 = arith.mulf %315, %316 : vector<16x16xf32>
      %318 = arith.addf %313, %317 : vector<16x16xf32>
      %c0_183 = arith.constant 0 : index
      %c4_184 = arith.constant 4 : index
      %c0_185 = arith.constant 0 : index
      %319 = vector.load %arg8[%c0_183, %c4_184, %c0_185] : memref<2x22x22xf32, #tpu.memory_space<vmem>>, vector<1x16x22xf32>
      %320 = vector.shape_cast %319 : vector<1x16x22xf32> to vector<16x22xf32>
      %c28 = arith.constant 28 : index
      %321 = memref.load %arg3[%c28] : memref<98xf32, #tpu.memory_space<smem>>
      %322 = vector.extract_strided_slice %320 {offsets = [0, 0], sizes = [16, 16], strides = [1, 1]} : vector<16x22xf32> to vector<16x16xf32>
      %323 = vector.broadcast %321 : f32 to vector<16x16xf32>
      %324 = arith.mulf %322, %323 : vector<16x16xf32>
      %325 = arith.addf %210, %324 : vector<16x16xf32>
      %c29 = arith.constant 29 : index
      %326 = memref.load %arg3[%c29] : memref<98xf32, #tpu.memory_space<smem>>
      %327 = vector.extract_strided_slice %320 {offsets = [0, 1], sizes = [16, 16], strides = [1, 1]} : vector<16x22xf32> to vector<16x16xf32>
      %328 = vector.broadcast %326 : f32 to vector<16x16xf32>
      %329 = arith.mulf %327, %328 : vector<16x16xf32>
      %330 = arith.addf %325, %329 : vector<16x16xf32>
      %c30 = arith.constant 30 : index
      %331 = memref.load %arg3[%c30] : memref<98xf32, #tpu.memory_space<smem>>
      %332 = vector.extract_strided_slice %320 {offsets = [0, 2], sizes = [16, 16], strides = [1, 1]} : vector<16x22xf32> to vector<16x16xf32>
      %333 = vector.broadcast %331 : f32 to vector<16x16xf32>
      %334 = arith.mulf %332, %333 : vector<16x16xf32>
      %335 = arith.addf %330, %334 : vector<16x16xf32>
      %c31 = arith.constant 31 : index
      %336 = memref.load %arg3[%c31] : memref<98xf32, #tpu.memory_space<smem>>
      %337 = vector.extract_strided_slice %320 {offsets = [0, 3], sizes = [16, 16], strides = [1, 1]} : vector<16x22xf32> to vector<16x16xf32>
      %338 = vector.broadcast %336 : f32 to vector<16x16xf32>
      %339 = arith.mulf %337, %338 : vector<16x16xf32>
      %340 = arith.addf %335, %339 : vector<16x16xf32>
      %c32_186 = arith.constant 32 : index
      %341 = memref.load %arg3[%c32_186] : memref<98xf32, #tpu.memory_space<smem>>
      %342 = vector.extract_strided_slice %320 {offsets = [0, 4], sizes = [16, 16], strides = [1, 1]} : vector<16x22xf32> to vector<16x16xf32>
      %343 = vector.broadcast %341 : f32 to vector<16x16xf32>
      %344 = arith.mulf %342, %343 : vector<16x16xf32>
      %345 = arith.addf %340, %344 : vector<16x16xf32>
      %c33 = arith.constant 33 : index
      %346 = memref.load %arg3[%c33] : memref<98xf32, #tpu.memory_space<smem>>
      %347 = vector.extract_strided_slice %320 {offsets = [0, 5], sizes = [16, 16], strides = [1, 1]} : vector<16x22xf32> to vector<16x16xf32>
      %348 = vector.broadcast %346 : f32 to vector<16x16xf32>
      %349 = arith.mulf %347, %348 : vector<16x16xf32>
      %350 = arith.addf %345, %349 : vector<16x16xf32>
      %c34 = arith.constant 34 : index
      %351 = memref.load %arg3[%c34] : memref<98xf32, #tpu.memory_space<smem>>
      %352 = vector.extract_strided_slice %320 {offsets = [0, 6], sizes = [16, 16], strides = [1, 1]} : vector<16x22xf32> to vector<16x16xf32>
      %353 = vector.broadcast %351 : f32 to vector<16x16xf32>
      %354 = arith.mulf %352, %353 : vector<16x16xf32>
      %355 = arith.addf %350, %354 : vector<16x16xf32>
      %c0_187 = arith.constant 0 : index
      %c5_188 = arith.constant 5 : index
      %c0_189 = arith.constant 0 : index
      %356 = vector.load %arg8[%c0_187, %c5_188, %c0_189] : memref<2x22x22xf32, #tpu.memory_space<vmem>>, vector<1x16x22xf32>
      %357 = vector.shape_cast %356 : vector<1x16x22xf32> to vector<16x22xf32>
      %c35 = arith.constant 35 : index
      %358 = memref.load %arg3[%c35] : memref<98xf32, #tpu.memory_space<smem>>
      %359 = vector.extract_strided_slice %357 {offsets = [0, 0], sizes = [16, 16], strides = [1, 1]} : vector<16x22xf32> to vector<16x16xf32>
      %360 = vector.broadcast %358 : f32 to vector<16x16xf32>
      %361 = arith.mulf %359, %360 : vector<16x16xf32>
      %362 = arith.addf %246, %361 : vector<16x16xf32>
      %c36 = arith.constant 36 : index
      %363 = memref.load %arg3[%c36] : memref<98xf32, #tpu.memory_space<smem>>
      %364 = vector.extract_strided_slice %357 {offsets = [0, 1], sizes = [16, 16], strides = [1, 1]} : vector<16x22xf32> to vector<16x16xf32>
      %365 = vector.broadcast %363 : f32 to vector<16x16xf32>
      %366 = arith.mulf %364, %365 : vector<16x16xf32>
      %367 = arith.addf %362, %366 : vector<16x16xf32>
      %c37 = arith.constant 37 : index
      %368 = memref.load %arg3[%c37] : memref<98xf32, #tpu.memory_space<smem>>
      %369 = vector.extract_strided_slice %357 {offsets = [0, 2], sizes = [16, 16], strides = [1, 1]} : vector<16x22xf32> to vector<16x16xf32>
      %370 = vector.broadcast %368 : f32 to vector<16x16xf32>
      %371 = arith.mulf %369, %370 : vector<16x16xf32>
      %372 = arith.addf %367, %371 : vector<16x16xf32>
      %c38 = arith.constant 38 : index
      %373 = memref.load %arg3[%c38] : memref<98xf32, #tpu.memory_space<smem>>
      %374 = vector.extract_strided_slice %357 {offsets = [0, 3], sizes = [16, 16], strides = [1, 1]} : vector<16x22xf32> to vector<16x16xf32>
      %375 = vector.broadcast %373 : f32 to vector<16x16xf32>
      %376 = arith.mulf %374, %375 : vector<16x16xf32>
      %377 = arith.addf %372, %376 : vector<16x16xf32>
      %c39 = arith.constant 39 : index
      %378 = memref.load %arg3[%c39] : memref<98xf32, #tpu.memory_space<smem>>
      %379 = vector.extract_strided_slice %357 {offsets = [0, 4], sizes = [16, 16], strides = [1, 1]} : vector<16x22xf32> to vector<16x16xf32>
      %380 = vector.broadcast %378 : f32 to vector<16x16xf32>
      %381 = arith.mulf %379, %380 : vector<16x16xf32>
      %382 = arith.addf %377, %381 : vector<16x16xf32>
      %c40 = arith.constant 40 : index
      %383 = memref.load %arg3[%c40] : memref<98xf32, #tpu.memory_space<smem>>
      %384 = vector.extract_strided_slice %357 {offsets = [0, 5], sizes = [16, 16], strides = [1, 1]} : vector<16x22xf32> to vector<16x16xf32>
      %385 = vector.broadcast %383 : f32 to vector<16x16xf32>
      %386 = arith.mulf %384, %385 : vector<16x16xf32>
      %387 = arith.addf %382, %386 : vector<16x16xf32>
      %c41 = arith.constant 41 : index
      %388 = memref.load %arg3[%c41] : memref<98xf32, #tpu.memory_space<smem>>
      %389 = vector.extract_strided_slice %357 {offsets = [0, 6], sizes = [16, 16], strides = [1, 1]} : vector<16x22xf32> to vector<16x16xf32>
      %390 = vector.broadcast %388 : f32 to vector<16x16xf32>
      %391 = arith.mulf %389, %390 : vector<16x16xf32>
      %392 = arith.addf %387, %391 : vector<16x16xf32>
      %c0_190 = arith.constant 0 : index
      %c6_191 = arith.constant 6 : index
      %c0_192 = arith.constant 0 : index
      %393 = vector.load %arg8[%c0_190, %c6_191, %c0_192] : memref<2x22x22xf32, #tpu.memory_space<vmem>>, vector<1x16x22xf32>
      %394 = vector.shape_cast %393 : vector<1x16x22xf32> to vector<16x22xf32>
      %c42 = arith.constant 42 : index
      %395 = memref.load %arg3[%c42] : memref<98xf32, #tpu.memory_space<smem>>
      %396 = vector.extract_strided_slice %394 {offsets = [0, 0], sizes = [16, 16], strides = [1, 1]} : vector<16x22xf32> to vector<16x16xf32>
      %397 = vector.broadcast %395 : f32 to vector<16x16xf32>
      %398 = arith.mulf %396, %397 : vector<16x16xf32>
      %399 = arith.addf %282, %398 : vector<16x16xf32>
      %c43 = arith.constant 43 : index
      %400 = memref.load %arg3[%c43] : memref<98xf32, #tpu.memory_space<smem>>
      %401 = vector.extract_strided_slice %394 {offsets = [0, 1], sizes = [16, 16], strides = [1, 1]} : vector<16x22xf32> to vector<16x16xf32>
      %402 = vector.broadcast %400 : f32 to vector<16x16xf32>
      %403 = arith.mulf %401, %402 : vector<16x16xf32>
      %404 = arith.addf %399, %403 : vector<16x16xf32>
      %c44 = arith.constant 44 : index
      %405 = memref.load %arg3[%c44] : memref<98xf32, #tpu.memory_space<smem>>
      %406 = vector.extract_strided_slice %394 {offsets = [0, 2], sizes = [16, 16], strides = [1, 1]} : vector<16x22xf32> to vector<16x16xf32>
      %407 = vector.broadcast %405 : f32 to vector<16x16xf32>
      %408 = arith.mulf %406, %407 : vector<16x16xf32>
      %409 = arith.addf %404, %408 : vector<16x16xf32>
      %c45 = arith.constant 45 : index
      %410 = memref.load %arg3[%c45] : memref<98xf32, #tpu.memory_space<smem>>
      %411 = vector.extract_strided_slice %394 {offsets = [0, 3], sizes = [16, 16], strides = [1, 1]} : vector<16x22xf32> to vector<16x16xf32>
      %412 = vector.broadcast %410 : f32 to vector<16x16xf32>
      %413 = arith.mulf %411, %412 : vector<16x16xf32>
      %414 = arith.addf %409, %413 : vector<16x16xf32>
      %c46 = arith.constant 46 : index
      %415 = memref.load %arg3[%c46] : memref<98xf32, #tpu.memory_space<smem>>
      %416 = vector.extract_strided_slice %394 {offsets = [0, 4], sizes = [16, 16], strides = [1, 1]} : vector<16x22xf32> to vector<16x16xf32>
      %417 = vector.broadcast %415 : f32 to vector<16x16xf32>
      %418 = arith.mulf %416, %417 : vector<16x16xf32>
      %419 = arith.addf %414, %418 : vector<16x16xf32>
      %c47 = arith.constant 47 : index
      %420 = memref.load %arg3[%c47] : memref<98xf32, #tpu.memory_space<smem>>
      %421 = vector.extract_strided_slice %394 {offsets = [0, 5], sizes = [16, 16], strides = [1, 1]} : vector<16x22xf32> to vector<16x16xf32>
      %422 = vector.broadcast %420 : f32 to vector<16x16xf32>
      %423 = arith.mulf %421, %422 : vector<16x16xf32>
      %424 = arith.addf %419, %423 : vector<16x16xf32>
      %c48_193 = arith.constant 48 : index
      %425 = memref.load %arg3[%c48_193] : memref<98xf32, #tpu.memory_space<smem>>
      %426 = vector.extract_strided_slice %394 {offsets = [0, 6], sizes = [16, 16], strides = [1, 1]} : vector<16x22xf32> to vector<16x16xf32>
      %427 = vector.broadcast %425 : f32 to vector<16x16xf32>
      %428 = arith.mulf %426, %427 : vector<16x16xf32>
      %429 = arith.addf %424, %428 : vector<16x16xf32>
      %c1_194 = arith.constant 1 : index
      %c0_195 = arith.constant 0 : index
      %c0_196 = arith.constant 0 : index
      %430 = vector.load %arg8[%c1_194, %c0_195, %c0_196] : memref<2x22x22xf32, #tpu.memory_space<vmem>>, vector<1x16x22xf32>
      %431 = vector.shape_cast %430 : vector<1x16x22xf32> to vector<16x22xf32>
      %c49 = arith.constant 49 : index
      %432 = memref.load %arg3[%c49] : memref<98xf32, #tpu.memory_space<smem>>
      %433 = vector.extract_strided_slice %431 {offsets = [0, 0], sizes = [16, 16], strides = [1, 1]} : vector<16x22xf32> to vector<16x16xf32>
      %434 = vector.broadcast %432 : f32 to vector<16x16xf32>
      %435 = arith.mulf %433, %434 : vector<16x16xf32>
      %436 = arith.addf %318, %435 : vector<16x16xf32>
      %c50 = arith.constant 50 : index
      %437 = memref.load %arg3[%c50] : memref<98xf32, #tpu.memory_space<smem>>
      %438 = vector.extract_strided_slice %431 {offsets = [0, 1], sizes = [16, 16], strides = [1, 1]} : vector<16x22xf32> to vector<16x16xf32>
      %439 = vector.broadcast %437 : f32 to vector<16x16xf32>
      %440 = arith.mulf %438, %439 : vector<16x16xf32>
      %441 = arith.addf %436, %440 : vector<16x16xf32>
      %c51 = arith.constant 51 : index
      %442 = memref.load %arg3[%c51] : memref<98xf32, #tpu.memory_space<smem>>
      %443 = vector.extract_strided_slice %431 {offsets = [0, 2], sizes = [16, 16], strides = [1, 1]} : vector<16x22xf32> to vector<16x16xf32>
      %444 = vector.broadcast %442 : f32 to vector<16x16xf32>
      %445 = arith.mulf %443, %444 : vector<16x16xf32>
      %446 = arith.addf %441, %445 : vector<16x16xf32>
      %c52 = arith.constant 52 : index
      %447 = memref.load %arg3[%c52] : memref<98xf32, #tpu.memory_space<smem>>
      %448 = vector.extract_strided_slice %431 {offsets = [0, 3], sizes = [16, 16], strides = [1, 1]} : vector<16x22xf32> to vector<16x16xf32>
      %449 = vector.broadcast %447 : f32 to vector<16x16xf32>
      %450 = arith.mulf %448, %449 : vector<16x16xf32>
      %451 = arith.addf %446, %450 : vector<16x16xf32>
      %c53 = arith.constant 53 : index
      %452 = memref.load %arg3[%c53] : memref<98xf32, #tpu.memory_space<smem>>
      %453 = vector.extract_strided_slice %431 {offsets = [0, 4], sizes = [16, 16], strides = [1, 1]} : vector<16x22xf32> to vector<16x16xf32>
      %454 = vector.broadcast %452 : f32 to vector<16x16xf32>
      %455 = arith.mulf %453, %454 : vector<16x16xf32>
      %456 = arith.addf %451, %455 : vector<16x16xf32>
      %c54 = arith.constant 54 : index
      %457 = memref.load %arg3[%c54] : memref<98xf32, #tpu.memory_space<smem>>
      %458 = vector.extract_strided_slice %431 {offsets = [0, 5], sizes = [16, 16], strides = [1, 1]} : vector<16x22xf32> to vector<16x16xf32>
      %459 = vector.broadcast %457 : f32 to vector<16x16xf32>
      %460 = arith.mulf %458, %459 : vector<16x16xf32>
      %461 = arith.addf %456, %460 : vector<16x16xf32>
      %c55 = arith.constant 55 : index
      %462 = memref.load %arg3[%c55] : memref<98xf32, #tpu.memory_space<smem>>
      %463 = vector.extract_strided_slice %431 {offsets = [0, 6], sizes = [16, 16], strides = [1, 1]} : vector<16x22xf32> to vector<16x16xf32>
      %464 = vector.broadcast %462 : f32 to vector<16x16xf32>
      %465 = arith.mulf %463, %464 : vector<16x16xf32>
      %466 = arith.addf %461, %465 : vector<16x16xf32>
      %c1_197 = arith.constant 1 : index
      %c1_198 = arith.constant 1 : index
      %c0_199 = arith.constant 0 : index
      %467 = vector.load %arg8[%c1_197, %c1_198, %c0_199] : memref<2x22x22xf32, #tpu.memory_space<vmem>>, vector<1x16x22xf32>
      %468 = vector.shape_cast %467 : vector<1x16x22xf32> to vector<16x22xf32>
      %c56 = arith.constant 56 : index
      %469 = memref.load %arg3[%c56] : memref<98xf32, #tpu.memory_space<smem>>
      %470 = vector.extract_strided_slice %468 {offsets = [0, 0], sizes = [16, 16], strides = [1, 1]} : vector<16x22xf32> to vector<16x16xf32>
      %471 = vector.broadcast %469 : f32 to vector<16x16xf32>
      %472 = arith.mulf %470, %471 : vector<16x16xf32>
      %473 = arith.addf %355, %472 : vector<16x16xf32>
      %c57 = arith.constant 57 : index
      %474 = memref.load %arg3[%c57] : memref<98xf32, #tpu.memory_space<smem>>
      %475 = vector.extract_strided_slice %468 {offsets = [0, 1], sizes = [16, 16], strides = [1, 1]} : vector<16x22xf32> to vector<16x16xf32>
      %476 = vector.broadcast %474 : f32 to vector<16x16xf32>
      %477 = arith.mulf %475, %476 : vector<16x16xf32>
      %478 = arith.addf %473, %477 : vector<16x16xf32>
      %c58 = arith.constant 58 : index
      %479 = memref.load %arg3[%c58] : memref<98xf32, #tpu.memory_space<smem>>
      %480 = vector.extract_strided_slice %468 {offsets = [0, 2], sizes = [16, 16], strides = [1, 1]} : vector<16x22xf32> to vector<16x16xf32>
      %481 = vector.broadcast %479 : f32 to vector<16x16xf32>
      %482 = arith.mulf %480, %481 : vector<16x16xf32>
      %483 = arith.addf %478, %482 : vector<16x16xf32>
      %c59 = arith.constant 59 : index
      %484 = memref.load %arg3[%c59] : memref<98xf32, #tpu.memory_space<smem>>
      %485 = vector.extract_strided_slice %468 {offsets = [0, 3], sizes = [16, 16], strides = [1, 1]} : vector<16x22xf32> to vector<16x16xf32>
      %486 = vector.broadcast %484 : f32 to vector<16x16xf32>
      %487 = arith.mulf %485, %486 : vector<16x16xf32>
      %488 = arith.addf %483, %487 : vector<16x16xf32>
      %c60 = arith.constant 60 : index
      %489 = memref.load %arg3[%c60] : memref<98xf32, #tpu.memory_space<smem>>
      %490 = vector.extract_strided_slice %468 {offsets = [0, 4], sizes = [16, 16], strides = [1, 1]} : vector<16x22xf32> to vector<16x16xf32>
      %491 = vector.broadcast %489 : f32 to vector<16x16xf32>
      %492 = arith.mulf %490, %491 : vector<16x16xf32>
      %493 = arith.addf %488, %492 : vector<16x16xf32>
      %c61 = arith.constant 61 : index
      %494 = memref.load %arg3[%c61] : memref<98xf32, #tpu.memory_space<smem>>
      %495 = vector.extract_strided_slice %468 {offsets = [0, 5], sizes = [16, 16], strides = [1, 1]} : vector<16x22xf32> to vector<16x16xf32>
      %496 = vector.broadcast %494 : f32 to vector<16x16xf32>
      %497 = arith.mulf %495, %496 : vector<16x16xf32>
      %498 = arith.addf %493, %497 : vector<16x16xf32>
      %c62 = arith.constant 62 : index
      %499 = memref.load %arg3[%c62] : memref<98xf32, #tpu.memory_space<smem>>
      %500 = vector.extract_strided_slice %468 {offsets = [0, 6], sizes = [16, 16], strides = [1, 1]} : vector<16x22xf32> to vector<16x16xf32>
      %501 = vector.broadcast %499 : f32 to vector<16x16xf32>
      %502 = arith.mulf %500, %501 : vector<16x16xf32>
      %503 = arith.addf %498, %502 : vector<16x16xf32>
      %c1_200 = arith.constant 1 : index
      %c2_201 = arith.constant 2 : index
      %c0_202 = arith.constant 0 : index
      %504 = vector.load %arg8[%c1_200, %c2_201, %c0_202] : memref<2x22x22xf32, #tpu.memory_space<vmem>>, vector<1x16x22xf32>
      %505 = vector.shape_cast %504 : vector<1x16x22xf32> to vector<16x22xf32>
      %c63 = arith.constant 63 : index
      %506 = memref.load %arg3[%c63] : memref<98xf32, #tpu.memory_space<smem>>
      %507 = vector.extract_strided_slice %505 {offsets = [0, 0], sizes = [16, 16], strides = [1, 1]} : vector<16x22xf32> to vector<16x16xf32>
      %508 = vector.broadcast %506 : f32 to vector<16x16xf32>
      %509 = arith.mulf %507, %508 : vector<16x16xf32>
      %510 = arith.addf %392, %509 : vector<16x16xf32>
      %c64_203 = arith.constant 64 : index
      %511 = memref.load %arg3[%c64_203] : memref<98xf32, #tpu.memory_space<smem>>
      %512 = vector.extract_strided_slice %505 {offsets = [0, 1], sizes = [16, 16], strides = [1, 1]} : vector<16x22xf32> to vector<16x16xf32>
      %513 = vector.broadcast %511 : f32 to vector<16x16xf32>
      %514 = arith.mulf %512, %513 : vector<16x16xf32>
      %515 = arith.addf %510, %514 : vector<16x16xf32>
      %c65 = arith.constant 65 : index
      %516 = memref.load %arg3[%c65] : memref<98xf32, #tpu.memory_space<smem>>
      %517 = vector.extract_strided_slice %505 {offsets = [0, 2], sizes = [16, 16], strides = [1, 1]} : vector<16x22xf32> to vector<16x16xf32>
      %518 = vector.broadcast %516 : f32 to vector<16x16xf32>
      %519 = arith.mulf %517, %518 : vector<16x16xf32>
      %520 = arith.addf %515, %519 : vector<16x16xf32>
      %c66 = arith.constant 66 : index
      %521 = memref.load %arg3[%c66] : memref<98xf32, #tpu.memory_space<smem>>
      %522 = vector.extract_strided_slice %505 {offsets = [0, 3], sizes = [16, 16], strides = [1, 1]} : vector<16x22xf32> to vector<16x16xf32>
      %523 = vector.broadcast %521 : f32 to vector<16x16xf32>
      %524 = arith.mulf %522, %523 : vector<16x16xf32>
      %525 = arith.addf %520, %524 : vector<16x16xf32>
      %c67 = arith.constant 67 : index
      %526 = memref.load %arg3[%c67] : memref<98xf32, #tpu.memory_space<smem>>
      %527 = vector.extract_strided_slice %505 {offsets = [0, 4], sizes = [16, 16], strides = [1, 1]} : vector<16x22xf32> to vector<16x16xf32>
      %528 = vector.broadcast %526 : f32 to vector<16x16xf32>
      %529 = arith.mulf %527, %528 : vector<16x16xf32>
      %530 = arith.addf %525, %529 : vector<16x16xf32>
      %c68 = arith.constant 68 : index
      %531 = memref.load %arg3[%c68] : memref<98xf32, #tpu.memory_space<smem>>
      %532 = vector.extract_strided_slice %505 {offsets = [0, 5], sizes = [16, 16], strides = [1, 1]} : vector<16x22xf32> to vector<16x16xf32>
      %533 = vector.broadcast %531 : f32 to vector<16x16xf32>
      %534 = arith.mulf %532, %533 : vector<16x16xf32>
      %535 = arith.addf %530, %534 : vector<16x16xf32>
      %c69 = arith.constant 69 : index
      %536 = memref.load %arg3[%c69] : memref<98xf32, #tpu.memory_space<smem>>
      %537 = vector.extract_strided_slice %505 {offsets = [0, 6], sizes = [16, 16], strides = [1, 1]} : vector<16x22xf32> to vector<16x16xf32>
      %538 = vector.broadcast %536 : f32 to vector<16x16xf32>
      %539 = arith.mulf %537, %538 : vector<16x16xf32>
      %540 = arith.addf %535, %539 : vector<16x16xf32>
      %c1_204 = arith.constant 1 : index
      %c3_205 = arith.constant 3 : index
      %c0_206 = arith.constant 0 : index
      %541 = vector.load %arg8[%c1_204, %c3_205, %c0_206] : memref<2x22x22xf32, #tpu.memory_space<vmem>>, vector<1x16x22xf32>
      %542 = vector.shape_cast %541 : vector<1x16x22xf32> to vector<16x22xf32>
      %c70 = arith.constant 70 : index
      %543 = memref.load %arg3[%c70] : memref<98xf32, #tpu.memory_space<smem>>
      %544 = vector.extract_strided_slice %542 {offsets = [0, 0], sizes = [16, 16], strides = [1, 1]} : vector<16x22xf32> to vector<16x16xf32>
      %545 = vector.broadcast %543 : f32 to vector<16x16xf32>
      %546 = arith.mulf %544, %545 : vector<16x16xf32>
      %547 = arith.addf %429, %546 : vector<16x16xf32>
      %c71 = arith.constant 71 : index
      %548 = memref.load %arg3[%c71] : memref<98xf32, #tpu.memory_space<smem>>
      %549 = vector.extract_strided_slice %542 {offsets = [0, 1], sizes = [16, 16], strides = [1, 1]} : vector<16x22xf32> to vector<16x16xf32>
      %550 = vector.broadcast %548 : f32 to vector<16x16xf32>
      %551 = arith.mulf %549, %550 : vector<16x16xf32>
      %552 = arith.addf %547, %551 : vector<16x16xf32>
      %c72 = arith.constant 72 : index
      %553 = memref.load %arg3[%c72] : memref<98xf32, #tpu.memory_space<smem>>
      %554 = vector.extract_strided_slice %542 {offsets = [0, 2], sizes = [16, 16], strides = [1, 1]} : vector<16x22xf32> to vector<16x16xf32>
      %555 = vector.broadcast %553 : f32 to vector<16x16xf32>
      %556 = arith.mulf %554, %555 : vector<16x16xf32>
      %557 = arith.addf %552, %556 : vector<16x16xf32>
      %c73 = arith.constant 73 : index
      %558 = memref.load %arg3[%c73] : memref<98xf32, #tpu.memory_space<smem>>
      %559 = vector.extract_strided_slice %542 {offsets = [0, 3], sizes = [16, 16], strides = [1, 1]} : vector<16x22xf32> to vector<16x16xf32>
      %560 = vector.broadcast %558 : f32 to vector<16x16xf32>
      %561 = arith.mulf %559, %560 : vector<16x16xf32>
      %562 = arith.addf %557, %561 : vector<16x16xf32>
      %c74 = arith.constant 74 : index
      %563 = memref.load %arg3[%c74] : memref<98xf32, #tpu.memory_space<smem>>
      %564 = vector.extract_strided_slice %542 {offsets = [0, 4], sizes = [16, 16], strides = [1, 1]} : vector<16x22xf32> to vector<16x16xf32>
      %565 = vector.broadcast %563 : f32 to vector<16x16xf32>
      %566 = arith.mulf %564, %565 : vector<16x16xf32>
      %567 = arith.addf %562, %566 : vector<16x16xf32>
      %c75 = arith.constant 75 : index
      %568 = memref.load %arg3[%c75] : memref<98xf32, #tpu.memory_space<smem>>
      %569 = vector.extract_strided_slice %542 {offsets = [0, 5], sizes = [16, 16], strides = [1, 1]} : vector<16x22xf32> to vector<16x16xf32>
      %570 = vector.broadcast %568 : f32 to vector<16x16xf32>
      %571 = arith.mulf %569, %570 : vector<16x16xf32>
      %572 = arith.addf %567, %571 : vector<16x16xf32>
      %c76 = arith.constant 76 : index
      %573 = memref.load %arg3[%c76] : memref<98xf32, #tpu.memory_space<smem>>
      %574 = vector.extract_strided_slice %542 {offsets = [0, 6], sizes = [16, 16], strides = [1, 1]} : vector<16x22xf32> to vector<16x16xf32>
      %575 = vector.broadcast %573 : f32 to vector<16x16xf32>
      %576 = arith.mulf %574, %575 : vector<16x16xf32>
      %577 = arith.addf %572, %576 : vector<16x16xf32>
      %c1_207 = arith.constant 1 : index
      %c4_208 = arith.constant 4 : index
      %c0_209 = arith.constant 0 : index
      %578 = vector.load %arg8[%c1_207, %c4_208, %c0_209] : memref<2x22x22xf32, #tpu.memory_space<vmem>>, vector<1x16x22xf32>
      %579 = vector.shape_cast %578 : vector<1x16x22xf32> to vector<16x22xf32>
      %c77 = arith.constant 77 : index
      %580 = memref.load %arg3[%c77] : memref<98xf32, #tpu.memory_space<smem>>
      %581 = vector.extract_strided_slice %579 {offsets = [0, 0], sizes = [16, 16], strides = [1, 1]} : vector<16x22xf32> to vector<16x16xf32>
      %582 = vector.broadcast %580 : f32 to vector<16x16xf32>
      %583 = arith.mulf %581, %582 : vector<16x16xf32>
      %584 = arith.addf %466, %583 : vector<16x16xf32>
      %c78 = arith.constant 78 : index
      %585 = memref.load %arg3[%c78] : memref<98xf32, #tpu.memory_space<smem>>
      %586 = vector.extract_strided_slice %579 {offsets = [0, 1], sizes = [16, 16], strides = [1, 1]} : vector<16x22xf32> to vector<16x16xf32>
      %587 = vector.broadcast %585 : f32 to vector<16x16xf32>
      %588 = arith.mulf %586, %587 : vector<16x16xf32>
      %589 = arith.addf %584, %588 : vector<16x16xf32>
      %c79 = arith.constant 79 : index
      %590 = memref.load %arg3[%c79] : memref<98xf32, #tpu.memory_space<smem>>
      %591 = vector.extract_strided_slice %579 {offsets = [0, 2], sizes = [16, 16], strides = [1, 1]} : vector<16x22xf32> to vector<16x16xf32>
      %592 = vector.broadcast %590 : f32 to vector<16x16xf32>
      %593 = arith.mulf %591, %592 : vector<16x16xf32>
      %594 = arith.addf %589, %593 : vector<16x16xf32>
      %c80_210 = arith.constant 80 : index
      %595 = memref.load %arg3[%c80_210] : memref<98xf32, #tpu.memory_space<smem>>
      %596 = vector.extract_strided_slice %579 {offsets = [0, 3], sizes = [16, 16], strides = [1, 1]} : vector<16x22xf32> to vector<16x16xf32>
      %597 = vector.broadcast %595 : f32 to vector<16x16xf32>
      %598 = arith.mulf %596, %597 : vector<16x16xf32>
      %599 = arith.addf %594, %598 : vector<16x16xf32>
      %c81 = arith.constant 81 : index
      %600 = memref.load %arg3[%c81] : memref<98xf32, #tpu.memory_space<smem>>
      %601 = vector.extract_strided_slice %579 {offsets = [0, 4], sizes = [16, 16], strides = [1, 1]} : vector<16x22xf32> to vector<16x16xf32>
      %602 = vector.broadcast %600 : f32 to vector<16x16xf32>
      %603 = arith.mulf %601, %602 : vector<16x16xf32>
      %604 = arith.addf %599, %603 : vector<16x16xf32>
      %c82 = arith.constant 82 : index
      %605 = memref.load %arg3[%c82] : memref<98xf32, #tpu.memory_space<smem>>
      %606 = vector.extract_strided_slice %579 {offsets = [0, 5], sizes = [16, 16], strides = [1, 1]} : vector<16x22xf32> to vector<16x16xf32>
      %607 = vector.broadcast %605 : f32 to vector<16x16xf32>
      %608 = arith.mulf %606, %607 : vector<16x16xf32>
      %609 = arith.addf %604, %608 : vector<16x16xf32>
      %c83 = arith.constant 83 : index
      %610 = memref.load %arg3[%c83] : memref<98xf32, #tpu.memory_space<smem>>
      %611 = vector.extract_strided_slice %579 {offsets = [0, 6], sizes = [16, 16], strides = [1, 1]} : vector<16x22xf32> to vector<16x16xf32>
      %612 = vector.broadcast %610 : f32 to vector<16x16xf32>
      %613 = arith.mulf %611, %612 : vector<16x16xf32>
      %614 = arith.addf %609, %613 : vector<16x16xf32>
      %c1_211 = arith.constant 1 : index
      %c5_212 = arith.constant 5 : index
      %c0_213 = arith.constant 0 : index
      %615 = vector.load %arg8[%c1_211, %c5_212, %c0_213] : memref<2x22x22xf32, #tpu.memory_space<vmem>>, vector<1x16x22xf32>
      %616 = vector.shape_cast %615 : vector<1x16x22xf32> to vector<16x22xf32>
      %c84 = arith.constant 84 : index
      %617 = memref.load %arg3[%c84] : memref<98xf32, #tpu.memory_space<smem>>
      %618 = vector.extract_strided_slice %616 {offsets = [0, 0], sizes = [16, 16], strides = [1, 1]} : vector<16x22xf32> to vector<16x16xf32>
      %619 = vector.broadcast %617 : f32 to vector<16x16xf32>
      %620 = arith.mulf %618, %619 : vector<16x16xf32>
      %621 = arith.addf %503, %620 : vector<16x16xf32>
      %c85 = arith.constant 85 : index
      %622 = memref.load %arg3[%c85] : memref<98xf32, #tpu.memory_space<smem>>
      %623 = vector.extract_strided_slice %616 {offsets = [0, 1], sizes = [16, 16], strides = [1, 1]} : vector<16x22xf32> to vector<16x16xf32>
      %624 = vector.broadcast %622 : f32 to vector<16x16xf32>
      %625 = arith.mulf %623, %624 : vector<16x16xf32>
      %626 = arith.addf %621, %625 : vector<16x16xf32>
      %c86 = arith.constant 86 : index
      %627 = memref.load %arg3[%c86] : memref<98xf32, #tpu.memory_space<smem>>
      %628 = vector.extract_strided_slice %616 {offsets = [0, 2], sizes = [16, 16], strides = [1, 1]} : vector<16x22xf32> to vector<16x16xf32>
      %629 = vector.broadcast %627 : f32 to vector<16x16xf32>
      %630 = arith.mulf %628, %629 : vector<16x16xf32>
      %631 = arith.addf %626, %630 : vector<16x16xf32>
      %c87 = arith.constant 87 : index
      %632 = memref.load %arg3[%c87] : memref<98xf32, #tpu.memory_space<smem>>
      %633 = vector.extract_strided_slice %616 {offsets = [0, 3], sizes = [16, 16], strides = [1, 1]} : vector<16x22xf32> to vector<16x16xf32>
      %634 = vector.broadcast %632 : f32 to vector<16x16xf32>
      %635 = arith.mulf %633, %634 : vector<16x16xf32>
      %636 = arith.addf %631, %635 : vector<16x16xf32>
      %c88 = arith.constant 88 : index
      %637 = memref.load %arg3[%c88] : memref<98xf32, #tpu.memory_space<smem>>
      %638 = vector.extract_strided_slice %616 {offsets = [0, 4], sizes = [16, 16], strides = [1, 1]} : vector<16x22xf32> to vector<16x16xf32>
      %639 = vector.broadcast %637 : f32 to vector<16x16xf32>
      %640 = arith.mulf %638, %639 : vector<16x16xf32>
      %641 = arith.addf %636, %640 : vector<16x16xf32>
      %c89 = arith.constant 89 : index
      %642 = memref.load %arg3[%c89] : memref<98xf32, #tpu.memory_space<smem>>
      %643 = vector.extract_strided_slice %616 {offsets = [0, 5], sizes = [16, 16], strides = [1, 1]} : vector<16x22xf32> to vector<16x16xf32>
      %644 = vector.broadcast %642 : f32 to vector<16x16xf32>
      %645 = arith.mulf %643, %644 : vector<16x16xf32>
      %646 = arith.addf %641, %645 : vector<16x16xf32>
      %c90 = arith.constant 90 : index
      %647 = memref.load %arg3[%c90] : memref<98xf32, #tpu.memory_space<smem>>
      %648 = vector.extract_strided_slice %616 {offsets = [0, 6], sizes = [16, 16], strides = [1, 1]} : vector<16x22xf32> to vector<16x16xf32>
      %649 = vector.broadcast %647 : f32 to vector<16x16xf32>
      %650 = arith.mulf %648, %649 : vector<16x16xf32>
      %651 = arith.addf %646, %650 : vector<16x16xf32>
      %c1_214 = arith.constant 1 : index
      %c6_215 = arith.constant 6 : index
      %c0_216 = arith.constant 0 : index
      %652 = vector.load %arg8[%c1_214, %c6_215, %c0_216] : memref<2x22x22xf32, #tpu.memory_space<vmem>>, vector<1x16x22xf32>
      %653 = vector.shape_cast %652 : vector<1x16x22xf32> to vector<16x22xf32>
      %c91 = arith.constant 91 : index
      %654 = memref.load %arg3[%c91] : memref<98xf32, #tpu.memory_space<smem>>
      %655 = vector.extract_strided_slice %653 {offsets = [0, 0], sizes = [16, 16], strides = [1, 1]} : vector<16x22xf32> to vector<16x16xf32>
      %656 = vector.broadcast %654 : f32 to vector<16x16xf32>
      %657 = arith.mulf %655, %656 : vector<16x16xf32>
      %658 = arith.addf %540, %657 : vector<16x16xf32>
      %c92 = arith.constant 92 : index
      %659 = memref.load %arg3[%c92] : memref<98xf32, #tpu.memory_space<smem>>
      %660 = vector.extract_strided_slice %653 {offsets = [0, 1], sizes = [16, 16], strides = [1, 1]} : vector<16x22xf32> to vector<16x16xf32>
      %661 = vector.broadcast %659 : f32 to vector<16x16xf32>
      %662 = arith.mulf %660, %661 : vector<16x16xf32>
      %663 = arith.addf %658, %662 : vector<16x16xf32>
      %c93 = arith.constant 93 : index
      %664 = memref.load %arg3[%c93] : memref<98xf32, #tpu.memory_space<smem>>
      %665 = vector.extract_strided_slice %653 {offsets = [0, 2], sizes = [16, 16], strides = [1, 1]} : vector<16x22xf32> to vector<16x16xf32>
      %666 = vector.broadcast %664 : f32 to vector<16x16xf32>
      %667 = arith.mulf %665, %666 : vector<16x16xf32>
      %668 = arith.addf %663, %667 : vector<16x16xf32>
      %c94 = arith.constant 94 : index
      %669 = memref.load %arg3[%c94] : memref<98xf32, #tpu.memory_space<smem>>
      %670 = vector.extract_strided_slice %653 {offsets = [0, 3], sizes = [16, 16], strides = [1, 1]} : vector<16x22xf32> to vector<16x16xf32>
      %671 = vector.broadcast %669 : f32 to vector<16x16xf32>
      %672 = arith.mulf %670, %671 : vector<16x16xf32>
      %673 = arith.addf %668, %672 : vector<16x16xf32>
      %c95 = arith.constant 95 : index
      %674 = memref.load %arg3[%c95] : memref<98xf32, #tpu.memory_space<smem>>
      %675 = vector.extract_strided_slice %653 {offsets = [0, 4], sizes = [16, 16], strides = [1, 1]} : vector<16x22xf32> to vector<16x16xf32>
      %676 = vector.broadcast %674 : f32 to vector<16x16xf32>
      %677 = arith.mulf %675, %676 : vector<16x16xf32>
      %678 = arith.addf %673, %677 : vector<16x16xf32>
      %c96_217 = arith.constant 96 : index
      %679 = memref.load %arg3[%c96_217] : memref<98xf32, #tpu.memory_space<smem>>
      %680 = vector.extract_strided_slice %653 {offsets = [0, 5], sizes = [16, 16], strides = [1, 1]} : vector<16x22xf32> to vector<16x16xf32>
      %681 = vector.broadcast %679 : f32 to vector<16x16xf32>
      %682 = arith.mulf %680, %681 : vector<16x16xf32>
      %683 = arith.addf %678, %682 : vector<16x16xf32>
      %c97 = arith.constant 97 : index
      %684 = memref.load %arg3[%c97] : memref<98xf32, #tpu.memory_space<smem>>
      %685 = vector.extract_strided_slice %653 {offsets = [0, 6], sizes = [16, 16], strides = [1, 1]} : vector<16x22xf32> to vector<16x16xf32>
      %686 = vector.broadcast %684 : f32 to vector<16x16xf32>
      %687 = arith.mulf %685, %686 : vector<16x16xf32>
      %688 = arith.addf %683, %687 : vector<16x16xf32>
      %689 = arith.addf %651, %688 : vector<16x16xf32>
      %690 = arith.addf %577, %614 : vector<16x16xf32>
      %691 = arith.addf %689, %690 : vector<16x16xf32>
      %c0_218 = arith.constant 0 : index
      %692 = memref.load %arg4[%c0_218] : memref<1xf32, #tpu.memory_space<smem>>
      %693 = vector.broadcast %692 : f32 to vector<16x16xf32>
      %694 = arith.addf %691, %693 : vector<16x16xf32>
      %695 = arith.negf %694 : vector<16x16xf32>
      %696 = math.exp %695 : vector<16x16xf32>
      %cst_219 = arith.constant 1.000000e+00 : f32
      %697 = vector.broadcast %cst_219 : f32 to vector<16x16xf32>
      %698 = arith.addf %697, %696 : vector<16x16xf32>
      %699 = arith.divf %697, %698 : vector<16x16xf32>
      %c0_220 = arith.constant 0 : index
      %c0_221 = arith.constant 0 : index
      %c0_222 = arith.constant 0 : index
      %c0_223 = arith.constant 0 : index
      %700 = vector.load %arg5[%c0_220, %c0_221, %c0_222, %c0_223] : memref<1x1x16x16xf32, #tpu.memory_space<vmem>>, vector<1x1x16x16xf32>
      %701 = vector.shape_cast %700 : vector<1x1x16x16xf32> to vector<16x16xf32>
      %702 = vector.shape_cast %699 : vector<16x16xf32> to vector<1x1x16x16xf32>
      tpu.vector_store %arg5[%c0_220, %c0_221, %c0_222, %c0_223], %702 {strides = array<i32>} : memref<1x1x16x16xf32, #tpu.memory_space<vmem>>, vector<1x1x16x16xf32>,
    } else {
    }
    return
  }
  func.func @transform_0(%arg0: i32, %arg1: i32) -> (i32, i32, i32) {
    %c0_i32 = arith.constant 0 : i32
    %c0_i32_0 = arith.constant 0 : i32
    return %arg0, %arg1, %c0_i32 : i32, i32, i32
  }
  func.func @transform_1(%arg0: i32, %arg1: i32) -> i32 {
    %c0_i32 = arith.constant 0 : i32
    %c0_i32_0 = arith.constant 0 : i32
    return %c0_i32 : i32
  }
  func.func @transform_2(%arg0: i32, %arg1: i32) -> i32 {
    %c0_i32 = arith.constant 0 : i32
    %c0_i32_0 = arith.constant 0 : i32
    return %c0_i32 : i32
  }
  func.func @transform_3(%arg0: i32, %arg1: i32) -> (i32, i32, i32, i32) {
    %c0_i32 = arith.constant 0 : i32
    %c0_i32_0 = arith.constant 0 : i32
    %c0_i32_1 = arith.constant 0 : i32
    %c0_i32_2 = arith.constant 0 : i32
    return %arg0, %c0_i32, %c0_i32_0, %c0_i32_1 : i32, i32, i32, i32
  }
}

</mosaic_0001>

<llo_original>
// kernel: tpu_custom_call.1
$region0: #{tpu_custom_call.1}
  #allocation0 [shape = 'u32[]', space=smem, size = 0x4, offset = 0x4, fixed_abs, tag = 'smem constant byte address 0x4 - core index']
  #allocation1 [shape = 'u32[72,128]{1,0:T(1,128)}', space=vmem, size = 0x9000, scoped, tag = 'internal scratch']
  #allocation2 [shape = 'f32[1,256]{1,0:T(1,128)}', space=vmem, size = 0x400, scoped, tag = 'scratch operand']
  #allocation3 [shape = 'f32[1,256]{1,0:T(1,128)}', space=vmem, size = 0x400, scoped, tag = 'scratch operand']
  #allocation4 [shape = 'f32[2,22,22]{2,1,0:T(8,128)}', space=vmem, size = 0x6000, scoped, tag = 'scratch operand']
  #allocation5 [shape = 'f32[1]{0:T(128)S(6)}', space=smem, size = 0x200, scoped, tag = 'scoped memory for tpu_custom_call.1']
  %s0 = inlined_call_operand.hbm [shape: f32[2,4,256], index: 0, kind: input, shape index: {}]
  %s1 = inlined_call_operand.vmem [shape: f32[98], index: 1, kind: input, shape index: {}]
  %s2 = inlined_call_operand.<no memory space> [shape: f32[1], index: 2, kind: input, shape index: {}]
  %s3 = inlined_call_operand.hbm [shape: f32[2,1,16,16], index: 3, kind: output, shape index: {}]
  %s4 = sld [smem:[#allocation0]]
  $region65: #{tpu_custom_call.1} parent=0
    _
  %s6 = ssub.s32 1, %s4
  %s7 = scalar_select 0, %s6, %s4
  %8 = sst [smem:[#allocation5]] %s2
  $region1: #{tpu_custom_call.1} parent=0
    #allocation6 [shape = 'u8[8192]{0}', space=vmem, size = 0x2000, scoped, tag = 'input window, operand 0']
    #allocation7 [shape = 's32[2]{0}', space=sflag, size = 0x8, scoped, tag = 'scoped memory for tpu_custom_call.1']
    #allocation8 [shape = 's32[2]{0}', space=sflag, size = 0x8, scoped, tag = 'scoped memory for tpu_custom_call.1']
    #allocation9 [shape = 's32[2]{0}', space=sflag, size = 0x8, scoped, tag = 'scoped memory for tpu_custom_call.1']
    #allocation10 [shape = 'u8[512]{0}', space=smem, size = 0x200, scoped, tag = 'input window, operand 1, single buffered']
    #allocation11 [shape = 'u8[16384]{0}', space=vmem, size = 0x4000, scoped, tag = 'output window, operand 0']
    %9 = vsyncpa [#allocation7], 0
    %s10 = scalar_lea.sflag [#allocation7], 1
    %11 = vsyncpa %s10, 0
    %12 = vsyncpa [#allocation9], 0
    %13 = vsyncpa [#allocation8], 0
    %s14 = scalar_lea.sflag [#allocation8], 1
    %15 = vsyncpa %s14, 0
    loop: start=0, step=1, limit=4
    $region2: #{tpu_custom_call.1} parent=1 // loop_pre_header
      _
    $region3: #{tpu_custom_call.1} parent=1 // loop_header
      %s17 = sphi 0, %s21
      %p18 = scmp.ge.s32.totalorder %s17, 4
      %s24 = sphi 0, %s36
      %s25 = sphi 0, %s32
      %s26 = sphi 0, %s24
      %s27 = sphi 0, %s25
      %s28 = sphi 0, %s26
      %s29 = sphi 0, %s27
      %s41 = sphi 0, %s43
      %s44 = sphi 0, %s41
      %s45 = sphi 0, %s44
      %s61 = sphi 0, %s45
      %s65 = sphi 0, %s65
      %s67 = sphi 0, %s65
      %s68 = sphi 0, %s67
      %s82 = sphi 0, %s68
      %s86 = sphi 0, %s86
      %s88 = sphi 0, %s86
      %s89 = sphi 0, %s88
      %s103 = sphi 0, %s89
      %s109 = sphi 0, %s111
      %s112 = sphi 0, %s109
      %s113 = sphi 0, %s112
      %s129 = sphi 0, %s113
    $region4: #{tpu_custom_call.1} parent=1 // loop_header_branch
      %20 = sbr.rel (%p18) target = $region8
    $region5: #{tpu_custom_call.1} parent=1 // loop_body
      %s22 = ssub.s32 %s17, 1
      %s23 = ssub.s32 %s17, 2
      %s30 = sadd.s32 1, %s25
      %p31 = scmp.ge.s32.totalorder %s30, 1
      %s32 = scalar_select %p31, 0, %s30
      %s33 = sadd.s32 1, %s24
      %s34 = scalar_select %p31, %s33, %s24
      %p35 = scmp.ge.s32.totalorder %s34, 2
      %s36 = scalar_select %p35, 0, %s34
      %s37 = ssub.s32 %s24, %s36
      %s38 = ssub.s32 %s25, %s32
      %s39 = sor.u32 %s37, %s38
      %p40 = scmp.eq.s32.totalorder %s39, 0
      %s42 = sadd.s32 %s41, 1
      %s43 = scalar_select %p40, %s41, %s42
      %p46 = pneg %p40
      %p47 = scmp.eq.s32.totalorder %s17, 1
      %p48 = por %p46, %p47
      %p49 = scmp.ne.s32.totalorder %s41, %s44
      %p50 = scmp.eq.s32.totalorder %s17, 0
      %p51 = por %p49, %p50
      %p52 = scmp.ne.s32.totalorder %s41, %s44
      %p53 = scmp.eq.s32.totalorder %s22, 1
      %p54 = por %p52, %p53
      %p55 = scmp.ne.s32.totalorder %s44, %s45
      %p56 = scmp.eq.s32.totalorder %s22, 0
      %p57 = por %p55, %p56
      %p58 = scmp.ne.s32.totalorder %s44, %s45
      %p59 = scmp.eq.s32.totalorder %s23, 1
      %p60 = por %p58, %p59
      %p62 = scmp.ne.s32.totalorder %s45, %s61
      %p63 = scmp.eq.s32.totalorder %s23, 0
      %p64 = por %p62, %p63
      %s66 = sadd.s32 %s65, 1
      %p69 = scmp.eq.s32.totalorder %s17, 1
      %p70 = scmp.ne.s32.totalorder %s65, %s67
      %p71 = scmp.eq.s32.totalorder %s17, 0
      %p72 = por %p70, %p71
      %p73 = scmp.ne.s32.totalorder %s65, %s67
      %p74 = scmp.eq.s32.totalorder %s22, 1
      %p75 = por %p73, %p74
      %p76 = scmp.ne.s32.totalorder %s67, %s68
      %p77 = scmp.eq.s32.totalorder %s22, 0
      %p78 = por %p76, %p77
      %p79 = scmp.ne.s32.totalorder %s67, %s68
      %p80 = scmp.eq.s32.totalorder %s23, 1
      %p81 = por %p79, %p80
      %p83 = scmp.ne.s32.totalorder %s68, %s82
      %p84 = scmp.eq.s32.totalorder %s23, 0
      %p85 = por %p83, %p84
      %s87 = sadd.s32 %s86, 1
      %p90 = scmp.eq.s32.totalorder %s17, 1
      %p91 = scmp.ne.s32.totalorder %s86, %s88
      %p92 = scmp.eq.s32.totalorder %s17, 0
      %p93 = por %p91, %p92
      %p94 = scmp.ne.s32.totalorder %s86, %s88
      %p95 = scmp.eq.s32.totalorder %s22, 1
      %p96 = por %p94, %p95
      %p97 = scmp.ne.s32.totalorder %s88, %s89
      %p98 = scmp.eq.s32.totalorder %s22, 0
      %p99 = por %p97, %p98
      %p100 = scmp.ne.s32.totalorder %s88, %s89
      %p101 = scmp.eq.s32.totalorder %s23, 1
      %p102 = por %p100, %p101
      %p104 = scmp.ne.s32.totalorder %s89, %s103
      %p105 = scmp.eq.s32.totalorder %s23, 0
      %p106 = por %p104, %p105
      %s107 = ssub.s32 %s24, %s36
      %p108 = scmp.eq.s32.totalorder %s107, 0
      %s110 = sadd.s32 %s109, 1
      %s111 = scalar_select %p108, %s109, %s110
      %p114 = pneg %p108
      %p115 = scmp.eq.s32.totalorder %s17, 1
      %p116 = por %p114, %p115
      %p117 = scmp.ne.s32.totalorder %s109, %s112
      %p118 = scmp.eq.s32.totalorder %s17, 0
      %p119 = por %p117, %p118
      %p120 = scmp.ne.s32.totalorder %s109, %s112
      %p121 = scmp.eq.s32.totalorder %s22, 1
      %p122 = por %p120, %p121
      %p123 = scmp.ne.s32.totalorder %s112, %s113
      %p124 = scmp.eq.s32.totalorder %s22, 0
      %p125 = por %p123, %p124
      %p126 = scmp.ne.s32.totalorder %s112, %s113
      %p127 = scmp.eq.s32.totalorder %s23, 1
      %p128 = por %p126, %p127
      %p130 = scmp.ne.s32.totalorder %s113, %s129
      %p131 = scmp.eq.s32.totalorder %s23, 0
      %p132 = por %p130, %p131
      %p133 = scmp.le.s32.totalorder 1, %s17
      %p134 = scmp.lt.s32.totalorder %s17, 3
      %p135 = pnand %p133, %p134
      %p136 = pneg %p135
      // Predicated region
      $region9: #{tpu_custom_call.1} parent=5 // pred_check
        _
      $region10: #{tpu_custom_call.1} parent=5 // pred_check_branch
        %138 = sbr.rel (%p135) target = $region12
      $region11: #{tpu_custom_call.1} parent=5 // pred_region
        %s139 = ssub.s32 %s17, 1
        // Predicated region
        $region13: #{tpu_custom_call.1} parent=11 // pred_check
          %p140 = pneg %p78
        $region14: #{tpu_custom_call.1} parent=11 // pred_check_branch
          %142 = sbr.rel (%p140) target = $region16
        $region15: #{tpu_custom_call.1} parent=11 // pred_region
          %144 = vsyncadd [#allocation9], 0
          %s146 = sshll.u32 %s1, 4
          %s147 = int_to_ptr.vmem [resolvable:$true] %s146
          %149 = dma.vmem_to_smem %s147, 16, [#allocation10], [#allocation9]
        $region16: #{tpu_custom_call.1} parent=11 // pred_fallthru
          _
        // Predicated region
        $region17: #{tpu_custom_call.1} parent=11 // pred_check
          %p150 = pneg %p99
        $region18: #{tpu_custom_call.1} parent=11 // pred_check_branch
          %152 = sbr.rel (%p150) target = $region20
        $region19: #{tpu_custom_call.1} parent=11 // pred_region
          _
        $region20: #{tpu_custom_call.1} parent=11 // pred_fallthru
          _
      $region12: #{tpu_custom_call.1} parent=5 // pred_fallthru
        _
      %p153 = scmp.lt.s32.totalorder %s17, 2
      // Predicated region
      $region21: #{tpu_custom_call.1} parent=5 // pred_check
        %p154 = pneg %p153
      $region22: #{tpu_custom_call.1} parent=5 // pred_check_branch
        %156 = sbr.rel (%p154) target = $region24
      $region23: #{tpu_custom_call.1} parent=5 // pred_region
        // Predicated region
        $region25: #{tpu_custom_call.1} parent=23 // pred_check
          %p157 = pneg %p51
        $region26: #{tpu_custom_call.1} parent=23 // pred_check_branch
          %159 = sbr.rel (%p157) target = $region28
        $region27: #{tpu_custom_call.1} parent=23 // pred_region
          %s160 = sand.u32 %s41, 1
          %s161 = scalar_lea.sflag [#allocation7], %s160
          %s162 = sand.u32 %s41, 1
          %s163 = smul.addr %s162, 8
          %s164 = scalar_lea.vmem [#allocation6], %s163
          %166 = vsyncadd %s161, 0
          %s167 = smul.addr %s25, 2
          %s168 = smul.addr %s24, 2
          %s169 = sadd.s32 %s167, %s168
          %s170 = smul.addr %s169, 4
          %s171 = scalar_lea.hbm %s0, %s170
          %s173 = sshll.u32 %s171, 4
          %s174 = int_to_ptr.hbm [resolvable:$true] %s173
          %s175 = sshll.u32 %s164, 4
          %s176 = int_to_ptr.vmem [resolvable:$true] %s175
          %178 = dma.hbm_to_vmem [thread:$0]  %s174, 128, %s176, %s161
        $region28: #{tpu_custom_call.1} parent=23 // pred_fallthru
          _
      $region24: #{tpu_custom_call.1} parent=5 // pred_fallthru
        _
      %p179 = scmp.le.s32.totalorder 1, %s17
      %p180 = scmp.lt.s32.totalorder %s17, 3
      %p181 = pnand %p179, %p180
      %p182 = pneg %p181
      // Predicated region
      $region29: #{tpu_custom_call.1} parent=5 // pred_check
        _
      $region30: #{tpu_custom_call.1} parent=5 // pred_check_branch
        %184 = sbr.rel (%p181) target = $region32
      $region31: #{tpu_custom_call.1} parent=5 // pred_region
        %s185 = ssub.s32 %s17, 1
        %s186 = sand.u32 %s44, 1
        %s187 = scalar_lea.sflag [#allocation7], %s186
        %s188 = sand.u32 %s44, 1
        %s189 = smul.addr %s188, 8
        %s190 = scalar_lea.vmem [#allocation6], %s189
        // Predicated region
        $region33: #{tpu_custom_call.1} parent=31 // pred_check
          %p191 = pneg %p57
        $region34: #{tpu_custom_call.1} parent=31 // pred_check_branch
          %193 = sbr.rel (%p191) target = $region36
        $region35: #{tpu_custom_call.1} parent=31 // pred_region
          %195 = dma.done %s187, 128
        $region36: #{tpu_custom_call.1} parent=31 // pred_fallthru
          _
        // Predicated region
        $region37: #{tpu_custom_call.1} parent=31 // pred_check
          %p196 = pneg %p78
        $region38: #{tpu_custom_call.1} parent=31 // pred_check_branch
          %198 = sbr.rel (%p196) target = $region40
        $region39: #{tpu_custom_call.1} parent=31 // pred_region
          %200 = dma.done [#allocation9], 16
        $region40: #{tpu_custom_call.1} parent=31 // pred_fallthru
          _
        %201 = sfence
        %s202 = sand.u32 %s44, 1
        %s203 = scalar_lea.sflag [#allocation7], %s202
        %s204 = sand.u32 %s44, 1
        %s205 = smul.addr %s204, 8
        %s206 = scalar_lea.vmem [#allocation6], %s205
        %p207 = pneg %p57
        %p208 = pneg %p54
        %p209 = pneg %p78
        %p210 = pneg %p75
        %p211 = pneg %p99
        %p212 = pneg %p96
        %p213 = pneg %p125
        %p214 = pneg %p122
        %s215 = sand.u32 %s112, 1
        %s216 = scalar_lea.sflag [#allocation8], %s215
        %s217 = sand.u32 %s112, 1
        %s218 = smul.addr %s217, 16
        %s219 = scalar_lea.vmem [#allocation11], %s218
        %v220 = vld [vmem:[%s190] sm:$0xff]
        %222 = vst [vmem:[#allocation1] ss:$2 sm:$0xff] %v220
        %v223 = vld.sshfl [vmem:[#allocation1] sm:$0xff pattern:$0x75316420]
        %v224 = vld.sshfl [vmem:[#allocation1 + $0x8] sm:$0xff pattern:$0x75316420]
        %vm227 = vcmask 1043456
        %v228 = vsel %vm227, %v223, -inf
        %v229 = vrot.slane %v228, 4
        %v230 = vmax.f32 %v228, %v229
        %v231 = vrot.slane %v230, 2
        %v232 = vmax.f32 %v230, %v231
        %v233 = vrot.slane %v232, 1
        %v234 = vmax.f32 %v232, %v233
        %v235 = vsel %vm227, %v224, -inf
        %v236 = vrot.slane %v235, 4
        %v237 = vmax.f32 %v235, %v236
        %v238 = vrot.slane %v237, 2
        %v239 = vmax.f32 %v237, %v238
        %v240 = vrot.slane %v239, 1
        %v241 = vmax.f32 %v239, %v240
        %242 = vst [vmem:[#allocation1] ss:$2 sm:$0xff] %v220
        %v243 = vld.sshfl [vmem:[#allocation1] sm:$0xff pattern:$0x75316420]
        %v244 = vld.sshfl [vmem:[#allocation1 + $0x8] sm:$0xff pattern:$0x75316420]
        %v247 = vsel %vm227, %v243, 0.0
        %v248 = vrot.slane %v247, 4
        %v249 = vadd.f32 %v247, %v248
        %v250 = vrot.slane %v249, 2
        %v251 = vadd.f32 %v249, %v250
        %v252 = vrot.slane %v251, 1
        %v253 = vadd.f32 %v251, %v252
        %v254 = vsel %vm227, %v244, 0.0
        %v255 = vrot.slane %v254, 4
        %v256 = vadd.f32 %v254, %v255
        %v257 = vrot.slane %v256, 2
        %v258 = vadd.f32 %v256, %v257
        %v259 = vrot.slane %v258, 1
        %v260 = vadd.f32 %v258, %v259
        %p261 = scmp.eq.s32.totalorder %s27, 0
        // Predicated region
        $region41: #{tpu_custom_call.1} parent=31 // pred_check
          %p262 = pneg %p261
        $region42: #{tpu_custom_call.1} parent=31 // pred_check_branch
          %264 = sbr.rel (%p262) target = $region44
        $region43: #{tpu_custom_call.1} parent=31 // pred_region
          %v267 = vrot.slane %v241, 7
          %vm268 = vcmask 1040384
          %v269 = vsel %vm268, %v234, %v267
          %v271 = vlaneseq
          %vm272 = vcmp.ge.s32.totalorder %v271, 0
          %vm273 = vcmp.lt.s32.totalorder %v271, 256
          %vm274 = vmand %vm272, %vm273
          %275 = vst.msk [vmem:[#allocation2] sm:$0x3] %vm274, %v269
          %v278 = vrot.slane %v260, 7
          %v279 = vsel %vm268, %v253, %v278
          %281 = vst.msk [vmem:[#allocation3] sm:$0x3] %vm274, %v279
          %vm282 = vcmask 174080
          %283 = vst.msk [vmem:[#allocation4] sm:$0x7] %vm282, 0.0
          %284 = vst.msk [vmem:[#allocation4 + $0x18] sm:$0x7] %vm282, 0.0
          %285 = vst.msk [vmem:[#allocation4 + $0x13] sm:$0x7] %vm282, 0.0
          %286 = vst.msk [vmem:[#allocation4 + $0x2b] sm:$0x7] %vm282, 0.0
          %vm287 = vcmask 23552
          %288 = vst.msk [vmem:[#allocation4] sm:$0xff] %vm287, 0.0
          %289 = vst.msk [vmem:[#allocation4 + $0x8] sm:$0xff] %vm287, 0.0
          %vm290 = vcmask 21504
          %291 = vst.msk [vmem:[#allocation4 + $0x10] sm:$0x3f] %vm290, 0.0
          %292 = vst.msk [vmem:[#allocation4 + $0x18] sm:$0xff] %vm287, 0.0
          %293 = vst.msk [vmem:[#allocation4 + $0x20] sm:$0xff] %vm287, 0.0
          %294 = vst.msk [vmem:[#allocation4 + $0x28] sm:$0x3f] %vm290, 0.0
          %vm295 = vcmask 179352
          %296 = vst.msk [vmem:[#allocation4] sm:$0xff] %vm295, 0.0
          %297 = vst.msk [vmem:[#allocation4 + $0x8] sm:$0xff] %vm295, 0.0
          %vm298 = vcmask 177304
          %299 = vst.msk [vmem:[#allocation4 + $0x10] sm:$0x3f] %vm298, 0.0
          %300 = vst.msk [vmem:[#allocation4 + $0x18] sm:$0xff] %vm295, 0.0
          %301 = vst.msk [vmem:[#allocation4 + $0x20] sm:$0xff] %vm295, 0.0
          %302 = vst.msk [vmem:[#allocation4 + $0x28] sm:$0x3f] %vm298, 0.0
        $region44: #{tpu_custom_call.1} parent=31 // pred_fallthru
          _
        %p303 = scmp.gt.s32.totalorder %s27, 0
        // Predicated region
        $region45: #{tpu_custom_call.1} parent=31 // pred_check
          %p304 = pneg %p303
        $region46: #{tpu_custom_call.1} parent=31 // pred_check_branch
          %306 = sbr.rel (%p304) target = $region48
        $region47: #{tpu_custom_call.1} parent=31 // pred_region
          %v307 = vld [vmem:[#allocation2] sm:$0x3]
          %v310 = vrot.slane %v241, 7
          %vm311 = vcmask 1040384
          %v312 = vsel %vm311, %v234, %v310
          %v314 = vmax.f32 %v307, %v312
          %v315 = vlaneseq
          %vm316 = vcmp.ge.s32.totalorder %v315, 0
          %vm317 = vcmp.lt.s32.totalorder %v315, 256
          %vm318 = vmand %vm316, %vm317
          %319 = vst.msk [vmem:[#allocation2] sm:$0x3] %vm318, %v314
          %v320 = vld [vmem:[#allocation3] sm:$0x3]
          %v323 = vrot.slane %v260, 7
          %v324 = vsel %vm311, %v253, %v323
          %v326 = vadd.f32 %v320, %v324
          %327 = vst.msk [vmem:[#allocation3] sm:$0x3] %vm318, %v326
        $region48: #{tpu_custom_call.1} parent=31 // pred_fallthru
          _
        // Predicated region
        $region49: #{tpu_custom_call.1} parent=31 // pred_check
          %p328 = pneg %p261
        $region50: #{tpu_custom_call.1} parent=31 // pred_check_branch
          %330 = sbr.rel (%p328) target = $region52
        $region51: #{tpu_custom_call.1} parent=31 // pred_region
          %v331 = vld [vmem:[#allocation2] sm:$0x1]
          %v333 = vperm.slane %v331, 0
          %334 = vrot.lane.b32.xlu0 %v333, 3
          %v335 = vpop.permute.xlu0 %334
          %vm337 = vcmask 147480
          %338 = vst.msk [vmem:[#allocation4 + $0x3] sm:$0x1] %vm337, %v335
          %v339 = vld [vmem:[#allocation3] sm:$0x1]
          %v340 = vmul.f32 %v339, 0.25
          %v342 = vperm.slane %v340, 0
          %343 = vrot.lane.b32.xlu0 %v342, 3
          %v344 = vpop.permute.xlu0 %343
          %s346 = scalar_lea.vmem [#allocation4], 24
          %347 = vst.msk [vmem:[%s346 + $0x3] sm:$0x1] %vm337, %v344
          %v348 = vld [vmem:[#allocation2] sm:$0x1]
          %v350 = vperm.slane %v348, 0
          %351 = vrot.lane.b32.xlu0 %v350, 115
          %v352 = vpop.permute.xlu0 %351
          %354 = vst.msk [vmem:[#allocation4 + $0x4] sm:$0x1] %vm337, %v352
          %v355 = vld [vmem:[#allocation3] sm:$0x1]
          %v356 = vmul.f32 %v355, 0.25
          %v358 = vperm.slane %v356, 0
          %359 = vrot.lane.b32.xlu0 %v358, 115
          %v360 = vpop.permute.xlu0 %359
          %362 = vst.msk [vmem:[%s346 + $0x4] sm:$0x1] %vm337, %v360
          %v363 = vld [vmem:[#allocation2] sm:$0x1]
          %v365 = vperm.slane %v363, 0
          %366 = vrot.lane.b32.xlu0 %v365, 99
          %v367 = vpop.permute.xlu0 %366
          %369 = vst.msk [vmem:[#allocation4 + $0x5] sm:$0x1] %vm337, %v367
          %v370 = vld [vmem:[#allocation3] sm:$0x1]
          %v371 = vmul.f32 %v370, 0.25
          %v373 = vperm.slane %v371, 0
          %374 = vrot.lane.b32.xlu0 %v373, 99
          %v375 = vpop.permute.xlu0 %374
          %377 = vst.msk [vmem:[%s346 + $0x5] sm:$0x1] %vm337, %v375
          %v378 = vld [vmem:[#allocation2] sm:$0x1]
          %v380 = vperm.slane %v378, 0
          %381 = vrot.lane.b32.xlu0 %v380, 83
          %v382 = vpop.permute.xlu0 %381
          %384 = vst.msk [vmem:[#allocation4 + $0x6] sm:$0x1] %vm337, %v382
          %v385 = vld [vmem:[#allocation3] sm:$0x1]
          %v386 = vmul.f32 %v385, 0.25
          %v388 = vperm.slane %v386, 0
          %389 = vrot.lane.b32.xlu0 %v388, 83
          %v390 = vpop.permute.xlu0 %389
          %392 = vst.msk [vmem:[%s346 + $0x6] sm:$0x1] %vm337, %v390
          %v393 = vld [vmem:[#allocation2] sm:$0x1]
          %v395 = vperm.slane %v393, 0
          %396 = vrot.lane.b32.xlu0 %v395, 67
          %v397 = vpop.permute.xlu0 %396
          %399 = vst.msk [vmem:[#allocation4 + $0x7] sm:$0x1] %vm337, %v397
          %v400 = vld [vmem:[#allocation3] sm:$0x1]
          %v401 = vmul.f32 %v400, 0.25
          %v403 = vperm.slane %v401, 0
          %404 = vrot.lane.b32.xlu0 %v403, 67
          %v405 = vpop.permute.xlu0 %404
          %407 = vst.msk [vmem:[%s346 + $0x7] sm:$0x1] %vm337, %v405
          %v408 = vld [vmem:[#allocation2] sm:$0x1]
          %v410 = vperm.slane %v408, 0
          %411 = vrot.lane.b32.xlu0 %v410, 51
          %v412 = vpop.permute.xlu0 %411
          %414 = vst.msk [vmem:[#allocation4 + $0x8] sm:$0x1] %vm337, %v412
          %v415 = vld [vmem:[#allocation3] sm:$0x1]
          %v416 = vmul.f32 %v415, 0.25
          %v418 = vperm.slane %v416, 0
          %419 = vrot.lane.b32.xlu0 %v418, 51
          %v420 = vpop.permute.xlu0 %419
          %422 = vst.msk [vmem:[%s346 + $0x8] sm:$0x1] %vm337, %v420
          %v423 = vld [vmem:[#allocation2] sm:$0x1]
          %v425 = vperm.slane %v423, 0
          %426 = vrot.lane.b32.xlu0 %v425, 35
          %v427 = vpop.permute.xlu0 %426
          %429 = vst.msk [vmem:[#allocation4 + $0x9] sm:$0x1] %vm337, %v427
          %v430 = vld [vmem:[#allocation3] sm:$0x1]
          %v431 = vmul.f32 %v430, 0.25
          %v433 = vperm.slane %v431, 0
          %434 = vrot.lane.b32.xlu0 %v433, 35
          %v435 = vpop.permute.xlu0 %434
          %437 = vst.msk [vmem:[%s346 + $0x9] sm:$0x1] %vm337, %v435
          %v438 = vld [vmem:[#allocation2] sm:$0x1]
          %v440 = vperm.slane %v438, 0
          %441 = vrot.lane.b32.xlu0 %v440, 19
          %v442 = vpop.permute.xlu0 %441
          %444 = vst.msk [vmem:[#allocation4 + $0xa] sm:$0x1] %vm337, %v442
          %v445 = vld [vmem:[#allocation3] sm:$0x1]
          %v446 = vmul.f32 %v445, 0.25
          %v448 = vperm.slane %v446, 0
          %449 = vrot.lane.b32.xlu0 %v448, 19
          %v450 = vpop.permute.xlu0 %449
          %452 = vst.msk [vmem:[%s346 + $0xa] sm:$0x1] %vm337, %v450
          %v453 = vld [vmem:[#allocation2 + $0x1] sm:$0x1]
          %v455 = vperm.slane %v453, 0
          %456 = vrot.lane.b32.xlu0 %v455, 3
          %v457 = vpop.permute.xlu0 %456
          %459 = vst.msk [vmem:[#allocation4 + $0xb] sm:$0x1] %vm337, %v457
          %v460 = vld [vmem:[#allocation3 + $0x1] sm:$0x1]
          %v461 = vmul.f32 %v460, 0.25
          %v463 = vperm.slane %v461, 0
          %464 = vrot.lane.b32.xlu0 %v463, 3
          %v465 = vpop.permute.xlu0 %464
          %467 = vst.msk [vmem:[%s346 + $0xb] sm:$0x1] %vm337, %v465
          %v468 = vld [vmem:[#allocation2 + $0x1] sm:$0x1]
          %v470 = vperm.slane %v468, 0
          %471 = vrot.lane.b32.xlu0 %v470, 115
          %v472 = vpop.permute.xlu0 %471
          %474 = vst.msk [vmem:[#allocation4 + $0xc] sm:$0x1] %vm337, %v472
          %v475 = vld [vmem:[#allocation3 + $0x1] sm:$0x1]
          %v476 = vmul.f32 %v475, 0.25
          %v478 = vperm.slane %v476, 0
          %479 = vrot.lane.b32.xlu0 %v478, 115
          %v480 = vpop.permute.xlu0 %479
          %482 = vst.msk [vmem:[%s346 + $0xc] sm:$0x1] %vm337, %v480
          %v483 = vld [vmem:[#allocation2 + $0x1] sm:$0x1]
          %v485 = vperm.slane %v483, 0
          %486 = vrot.lane.b32.xlu0 %v485, 99
          %v487 = vpop.permute.xlu0 %486
          %489 = vst.msk [vmem:[#allocation4 + $0xd] sm:$0x1] %vm337, %v487
          %v490 = vld [vmem:[#allocation3 + $0x1] sm:$0x1]
          %v491 = vmul.f32 %v490, 0.25
          %v493 = vperm.slane %v491, 0
          %494 = vrot.lane.b32.xlu0 %v493, 99
          %v495 = vpop.permute.xlu0 %494
          %497 = vst.msk [vmem:[%s346 + $0xd] sm:$0x1] %vm337, %v495
          %v498 = vld [vmem:[#allocation2 + $0x1] sm:$0x1]
          %v500 = vperm.slane %v498, 0
          %501 = vrot.lane.b32.xlu0 %v500, 83
          %v502 = vpop.permute.xlu0 %501
          %504 = vst.msk [vmem:[#allocation4 + $0xe] sm:$0x1] %vm337, %v502
          %v505 = vld [vmem:[#allocation3 + $0x1] sm:$0x1]
          %v506 = vmul.f32 %v505, 0.25
          %v508 = vperm.slane %v506, 0
          %509 = vrot.lane.b32.xlu0 %v508, 83
          %v510 = vpop.permute.xlu0 %509
          %512 = vst.msk [vmem:[%s346 + $0xe] sm:$0x1] %vm337, %v510
          %v513 = vld [vmem:[#allocation2 + $0x1] sm:$0x1]
          %v515 = vperm.slane %v513, 0
          %516 = vrot.lane.b32.xlu0 %v515, 67
          %v517 = vpop.permute.xlu0 %516
          %519 = vst.msk [vmem:[#allocation4 + $0xf] sm:$0x1] %vm337, %v517
          %v520 = vld [vmem:[#allocation3 + $0x1] sm:$0x1]
          %v521 = vmul.f32 %v520, 0.25
          %v523 = vperm.slane %v521, 0
          %524 = vrot.lane.b32.xlu0 %v523, 67
          %v525 = vpop.permute.xlu0 %524
          %527 = vst.msk [vmem:[%s346 + $0xf] sm:$0x1] %vm337, %v525
          %v528 = vld [vmem:[#allocation2 + $0x1] sm:$0x1]
          %v530 = vperm.slane %v528, 0
          %531 = vrot.lane.b32.xlu0 %v530, 51
          %v532 = vpop.permute.xlu0 %531
          %534 = vst.msk [vmem:[#allocation4 + $0x10] sm:$0x1] %vm337, %v532
          %v535 = vld [vmem:[#allocation3 + $0x1] sm:$0x1]
          %v536 = vmul.f32 %v535, 0.25
          %v538 = vperm.slane %v536, 0
          %539 = vrot.lane.b32.xlu0 %v538, 51
          %v540 = vpop.permute.xlu0 %539
          %542 = vst.msk [vmem:[%s346 + $0x10] sm:$0x1] %vm337, %v540
          %v543 = vld [vmem:[#allocation2 + $0x1] sm:$0x1]
          %v545 = vperm.slane %v543, 0
          %546 = vrot.lane.b32.xlu0 %v545, 35
          %v547 = vpop.permute.xlu0 %546
          %549 = vst.msk [vmem:[#allocation4 + $0x11] sm:$0x1] %vm337, %v547
          %v550 = vld [vmem:[#allocation3 + $0x1] sm:$0x1]
          %v551 = vmul.f32 %v550, 0.25
          %v553 = vperm.slane %v551, 0
          %554 = vrot.lane.b32.xlu0 %v553, 35
          %v555 = vpop.permute.xlu0 %554
          %557 = vst.msk [vmem:[%s346 + $0x11] sm:$0x1] %vm337, %v555
          %v558 = vld [vmem:[#allocation2 + $0x1] sm:$0x1]
          %v560 = vperm.slane %v558, 0
          %561 = vrot.lane.b32.xlu0 %v560, 19
          %v562 = vpop.permute.xlu0 %561
          %564 = vst.msk [vmem:[#allocation4 + $0x12] sm:$0x1] %vm337, %v562
          %v565 = vld [vmem:[#allocation3 + $0x1] sm:$0x1]
          %v566 = vmul.f32 %v565, 0.25
          %v568 = vperm.slane %v566, 0
          %569 = vrot.lane.b32.xlu0 %v568, 19
          %v570 = vpop.permute.xlu0 %569
          %572 = vst.msk [vmem:[%s346 + $0x12] sm:$0x1] %vm337, %v570
          %v573 = vld [vmem:[#allocation4] sm:$0xff]
          %v574 = vld [vmem:[#allocation4 + $0x8] sm:$0xff]
          %s575 = sld [smem:[#allocation10]]
          %v576 = vstv %s575
          %v577 = vmul.f32 %v573, %v576
          %v578 = vmul.f32 %v574, %v576
          %s579 = sld [smem:[#allocation10 + $0x1]]
          %v580 = vstv %s579
          %v581 = vmul.f32 %v573, %v580
          %v582 = vmul.f32 %v574, %v580
          %585 = vrot.lane.b32.xlu0 %v581, 127
          %v586 = vpop.permute.xlu0 %585
          %587 = vrot.lane.b32.xlu0 %v582, 127
          %v588 = vpop.permute.xlu0 %587
          %v591 = vadd.f32 %v577, %v586
          %v592 = vadd.f32 %v578, %v588
          %s593 = sld [smem:[#allocation10 + $0x2]]
          %v594 = vstv %s593
          %v595 = vmul.f32 %v573, %v594
          %v596 = vmul.f32 %v574, %v594
          %599 = vrot.lane.b32.xlu0 %v595, 126
          %v600 = vpop.permute.xlu0 %599
          %601 = vrot.lane.b32.xlu0 %v596, 126
          %v602 = vpop.permute.xlu0 %601
          %v605 = vadd.f32 %v591, %v600
          %v606 = vadd.f32 %v592, %v602
          %s607 = sld [smem:[#allocation10 + $0x3]]
          %v608 = vstv %s607
          %v609 = vmul.f32 %v573, %v608
          %v610 = vmul.f32 %v574, %v608
          %613 = vrot.lane.b32.xlu0 %v609, 125
          %v614 = vpop.permute.xlu0 %613
          %615 = vrot.lane.b32.xlu0 %v610, 125
          %v616 = vpop.permute.xlu0 %615
          %v619 = vadd.f32 %v605, %v614
          %v620 = vadd.f32 %v606, %v616
          %s621 = sld [smem:[#allocation10 + $0x4]]
          %v622 = vstv %s621
          %v623 = vmul.f32 %v573, %v622
          %v624 = vmul.f32 %v574, %v622
          %627 = vrot.lane.b32.xlu0 %v623, 124
          %v628 = vpop.permute.xlu0 %627
          %629 = vrot.lane.b32.xlu0 %v624, 124
          %v630 = vpop.permute.xlu0 %629
          %v633 = vadd.f32 %v619, %v628
          %v634 = vadd.f32 %v620, %v630
          %s635 = sld [smem:[#allocation10 + $0x5]]
          %v636 = vstv %s635
          %v637 = vmul.f32 %v573, %v636
          %v638 = vmul.f32 %v574, %v636
          %641 = vrot.lane.b32.xlu0 %v637, 123
          %v642 = vpop.permute.xlu0 %641
          %643 = vrot.lane.b32.xlu0 %v638, 123
          %v644 = vpop.permute.xlu0 %643
          %v647 = vadd.f32 %v633, %v642
          %v648 = vadd.f32 %v634, %v644
          %s649 = sld [smem:[#allocation10 + $0x6]]
          %v650 = vstv %s649
          %v651 = vmul.f32 %v573, %v650
          %v652 = vmul.f32 %v574, %v650
          %655 = vrot.lane.b32.xlu0 %v651, 122
          %v656 = vpop.permute.xlu0 %655
          %657 = vrot.lane.b32.xlu0 %v652, 122
          %v658 = vpop.permute.xlu0 %657
          %v661 = vadd.f32 %v647, %v656
          %v662 = vadd.f32 %v648, %v658
          %v663 = vld [vmem:[#allocation4 + $0x1] sm:$0xff]
          %v664 = vld [vmem:[#allocation4 + $0x9] sm:$0xff]
          %s665 = sld [smem:[#allocation10 + $0x7]]
          %v666 = vstv %s665
          %v667 = vmul.f32 %v663, %v666
          %v668 = vmul.f32 %v664, %v666
          %s669 = sld [smem:[#allocation10 + $0x8]]
          %v670 = vstv %s669
          %v671 = vmul.f32 %v663, %v670
          %v672 = vmul.f32 %v664, %v670
          %675 = vrot.lane.b32.xlu0 %v671, 127
          %v676 = vpop.permute.xlu0 %675
          %677 = vrot.lane.b32.xlu0 %v672, 127
          %v678 = vpop.permute.xlu0 %677
          %v681 = vadd.f32 %v667, %v676
          %v682 = vadd.f32 %v668, %v678
          %s683 = sld [smem:[#allocation10 + $0x9]]
          %v684 = vstv %s683
          %v685 = vmul.f32 %v663, %v684
          %v686 = vmul.f32 %v664, %v684
          %689 = vrot.lane.b32.xlu0 %v685, 126
          %v690 = vpop.permute.xlu0 %689
          %691 = vrot.lane.b32.xlu0 %v686, 126
          %v692 = vpop.permute.xlu0 %691
          %v695 = vadd.f32 %v681, %v690
          %v696 = vadd.f32 %v682, %v692
          %s697 = sld [smem:[#allocation10 + $0xa]]
          %v698 = vstv %s697
          %v699 = vmul.f32 %v663, %v698
          %v700 = vmul.f32 %v664, %v698
          %703 = vrot.lane.b32.xlu0 %v699, 125
          %v704 = vpop.permute.xlu0 %703
          %705 = vrot.lane.b32.xlu0 %v700, 125
          %v706 = vpop.permute.xlu0 %705
          %v709 = vadd.f32 %v695, %v704
          %v710 = vadd.f32 %v696, %v706
          %s711 = sld [smem:[#allocation10 + $0xb]]
          %v712 = vstv %s711
          %v713 = vmul.f32 %v663, %v712
          %v714 = vmul.f32 %v664, %v712
          %717 = vrot.lane.b32.xlu0 %v713, 124
          %v718 = vpop.permute.xlu0 %717
          %719 = vrot.lane.b32.xlu0 %v714, 124
          %v720 = vpop.permute.xlu0 %719
          %v723 = vadd.f32 %v709, %v718
          %v724 = vadd.f32 %v710, %v720
          %s725 = sld [smem:[#allocation10 + $0xc]]
          %v726 = vstv %s725
          %v727 = vmul.f32 %v663, %v726
          %v728 = vmul.f32 %v664, %v726
          %731 = vrot.lane.b32.xlu0 %v727, 123
          %v732 = vpop.permute.xlu0 %731
          %733 = vrot.lane.b32.xlu0 %v728, 123
          %v734 = vpop.permute.xlu0 %733
          %v737 = vadd.f32 %v723, %v732
          %v738 = vadd.f32 %v724, %v734
          %s739 = sld [smem:[#allocation10 + $0xd]]
          %v740 = vstv %s739
          %v741 = vmul.f32 %v663, %v740
          %v742 = vmul.f32 %v664, %v740
          %745 = vrot.lane.b32.xlu0 %v741, 122
          %v746 = vpop.permute.xlu0 %745
          %747 = vrot.lane.b32.xlu0 %v742, 122
          %v748 = vpop.permute.xlu0 %747
          %v751 = vadd.f32 %v737, %v746
          %v752 = vadd.f32 %v738, %v748
          %v753 = vld [vmem:[#allocation4 + $0x2] sm:$0xff]
          %v754 = vld [vmem:[#allocation4 + $0xa] sm:$0xff]
          %s755 = sld [smem:[#allocation10 + $0xe]]
          %v756 = vstv %s755
          %v757 = vmul.f32 %v753, %v756
          %v758 = vmul.f32 %v754, %v756
          %s759 = sld [smem:[#allocation10 + $0xf]]
          %v760 = vstv %s759
          %v761 = vmul.f32 %v753, %v760
          %v762 = vmul.f32 %v754, %v760
          %765 = vrot.lane.b32.xlu0 %v761, 127
          %v766 = vpop.permute.xlu0 %765
          %767 = vrot.lane.b32.xlu0 %v762, 127
          %v768 = vpop.permute.xlu0 %767
          %v771 = vadd.f32 %v757, %v766
          %v772 = vadd.f32 %v758, %v768
          %s773 = sld [smem:[#allocation10 + $0x10]]
          %v774 = vstv %s773
          %v775 = vmul.f32 %v753, %v774
          %v776 = vmul.f32 %v754, %v774
          %779 = vrot.lane.b32.xlu0 %v775, 126
          %v780 = vpop.permute.xlu0 %779
          %781 = vrot.lane.b32.xlu0 %v776, 126
          %v782 = vpop.permute.xlu0 %781
          %v785 = vadd.f32 %v771, %v780
          %v786 = vadd.f32 %v772, %v782
          %s787 = sld [smem:[#allocation10 + $0x11]]
          %v788 = vstv %s787
          %v789 = vmul.f32 %v753, %v788
          %v790 = vmul.f32 %v754, %v788
          %793 = vrot.lane.b32.xlu0 %v789, 125
          %v794 = vpop.permute.xlu0 %793
          %795 = vrot.lane.b32.xlu0 %v790, 125
          %v796 = vpop.permute.xlu0 %795
          %v799 = vadd.f32 %v785, %v794
          %v800 = vadd.f32 %v786, %v796
          %s801 = sld [smem:[#allocation10 + $0x12]]
          %v802 = vstv %s801
          %v803 = vmul.f32 %v753, %v802
          %v804 = vmul.f32 %v754, %v802
          %807 = vrot.lane.b32.xlu0 %v803, 124
          %v808 = vpop.permute.xlu0 %807
          %809 = vrot.lane.b32.xlu0 %v804, 124
          %v810 = vpop.permute.xlu0 %809
          %v813 = vadd.f32 %v799, %v808
          %v814 = vadd.f32 %v800, %v810
          %s815 = sld [smem:[#allocation10 + $0x13]]
          %v816 = vstv %s815
          %v817 = vmul.f32 %v753, %v816
          %v818 = vmul.f32 %v754, %v816
          %821 = vrot.lane.b32.xlu0 %v817, 123
          %v822 = vpop.permute.xlu0 %821
          %823 = vrot.lane.b32.xlu0 %v818, 123
          %v824 = vpop.permute.xlu0 %823
          %v827 = vadd.f32 %v813, %v822
          %v828 = vadd.f32 %v814, %v824
          %s829 = sld [smem:[#allocation10 + $0x14]]
          %v830 = vstv %s829
          %v831 = vmul.f32 %v753, %v830
          %v832 = vmul.f32 %v754, %v830
          %835 = vrot.lane.b32.xlu0 %v831, 122
          %v836 = vpop.permute.xlu0 %835
          %837 = vrot.lane.b32.xlu0 %v832, 122
          %v838 = vpop.permute.xlu0 %837
          %v841 = vadd.f32 %v827, %v836
          %v842 = vadd.f32 %v828, %v838
          %v843 = vld [vmem:[#allocation4 + $0x3] sm:$0xff]
          %v844 = vld [vmem:[#allocation4 + $0xb] sm:$0xff]
          %s845 = sld [smem:[#allocation10 + $0x15]]
          %v846 = vstv %s845
          %v847 = vmul.f32 %v843, %v846
          %v848 = vmul.f32 %v844, %v846
          %s849 = sld [smem:[#allocation10 + $0x16]]
          %v850 = vstv %s849
          %v851 = vmul.f32 %v843, %v850
          %v852 = vmul.f32 %v844, %v850
          %855 = vrot.lane.b32.xlu0 %v851, 127
          %v856 = vpop.permute.xlu0 %855
          %857 = vrot.lane.b32.xlu0 %v852, 127
          %v858 = vpop.permute.xlu0 %857
          %v861 = vadd.f32 %v847, %v856
          %v862 = vadd.f32 %v848, %v858
          %s863 = sld [smem:[#allocation10 + $0x17]]
          %v864 = vstv %s863
          %v865 = vmul.f32 %v843, %v864
          %v866 = vmul.f32 %v844, %v864
          %869 = vrot.lane.b32.xlu0 %v865, 126
          %v870 = vpop.permute.xlu0 %869
          %871 = vrot.lane.b32.xlu0 %v866, 126
          %v872 = vpop.permute.xlu0 %871
          %v875 = vadd.f32 %v861, %v870
          %v876 = vadd.f32 %v862, %v872
          %s877 = sld [smem:[#allocation10 + $0x18]]
          %v878 = vstv %s877
          %v879 = vmul.f32 %v843, %v878
          %v880 = vmul.f32 %v844, %v878
          %883 = vrot.lane.b32.xlu0 %v879, 125
          %v884 = vpop.permute.xlu0 %883
          %885 = vrot.lane.b32.xlu0 %v880, 125
          %v886 = vpop.permute.xlu0 %885
          %v889 = vadd.f32 %v875, %v884
          %v890 = vadd.f32 %v876, %v886
          %s891 = sld [smem:[#allocation10 + $0x19]]
          %v892 = vstv %s891
          %v893 = vmul.f32 %v843, %v892
          %v894 = vmul.f32 %v844, %v892
          %897 = vrot.lane.b32.xlu0 %v893, 124
          %v898 = vpop.permute.xlu0 %897
          %899 = vrot.lane.b32.xlu0 %v894, 124
          %v900 = vpop.permute.xlu0 %899
          %v903 = vadd.f32 %v889, %v898
          %v904 = vadd.f32 %v890, %v900
          %s905 = sld [smem:[#allocation10 + $0x1a]]
          %v906 = vstv %s905
          %v907 = vmul.f32 %v843, %v906
          %v908 = vmul.f32 %v844, %v906
          %911 = vrot.lane.b32.xlu0 %v907, 123
          %v912 = vpop.permute.xlu0 %911
          %913 = vrot.lane.b32.xlu0 %v908, 123
          %v914 = vpop.permute.xlu0 %913
          %v917 = vadd.f32 %v903, %v912
          %v918 = vadd.f32 %v904, %v914
          %s919 = sld [smem:[#allocation10 + $0x1b]]
          %v920 = vstv %s919
          %v921 = vmul.f32 %v843, %v920
          %v922 = vmul.f32 %v844, %v920
          %925 = vrot.lane.b32.xlu0 %v921, 122
          %v926 = vpop.permute.xlu0 %925
          %927 = vrot.lane.b32.xlu0 %v922, 122
          %v928 = vpop.permute.xlu0 %927
          %v931 = vadd.f32 %v917, %v926
          %v932 = vadd.f32 %v918, %v928
          %v933 = vld [vmem:[#allocation4 + $0x4] sm:$0xff]
          %v934 = vld [vmem:[#allocation4 + $0xc] sm:$0xff]
          %s935 = sld [smem:[#allocation10 + $0x1c]]
          %v936 = vstv %s935
          %v937 = vmul.f32 %v933, %v936
          %v938 = vmul.f32 %v934, %v936
          %v939 = vadd.f32 %v661, %v937
          %v940 = vadd.f32 %v662, %v938
          %s941 = sld [smem:[#allocation10 + $0x1d]]
          %v942 = vstv %s941
          %v943 = vmul.f32 %v933, %v942
          %v944 = vmul.f32 %v934, %v942
          %947 = vrot.lane.b32.xlu0 %v943, 127
          %v948 = vpop.permute.xlu0 %947
          %949 = vrot.lane.b32.xlu0 %v944, 127
          %v950 = vpop.permute.xlu0 %949
          %v953 = vadd.f32 %v939, %v948
          %v954 = vadd.f32 %v940, %v950
          %s955 = sld [smem:[#allocation10 + $0x1e]]
          %v956 = vstv %s955
          %v957 = vmul.f32 %v933, %v956
          %v958 = vmul.f32 %v934, %v956
          %961 = vrot.lane.b32.xlu0 %v957, 126
          %v962 = vpop.permute.xlu0 %961
          %963 = vrot.lane.b32.xlu0 %v958, 126
          %v964 = vpop.permute.xlu0 %963
          %v967 = vadd.f32 %v953, %v962
          %v968 = vadd.f32 %v954, %v964
          %s969 = sld [smem:[#allocation10 + $0x1f]]
          %v970 = vstv %s969
          %v971 = vmul.f32 %v933, %v970
          %v972 = vmul.f32 %v934, %v970
          %975 = vrot.lane.b32.xlu0 %v971, 125
          %v976 = vpop.permute.xlu0 %975
          %977 = vrot.lane.b32.xlu0 %v972, 125
          %v978 = vpop.permute.xlu0 %977
          %v981 = vadd.f32 %v967, %v976
          %v982 = vadd.f32 %v968, %v978
          %s983 = sld [smem:[#allocation10 + $0x20]]
          %v984 = vstv %s983
          %v985 = vmul.f32 %v933, %v984
          %v986 = vmul.f32 %v934, %v984
          %989 = vrot.lane.b32.xlu0 %v985, 124
          %v990 = vpop.permute.xlu0 %989
          %991 = vrot.lane.b32.xlu0 %v986, 124
          %v992 = vpop.permute.xlu0 %991
          %v995 = vadd.f32 %v981, %v990
          %v996 = vadd.f32 %v982, %v992
          %s997 = sld [smem:[#allocation10 + $0x21]]
          %v998 = vstv %s997
          %v999 = vmul.f32 %v933, %v998
          %v1000 = vmul.f32 %v934, %v998
          %1003 = vrot.lane.b32.xlu0 %v999, 123
          %v1004 = vpop.permute.xlu0 %1003
          %1005 = vrot.lane.b32.xlu0 %v1000, 123
          %v1006 = vpop.permute.xlu0 %1005
          %v1009 = vadd.f32 %v995, %v1004
          %v1010 = vadd.f32 %v996, %v1006
          %s1011 = sld [smem:[#allocation10 + $0x22]]
          %v1012 = vstv %s1011
          %v1013 = vmul.f32 %v933, %v1012
          %v1014 = vmul.f32 %v934, %v1012
          %1017 = vrot.lane.b32.xlu0 %v1013, 122
          %v1018 = vpop.permute.xlu0 %1017
          %1019 = vrot.lane.b32.xlu0 %v1014, 122
          %v1020 = vpop.permute.xlu0 %1019
          %v1023 = vadd.f32 %v1009, %v1018
          %v1024 = vadd.f32 %v1010, %v1020
          %v1025 = vld [vmem:[#allocation4 + $0x5] sm:$0xff]
          %v1026 = vld [vmem:[#allocation4 + $0xd] sm:$0xff]
          %s1027 = sld [smem:[#allocation10 + $0x23]]
          %v1028 = vstv %s1027
          %v1029 = vmul.f32 %v1025, %v1028
          %v1030 = vmul.f32 %v1026, %v1028
          %v1031 = vadd.f32 %v751, %v1029
          %v1032 = vadd.f32 %v752, %v1030
          %s1033 = sld [smem:[#allocation10 + $0x24]]
          %v1034 = vstv %s1033
          %v1035 = vmul.f32 %v1025, %v1034
          %v1036 = vmul.f32 %v1026, %v1034
          %1039 = vrot.lane.b32.xlu0 %v1035, 127
          %v1040 = vpop.permute.xlu0 %1039
          %1041 = vrot.lane.b32.xlu0 %v1036, 127
          %v1042 = vpop.permute.xlu0 %1041
          %v1045 = vadd.f32 %v1031, %v1040
          %v1046 = vadd.f32 %v1032, %v1042
          %s1047 = sld [smem:[#allocation10 + $0x25]]
          %v1048 = vstv %s1047
          %v1049 = vmul.f32 %v1025, %v1048
          %v1050 = vmul.f32 %v1026, %v1048
          %1053 = vrot.lane.b32.xlu0 %v1049, 126
          %v1054 = vpop.permute.xlu0 %1053
          %1055 = vrot.lane.b32.xlu0 %v1050, 126
          %v1056 = vpop.permute.xlu0 %1055
          %v1059 = vadd.f32 %v1045, %v1054
          %v1060 = vadd.f32 %v1046, %v1056
          %s1061 = sld [smem:[#allocation10 + $0x26]]
          %v1062 = vstv %s1061
          %v1063 = vmul.f32 %v1025, %v1062
          %v1064 = vmul.f32 %v1026, %v1062
          %1067 = vrot.lane.b32.xlu0 %v1063, 125
          %v1068 = vpop.permute.xlu0 %1067
          %1069 = vrot.lane.b32.xlu0 %v1064, 125
          %v1070 = vpop.permute.xlu0 %1069
          %v1073 = vadd.f32 %v1059, %v1068
          %v1074 = vadd.f32 %v1060, %v1070
          %s1075 = sld [smem:[#allocation10 + $0x27]]
          %v1076 = vstv %s1075
          %v1077 = vmul.f32 %v1025, %v1076
          %v1078 = vmul.f32 %v1026, %v1076
          %1081 = vrot.lane.b32.xlu0 %v1077, 124
          %v1082 = vpop.permute.xlu0 %1081
          %1083 = vrot.lane.b32.xlu0 %v1078, 124
          %v1084 = vpop.permute.xlu0 %1083
          %v1087 = vadd.f32 %v1073, %v1082
          %v1088 = vadd.f32 %v1074, %v1084
          %s1089 = sld [smem:[#allocation10 + $0x28]]
          %v1090 = vstv %s1089
          %v1091 = vmul.f32 %v1025, %v1090
          %v1092 = vmul.f32 %v1026, %v1090
          %1095 = vrot.lane.b32.xlu0 %v1091, 123
          %v1096 = vpop.permute.xlu0 %1095
          %1097 = vrot.lane.b32.xlu0 %v1092, 123
          %v1098 = vpop.permute.xlu0 %1097
          %v1101 = vadd.f32 %v1087, %v1096
          %v1102 = vadd.f32 %v1088, %v1098
          %s1103 = sld [smem:[#allocation10 + $0x29]]
          %v1104 = vstv %s1103
          %v1105 = vmul.f32 %v1025, %v1104
          %v1106 = vmul.f32 %v1026, %v1104
          %1109 = vrot.lane.b32.xlu0 %v1105, 122
          %v1110 = vpop.permute.xlu0 %1109
          %1111 = vrot.lane.b32.xlu0 %v1106, 122
          %v1112 = vpop.permute.xlu0 %1111
          %v1115 = vadd.f32 %v1101, %v1110
          %v1116 = vadd.f32 %v1102, %v1112
          %v1117 = vld [vmem:[#allocation4 + $0x6] sm:$0xff]
          %v1118 = vld [vmem:[#allocation4 + $0xe] sm:$0xff]
          %s1119 = sld [smem:[#allocation10 + $0x2a]]
          %v1120 = vstv %s1119
          %v1121 = vmul.f32 %v1117, %v1120
          %v1122 = vmul.f32 %v1118, %v1120
          %v1123 = vadd.f32 %v841, %v1121
          %v1124 = vadd.f32 %v842, %v1122
          %s1125 = sld [smem:[#allocation10 + $0x2b]]
          %v1126 = vstv %s1125
          %v1127 = vmul.f32 %v1117, %v1126
          %v1128 = vmul.f32 %v1118, %v1126
          %1131 = vrot.lane.b32.xlu0 %v1127, 127
          %v1132 = vpop.permute.xlu0 %1131
          %1133 = vrot.lane.b32.xlu0 %v1128, 127
          %v1134 = vpop.permute.xlu0 %1133
          %v1137 = vadd.f32 %v1123, %v1132
          %v1138 = vadd.f32 %v1124, %v1134
          %s1139 = sld [smem:[#allocation10 + $0x2c]]
          %v1140 = vstv %s1139
          %v1141 = vmul.f32 %v1117, %v1140
          %v1142 = vmul.f32 %v1118, %v1140
          %1145 = vrot.lane.b32.xlu0 %v1141, 126
          %v1146 = vpop.permute.xlu0 %1145
          %1147 = vrot.lane.b32.xlu0 %v1142, 126
          %v1148 = vpop.permute.xlu0 %1147
          %v1151 = vadd.f32 %v1137, %v1146
          %v1152 = vadd.f32 %v1138, %v1148
          %s1153 = sld [smem:[#allocation10 + $0x2d]]
          %v1154 = vstv %s1153
          %v1155 = vmul.f32 %v1117, %v1154
          %v1156 = vmul.f32 %v1118, %v1154
          %1159 = vrot.lane.b32.xlu0 %v1155, 125
          %v1160 = vpop.permute.xlu0 %1159
          %1161 = vrot.lane.b32.xlu0 %v1156, 125
          %v1162 = vpop.permute.xlu0 %1161
          %v1165 = vadd.f32 %v1151, %v1160
          %v1166 = vadd.f32 %v1152, %v1162
          %s1167 = sld [smem:[#allocation10 + $0x2e]]
          %v1168 = vstv %s1167
          %v1169 = vmul.f32 %v1117, %v1168
          %v1170 = vmul.f32 %v1118, %v1168
          %1173 = vrot.lane.b32.xlu0 %v1169, 124
          %v1174 = vpop.permute.xlu0 %1173
          %1175 = vrot.lane.b32.xlu0 %v1170, 124
          %v1176 = vpop.permute.xlu0 %1175
          %v1179 = vadd.f32 %v1165, %v1174
          %v1180 = vadd.f32 %v1166, %v1176
          %s1181 = sld [smem:[#allocation10 + $0x2f]]
          %v1182 = vstv %s1181
          %v1183 = vmul.f32 %v1117, %v1182
          %v1184 = vmul.f32 %v1118, %v1182
          %1187 = vrot.lane.b32.xlu0 %v1183, 123
          %v1188 = vpop.permute.xlu0 %1187
          %1189 = vrot.lane.b32.xlu0 %v1184, 123
          %v1190 = vpop.permute.xlu0 %1189
          %v1193 = vadd.f32 %v1179, %v1188
          %v1194 = vadd.f32 %v1180, %v1190
          %s1195 = sld [smem:[#allocation10 + $0x30]]
          %v1196 = vstv %s1195
          %v1197 = vmul.f32 %v1117, %v1196
          %v1198 = vmul.f32 %v1118, %v1196
          %1201 = vrot.lane.b32.xlu0 %v1197, 122
          %v1202 = vpop.permute.xlu0 %1201
          %1203 = vrot.lane.b32.xlu0 %v1198, 122
          %v1204 = vpop.permute.xlu0 %1203
          %v1207 = vadd.f32 %v1193, %v1202
          %v1208 = vadd.f32 %v1194, %v1204
          %v1209 = vld [vmem:[%s346] sm:$0xff]
          %v1210 = vld [vmem:[%s346 + $0x8] sm:$0xff]
          %s1211 = sld [smem:[#allocation10 + $0x31]]
          %v1212 = vstv %s1211
          %v1213 = vmul.f32 %v1209, %v1212
          %v1214 = vmul.f32 %v1210, %v1212
          %v1215 = vadd.f32 %v931, %v1213
          %v1216 = vadd.f32 %v932, %v1214
          %s1217 = sld [smem:[#allocation10 + $0x32]]
          %v1218 = vstv %s1217
          %v1219 = vmul.f32 %v1209, %v1218
          %v1220 = vmul.f32 %v1210, %v1218
          %1223 = vrot.lane.b32.xlu0 %v1219, 127
          %v1224 = vpop.permute.xlu0 %1223
          %1225 = vrot.lane.b32.xlu0 %v1220, 127
          %v1226 = vpop.permute.xlu0 %1225
          %v1229 = vadd.f32 %v1215, %v1224
          %v1230 = vadd.f32 %v1216, %v1226
          %s1231 = sld [smem:[#allocation10 + $0x33]]
          %v1232 = vstv %s1231
          %v1233 = vmul.f32 %v1209, %v1232
          %v1234 = vmul.f32 %v1210, %v1232
          %1237 = vrot.lane.b32.xlu0 %v1233, 126
          %v1238 = vpop.permute.xlu0 %1237
          %1239 = vrot.lane.b32.xlu0 %v1234, 126
          %v1240 = vpop.permute.xlu0 %1239
          %v1243 = vadd.f32 %v1229, %v1238
          %v1244 = vadd.f32 %v1230, %v1240
          %s1245 = sld [smem:[#allocation10 + $0x34]]
          %v1246 = vstv %s1245
          %v1247 = vmul.f32 %v1209, %v1246
          %v1248 = vmul.f32 %v1210, %v1246
          %1251 = vrot.lane.b32.xlu0 %v1247, 125
          %v1252 = vpop.permute.xlu0 %1251
          %1253 = vrot.lane.b32.xlu0 %v1248, 125
          %v1254 = vpop.permute.xlu0 %1253
          %v1257 = vadd.f32 %v1243, %v1252
          %v1258 = vadd.f32 %v1244, %v1254
          %s1259 = sld [smem:[#allocation10 + $0x35]]
          %v1260 = vstv %s1259
          %v1261 = vmul.f32 %v1209, %v1260
          %v1262 = vmul.f32 %v1210, %v1260
          %1265 = vrot.lane.b32.xlu0 %v1261, 124
          %v1266 = vpop.permute.xlu0 %1265
          %1267 = vrot.lane.b32.xlu0 %v1262, 124
          %v1268 = vpop.permute.xlu0 %1267
          %v1271 = vadd.f32 %v1257, %v1266
          %v1272 = vadd.f32 %v1258, %v1268
          %s1273 = sld [smem:[#allocation10 + $0x36]]
          %v1274 = vstv %s1273
          %v1275 = vmul.f32 %v1209, %v1274
          %v1276 = vmul.f32 %v1210, %v1274
          %1279 = vrot.lane.b32.xlu0 %v1275, 123
          %v1280 = vpop.permute.xlu0 %1279
          %1281 = vrot.lane.b32.xlu0 %v1276, 123
          %v1282 = vpop.permute.xlu0 %1281
          %v1285 = vadd.f32 %v1271, %v1280
          %v1286 = vadd.f32 %v1272, %v1282
          %s1287 = sld [smem:[#allocation10 + $0x37]]
          %v1288 = vstv %s1287
          %v1289 = vmul.f32 %v1209, %v1288
          %v1290 = vmul.f32 %v1210, %v1288
          %1293 = vrot.lane.b32.xlu0 %v1289, 122
          %v1294 = vpop.permute.xlu0 %1293
          %1295 = vrot.lane.b32.xlu0 %v1290, 122
          %v1296 = vpop.permute.xlu0 %1295
          %v1299 = vadd.f32 %v1285, %v1294
          %v1300 = vadd.f32 %v1286, %v1296
          %v1301 = vld [vmem:[%s346 + $0x1] sm:$0xff]
          %v1302 = vld [vmem:[%s346 + $0x9] sm:$0xff]
          %s1303 = sld [smem:[#allocation10 + $0x38]]
          %v1304 = vstv %s1303
          %v1305 = vmul.f32 %v1301, %v1304
          %v1306 = vmul.f32 %v1302, %v1304
          %v1307 = vadd.f32 %v1023, %v1305
          %v1308 = vadd.f32 %v1024, %v1306
          %s1309 = sld [smem:[#allocation10 + $0x39]]
          %v1310 = vstv %s1309
          %v1311 = vmul.f32 %v1301, %v1310
          %v1312 = vmul.f32 %v1302, %v1310
          %1315 = vrot.lane.b32.xlu0 %v1311, 127
          %v1316 = vpop.permute.xlu0 %1315
          %1317 = vrot.lane.b32.xlu0 %v1312, 127
          %v1318 = vpop.permute.xlu0 %1317
          %v1321 = vadd.f32 %v1307, %v1316
          %v1322 = vadd.f32 %v1308, %v1318
          %s1323 = sld [smem:[#allocation10 + $0x3a]]
          %v1324 = vstv %s1323
          %v1325 = vmul.f32 %v1301, %v1324
          %v1326 = vmul.f32 %v1302, %v1324
          %1329 = vrot.lane.b32.xlu0 %v1325, 126
          %v1330 = vpop.permute.xlu0 %1329
          %1331 = vrot.lane.b32.xlu0 %v1326, 126
          %v1332 = vpop.permute.xlu0 %1331
          %v1335 = vadd.f32 %v1321, %v1330
          %v1336 = vadd.f32 %v1322, %v1332
          %s1337 = sld [smem:[#allocation10 + $0x3b]]
          %v1338 = vstv %s1337
          %v1339 = vmul.f32 %v1301, %v1338
          %v1340 = vmul.f32 %v1302, %v1338
          %1343 = vrot.lane.b32.xlu0 %v1339, 125
          %v1344 = vpop.permute.xlu0 %1343
          %1345 = vrot.lane.b32.xlu0 %v1340, 125
          %v1346 = vpop.permute.xlu0 %1345
          %v1349 = vadd.f32 %v1335, %v1344
          %v1350 = vadd.f32 %v1336, %v1346
          %s1351 = sld [smem:[#allocation10 + $0x3c]]
          %v1352 = vstv %s1351
          %v1353 = vmul.f32 %v1301, %v1352
          %v1354 = vmul.f32 %v1302, %v1352
          %1357 = vrot.lane.b32.xlu0 %v1353, 124
          %v1358 = vpop.permute.xlu0 %1357
          %1359 = vrot.lane.b32.xlu0 %v1354, 124
          %v1360 = vpop.permute.xlu0 %1359
          %v1363 = vadd.f32 %v1349, %v1358
          %v1364 = vadd.f32 %v1350, %v1360
          %s1365 = sld [smem:[#allocation10 + $0x3d]]
          %v1366 = vstv %s1365
          %v1367 = vmul.f32 %v1301, %v1366
          %v1368 = vmul.f32 %v1302, %v1366
          %1371 = vrot.lane.b32.xlu0 %v1367, 123
          %v1372 = vpop.permute.xlu0 %1371
          %1373 = vrot.lane.b32.xlu0 %v1368, 123
          %v1374 = vpop.permute.xlu0 %1373
          %v1377 = vadd.f32 %v1363, %v1372
          %v1378 = vadd.f32 %v1364, %v1374
          %s1379 = sld [smem:[#allocation10 + $0x3e]]
          %v1380 = vstv %s1379
          %v1381 = vmul.f32 %v1301, %v1380
          %v1382 = vmul.f32 %v1302, %v1380
          %1385 = vrot.lane.b32.xlu0 %v1381, 122
          %v1386 = vpop.permute.xlu0 %1385
          %1387 = vrot.lane.b32.xlu0 %v1382, 122
          %v1388 = vpop.permute.xlu0 %1387
          %v1391 = vadd.f32 %v1377, %v1386
          %v1392 = vadd.f32 %v1378, %v1388
          %v1393 = vld [vmem:[%s346 + $0x2] sm:$0xff]
          %v1394 = vld [vmem:[%s346 + $0xa] sm:$0xff]
          %s1395 = sld [smem:[#allocation10 + $0x3f]]
          %v1396 = vstv %s1395
          %v1397 = vmul.f32 %v1393, %v1396
          %v1398 = vmul.f32 %v1394, %v1396
          %v1399 = vadd.f32 %v1115, %v1397
          %v1400 = vadd.f32 %v1116, %v1398
          %s1401 = sld [smem:[#allocation10 + $0x40]]
          %v1402 = vstv %s1401
          %v1403 = vmul.f32 %v1393, %v1402
          %v1404 = vmul.f32 %v1394, %v1402
          %1407 = vrot.lane.b32.xlu0 %v1403, 127
          %v1408 = vpop.permute.xlu0 %1407
          %1409 = vrot.lane.b32.xlu0 %v1404, 127
          %v1410 = vpop.permute.xlu0 %1409
          %v1413 = vadd.f32 %v1399, %v1408
          %v1414 = vadd.f32 %v1400, %v1410
          %s1415 = sld [smem:[#allocation10 + $0x41]]
          %v1416 = vstv %s1415
          %v1417 = vmul.f32 %v1393, %v1416
          %v1418 = vmul.f32 %v1394, %v1416
          %1421 = vrot.lane.b32.xlu0 %v1417, 126
          %v1422 = vpop.permute.xlu0 %1421
          %1423 = vrot.lane.b32.xlu0 %v1418, 126
          %v1424 = vpop.permute.xlu0 %1423
          %v1427 = vadd.f32 %v1413, %v1422
          %v1428 = vadd.f32 %v1414, %v1424
          %s1429 = sld [smem:[#allocation10 + $0x42]]
          %v1430 = vstv %s1429
          %v1431 = vmul.f32 %v1393, %v1430
          %v1432 = vmul.f32 %v1394, %v1430
          %1435 = vrot.lane.b32.xlu0 %v1431, 125
          %v1436 = vpop.permute.xlu0 %1435
          %1437 = vrot.lane.b32.xlu0 %v1432, 125
          %v1438 = vpop.permute.xlu0 %1437
          %v1441 = vadd.f32 %v1427, %v1436
          %v1442 = vadd.f32 %v1428, %v1438
          %s1443 = sld [smem:[#allocation10 + $0x43]]
          %v1444 = vstv %s1443
          %v1445 = vmul.f32 %v1393, %v1444
          %v1446 = vmul.f32 %v1394, %v1444
          %1449 = vrot.lane.b32.xlu0 %v1445, 124
          %v1450 = vpop.permute.xlu0 %1449
          %1451 = vrot.lane.b32.xlu0 %v1446, 124
          %v1452 = vpop.permute.xlu0 %1451
          %v1455 = vadd.f32 %v1441, %v1450
          %v1456 = vadd.f32 %v1442, %v1452
          %s1457 = sld [smem:[#allocation10 + $0x44]]
          %v1458 = vstv %s1457
          %v1459 = vmul.f32 %v1393, %v1458
          %v1460 = vmul.f32 %v1394, %v1458
          %1463 = vrot.lane.b32.xlu0 %v1459, 123
          %v1464 = vpop.permute.xlu0 %1463
          %1465 = vrot.lane.b32.xlu0 %v1460, 123
          %v1466 = vpop.permute.xlu0 %1465
          %v1469 = vadd.f32 %v1455, %v1464
          %v1470 = vadd.f32 %v1456, %v1466
          %s1471 = sld [smem:[#allocation10 + $0x45]]
          %v1472 = vstv %s1471
          %v1473 = vmul.f32 %v1393, %v1472
          %v1474 = vmul.f32 %v1394, %v1472
          %1477 = vrot.lane.b32.xlu0 %v1473, 122
          %v1478 = vpop.permute.xlu0 %1477
          %1479 = vrot.lane.b32.xlu0 %v1474, 122
          %v1480 = vpop.permute.xlu0 %1479
          %v1483 = vadd.f32 %v1469, %v1478
          %v1484 = vadd.f32 %v1470, %v1480
          %v1485 = vld [vmem:[%s346 + $0x3] sm:$0xff]
          %v1486 = vld [vmem:[%s346 + $0xb] sm:$0xff]
          %s1487 = sld [smem:[#allocation10 + $0x46]]
          %v1488 = vstv %s1487
          %v1489 = vmul.f32 %v1485, %v1488
          %v1490 = vmul.f32 %v1486, %v1488
          %v1491 = vadd.f32 %v1207, %v1489
          %v1492 = vadd.f32 %v1208, %v1490
          %s1493 = sld [smem:[#allocation10 + $0x47]]
          %v1494 = vstv %s1493
          %v1495 = vmul.f32 %v1485, %v1494
          %v1496 = vmul.f32 %v1486, %v1494
          %1499 = vrot.lane.b32.xlu0 %v1495, 127
          %v1500 = vpop.permute.xlu0 %1499
          %1501 = vrot.lane.b32.xlu0 %v1496, 127
          %v1502 = vpop.permute.xlu0 %1501
          %v1505 = vadd.f32 %v1491, %v1500
          %v1506 = vadd.f32 %v1492, %v1502
          %s1507 = sld [smem:[#allocation10 + $0x48]]
          %v1508 = vstv %s1507
          %v1509 = vmul.f32 %v1485, %v1508
          %v1510 = vmul.f32 %v1486, %v1508
          %1513 = vrot.lane.b32.xlu0 %v1509, 126
          %v1514 = vpop.permute.xlu0 %1513
          %1515 = vrot.lane.b32.xlu0 %v1510, 126
          %v1516 = vpop.permute.xlu0 %1515
          %v1519 = vadd.f32 %v1505, %v1514
          %v1520 = vadd.f32 %v1506, %v1516
          %s1521 = sld [smem:[#allocation10 + $0x49]]
          %v1522 = vstv %s1521
          %v1523 = vmul.f32 %v1485, %v1522
          %v1524 = vmul.f32 %v1486, %v1522
          %1527 = vrot.lane.b32.xlu0 %v1523, 125
          %v1528 = vpop.permute.xlu0 %1527
          %1529 = vrot.lane.b32.xlu0 %v1524, 125
          %v1530 = vpop.permute.xlu0 %1529
          %v1533 = vadd.f32 %v1519, %v1528
          %v1534 = vadd.f32 %v1520, %v1530
          %s1535 = sld [smem:[#allocation10 + $0x4a]]
          %v1536 = vstv %s1535
          %v1537 = vmul.f32 %v1485, %v1536
          %v1538 = vmul.f32 %v1486, %v1536
          %1541 = vrot.lane.b32.xlu0 %v1537, 124
          %v1542 = vpop.permute.xlu0 %1541
          %1543 = vrot.lane.b32.xlu0 %v1538, 124
          %v1544 = vpop.permute.xlu0 %1543
          %v1547 = vadd.f32 %v1533, %v1542
          %v1548 = vadd.f32 %v1534, %v1544
          %s1549 = sld [smem:[#allocation10 + $0x4b]]
          %v1550 = vstv %s1549
          %v1551 = vmul.f32 %v1485, %v1550
          %v1552 = vmul.f32 %v1486, %v1550
          %1555 = vrot.lane.b32.xlu0 %v1551, 123
          %v1556 = vpop.permute.xlu0 %1555
          %1557 = vrot.lane.b32.xlu0 %v1552, 123
          %v1558 = vpop.permute.xlu0 %1557
          %v1561 = vadd.f32 %v1547, %v1556
          %v1562 = vadd.f32 %v1548, %v1558
          %s1563 = sld [smem:[#allocation10 + $0x4c]]
          %v1564 = vstv %s1563
          %v1565 = vmul.f32 %v1485, %v1564
          %v1566 = vmul.f32 %v1486, %v1564
          %1569 = vrot.lane.b32.xlu0 %v1565, 122
          %v1570 = vpop.permute.xlu0 %1569
          %1571 = vrot.lane.b32.xlu0 %v1566, 122
          %v1572 = vpop.permute.xlu0 %1571
          %v1575 = vadd.f32 %v1561, %v1570
          %v1576 = vadd.f32 %v1562, %v1572
          %v1577 = vld [vmem:[%s346 + $0x4] sm:$0xff]
          %v1578 = vld [vmem:[%s346 + $0xc] sm:$0xff]
          %s1579 = sld [smem:[#allocation10 + $0x4d]]
          %v1580 = vstv %s1579
          %v1581 = vmul.f32 %v1577, %v1580
          %v1582 = vmul.f32 %v1578, %v1580
          %v1583 = vadd.f32 %v1299, %v1581
          %v1584 = vadd.f32 %v1300, %v1582
          %s1585 = sld [smem:[#allocation10 + $0x4e]]
          %v1586 = vstv %s1585
          %v1587 = vmul.f32 %v1577, %v1586
          %v1588 = vmul.f32 %v1578, %v1586
          %1591 = vrot.lane.b32.xlu0 %v1587, 127
          %v1592 = vpop.permute.xlu0 %1591
          %1593 = vrot.lane.b32.xlu0 %v1588, 127
          %v1594 = vpop.permute.xlu0 %1593
          %v1597 = vadd.f32 %v1583, %v1592
          %v1598 = vadd.f32 %v1584, %v1594
          %s1599 = sld [smem:[#allocation10 + $0x4f]]
          %v1600 = vstv %s1599
          %v1601 = vmul.f32 %v1577, %v1600
          %v1602 = vmul.f32 %v1578, %v1600
          %1605 = vrot.lane.b32.xlu0 %v1601, 126
          %v1606 = vpop.permute.xlu0 %1605
          %1607 = vrot.lane.b32.xlu0 %v1602, 126
          %v1608 = vpop.permute.xlu0 %1607
          %v1611 = vadd.f32 %v1597, %v1606
          %v1612 = vadd.f32 %v1598, %v1608
          %s1613 = sld [smem:[#allocation10 + $0x50]]
          %v1614 = vstv %s1613
          %v1615 = vmul.f32 %v1577, %v1614
          %v1616 = vmul.f32 %v1578, %v1614
          %1619 = vrot.lane.b32.xlu0 %v1615, 125
          %v1620 = vpop.permute.xlu0 %1619
          %1621 = vrot.lane.b32.xlu0 %v1616, 125
          %v1622 = vpop.permute.xlu0 %1621
          %v1625 = vadd.f32 %v1611, %v1620
          %v1626 = vadd.f32 %v1612, %v1622
          %s1627 = sld [smem:[#allocation10 + $0x51]]
          %v1628 = vstv %s1627
          %v1629 = vmul.f32 %v1577, %v1628
          %v1630 = vmul.f32 %v1578, %v1628
          %1633 = vrot.lane.b32.xlu0 %v1629, 124
          %v1634 = vpop.permute.xlu0 %1633
          %1635 = vrot.lane.b32.xlu0 %v1630, 124
          %v1636 = vpop.permute.xlu0 %1635
          %v1639 = vadd.f32 %v1625, %v1634
          %v1640 = vadd.f32 %v1626, %v1636
          %s1641 = sld [smem:[#allocation10 + $0x52]]
          %v1642 = vstv %s1641
          %v1643 = vmul.f32 %v1577, %v1642
          %v1644 = vmul.f32 %v1578, %v1642
          %1647 = vrot.lane.b32.xlu0 %v1643, 123
          %v1648 = vpop.permute.xlu0 %1647
          %1649 = vrot.lane.b32.xlu0 %v1644, 123
          %v1650 = vpop.permute.xlu0 %1649
          %v1653 = vadd.f32 %v1639, %v1648
          %v1654 = vadd.f32 %v1640, %v1650
          %s1655 = sld [smem:[#allocation10 + $0x53]]
          %v1656 = vstv %s1655
          %v1657 = vmul.f32 %v1577, %v1656
          %v1658 = vmul.f32 %v1578, %v1656
          %1661 = vrot.lane.b32.xlu0 %v1657, 122
          %v1662 = vpop.permute.xlu0 %1661
          %1663 = vrot.lane.b32.xlu0 %v1658, 122
          %v1664 = vpop.permute.xlu0 %1663
          %v1667 = vadd.f32 %v1653, %v1662
          %v1668 = vadd.f32 %v1654, %v1664
          %v1669 = vld [vmem:[%s346 + $0x5] sm:$0xff]
          %v1670 = vld [vmem:[%s346 + $0xd] sm:$0xff]
          %s1671 = sld [smem:[#allocation10 + $0x54]]
          %v1672 = vstv %s1671
          %v1673 = vmul.f32 %v1669, %v1672
          %v1674 = vmul.f32 %v1670, %v1672
          %v1675 = vadd.f32 %v1391, %v1673
          %v1676 = vadd.f32 %v1392, %v1674
          %s1677 = sld [smem:[#allocation10 + $0x55]]
          %v1678 = vstv %s1677
          %v1679 = vmul.f32 %v1669, %v1678
          %v1680 = vmul.f32 %v1670, %v1678
          %1683 = vrot.lane.b32.xlu0 %v1679, 127
          %v1684 = vpop.permute.xlu0 %1683
          %1685 = vrot.lane.b32.xlu0 %v1680, 127
          %v1686 = vpop.permute.xlu0 %1685
          %v1689 = vadd.f32 %v1675, %v1684
          %v1690 = vadd.f32 %v1676, %v1686
          %s1691 = sld [smem:[#allocation10 + $0x56]]
          %v1692 = vstv %s1691
          %v1693 = vmul.f32 %v1669, %v1692
          %v1694 = vmul.f32 %v1670, %v1692
          %1697 = vrot.lane.b32.xlu0 %v1693, 126
          %v1698 = vpop.permute.xlu0 %1697
          %1699 = vrot.lane.b32.xlu0 %v1694, 126
          %v1700 = vpop.permute.xlu0 %1699
          %v1703 = vadd.f32 %v1689, %v1698
          %v1704 = vadd.f32 %v1690, %v1700
          %s1705 = sld [smem:[#allocation10 + $0x57]]
          %v1706 = vstv %s1705
          %v1707 = vmul.f32 %v1669, %v1706
          %v1708 = vmul.f32 %v1670, %v1706
          %1711 = vrot.lane.b32.xlu0 %v1707, 125
          %v1712 = vpop.permute.xlu0 %1711
          %1713 = vrot.lane.b32.xlu0 %v1708, 125
          %v1714 = vpop.permute.xlu0 %1713
          %v1717 = vadd.f32 %v1703, %v1712
          %v1718 = vadd.f32 %v1704, %v1714
          %s1719 = sld [smem:[#allocation10 + $0x58]]
          %v1720 = vstv %s1719
          %v1721 = vmul.f32 %v1669, %v1720
          %v1722 = vmul.f32 %v1670, %v1720
          %1725 = vrot.lane.b32.xlu0 %v1721, 124
          %v1726 = vpop.permute.xlu0 %1725
          %1727 = vrot.lane.b32.xlu0 %v1722, 124
          %v1728 = vpop.permute.xlu0 %1727
          %v1731 = vadd.f32 %v1717, %v1726
          %v1732 = vadd.f32 %v1718, %v1728
          %s1733 = sld [smem:[#allocation10 + $0x59]]
          %v1734 = vstv %s1733
          %v1735 = vmul.f32 %v1669, %v1734
          %v1736 = vmul.f32 %v1670, %v1734
          %1739 = vrot.lane.b32.xlu0 %v1735, 123
          %v1740 = vpop.permute.xlu0 %1739
          %1741 = vrot.lane.b32.xlu0 %v1736, 123
          %v1742 = vpop.permute.xlu0 %1741
          %v1745 = vadd.f32 %v1731, %v1740
          %v1746 = vadd.f32 %v1732, %v1742
          %s1747 = sld [smem:[#allocation10 + $0x5a]]
          %v1748 = vstv %s1747
          %v1749 = vmul.f32 %v1669, %v1748
          %v1750 = vmul.f32 %v1670, %v1748
          %1753 = vrot.lane.b32.xlu0 %v1749, 122
          %v1754 = vpop.permute.xlu0 %1753
          %1755 = vrot.lane.b32.xlu0 %v1750, 122
          %v1756 = vpop.permute.xlu0 %1755
          %v1759 = vadd.f32 %v1745, %v1754
          %v1760 = vadd.f32 %v1746, %v1756
          %v1761 = vld [vmem:[%s346 + $0x6] sm:$0xff]
          %v1762 = vld [vmem:[%s346 + $0xe] sm:$0xff]
          %s1763 = sld [smem:[#allocation10 + $0x5b]]
          %v1764 = vstv %s1763
          %v1765 = vmul.f32 %v1761, %v1764
          %v1766 = vmul.f32 %v1762, %v1764
          %v1767 = vadd.f32 %v1483, %v1765
          %v1768 = vadd.f32 %v1484, %v1766
          %s1769 = sld [smem:[#allocation10 + $0x5c]]
          %v1770 = vstv %s1769
          %v1771 = vmul.f32 %v1761, %v1770
          %v1772 = vmul.f32 %v1762, %v1770
          %1775 = vrot.lane.b32.xlu0 %v1771, 127
          %v1776 = vpop.permute.xlu0 %1775
          %1777 = vrot.lane.b32.xlu0 %v1772, 127
          %v1778 = vpop.permute.xlu0 %1777
          %v1781 = vadd.f32 %v1767, %v1776
          %v1782 = vadd.f32 %v1768, %v1778
          %s1783 = sld [smem:[#allocation10 + $0x5d]]
          %v1784 = vstv %s1783
          %v1785 = vmul.f32 %v1761, %v1784
          %v1786 = vmul.f32 %v1762, %v1784
          %1789 = vrot.lane.b32.xlu0 %v1785, 126
          %v1790 = vpop.permute.xlu0 %1789
          %1791 = vrot.lane.b32.xlu0 %v1786, 126
          %v1792 = vpop.permute.xlu0 %1791
          %v1795 = vadd.f32 %v1781, %v1790
          %v1796 = vadd.f32 %v1782, %v1792
          %s1797 = sld [smem:[#allocation10 + $0x5e]]
          %v1798 = vstv %s1797
          %v1799 = vmul.f32 %v1761, %v1798
          %v1800 = vmul.f32 %v1762, %v1798
          %1803 = vrot.lane.b32.xlu0 %v1799, 125
          %v1804 = vpop.permute.xlu0 %1803
          %1805 = vrot.lane.b32.xlu0 %v1800, 125
          %v1806 = vpop.permute.xlu0 %1805
          %v1809 = vadd.f32 %v1795, %v1804
          %v1810 = vadd.f32 %v1796, %v1806
          %s1811 = sld [smem:[#allocation10 + $0x5f]]
          %v1812 = vstv %s1811
          %v1813 = vmul.f32 %v1761, %v1812
          %v1814 = vmul.f32 %v1762, %v1812
          %1817 = vrot.lane.b32.xlu0 %v1813, 124
          %v1818 = vpop.permute.xlu0 %1817
          %1819 = vrot.lane.b32.xlu0 %v1814, 124
          %v1820 = vpop.permute.xlu0 %1819
          %v1823 = vadd.f32 %v1809, %v1818
          %v1824 = vadd.f32 %v1810, %v1820
          %s1825 = sld [smem:[#allocation10 + $0x60]]
          %v1826 = vstv %s1825
          %v1827 = vmul.f32 %v1761, %v1826
          %v1828 = vmul.f32 %v1762, %v1826
          %1831 = vrot.lane.b32.xlu0 %v1827, 123
          %v1832 = vpop.permute.xlu0 %1831
          %1833 = vrot.lane.b32.xlu0 %v1828, 123
          %v1834 = vpop.permute.xlu0 %1833
          %v1837 = vadd.f32 %v1823, %v1832
          %v1838 = vadd.f32 %v1824, %v1834
          %s1839 = sld [smem:[#allocation10 + $0x61]]
          %v1840 = vstv %s1839
          %v1841 = vmul.f32 %v1761, %v1840
          %v1842 = vmul.f32 %v1762, %v1840
          %1845 = vrot.lane.b32.xlu0 %v1841, 122
          %v1846 = vpop.permute.xlu0 %1845
          %1847 = vrot.lane.b32.xlu0 %v1842, 122
          %v1848 = vpop.permute.xlu0 %1847
          %v1851 = vadd.f32 %v1837, %v1846
          %v1852 = vadd.f32 %v1838, %v1848
          %v1853 = vadd.f32 %v1759, %v1851
          %v1854 = vadd.f32 %v1760, %v1852
          %v1855 = vadd.f32 %v1575, %v1667
          %v1856 = vadd.f32 %v1576, %v1668
          %v1857 = vadd.f32 %v1853, %v1855
          %v1858 = vadd.f32 %v1854, %v1856
          %s1859 = sld [smem:[#allocation5]]
          %v1860 = vstv %s1859
          %v1861 = vadd.f32 %v1857, %v1860
          %v1862 = vadd.f32 %v1858, %v1860
          %v1863 = vxor.u32 %v1861, 2147483648
          %v1864 = vxor.u32 %v1862, 2147483648
          %v1865 = vmul.f32 %v1863, 1.442695
          %v1866 = vpow.pop %v1865
          %v1867 = vmul.f32 %v1864, 1.442695
          %v1868 = vpow.pop %v1867
          %v1869 = vadd.f32 %v1866, 1.0
          %v1870 = vadd.f32 %v1868, 1.0
          %v1871 = vrcp.pop %v1869
          %v1872 = vmul.f32 %v1869, %v1871
          %v1873 = vsub.f32 1.0, %v1872
          %v1874 = vmul.f32 %v1871, %v1873
          %v1875 = vadd.f32 %v1871, %v1874
          %vm1876 = vweird.f32 %v1869
          %vm1877 = vweird.f32 %v1871
          %vm1878 = vmor %vm1876, %vm1877
          %v1879 = vsel %vm1878, %v1871, %v1875
          %v1880 = vand.u32 2147483647, %v1869
          %vm1881 = vcmp.eq.f32.partialorder %v1880, 8.507059e+37
          %v1882 = vand.u32 %v1869, 2147483648
          %v1883 = vor.u32 1.1754944e-38, %v1882
          %v1884 = vsel %vm1881, %v1883, %v1879
          %v1885 = vmul.f32 1.0, %v1884
          %v1886 = vrcp.pop %v1870
          %v1887 = vmul.f32 %v1870, %v1886
          %v1888 = vsub.f32 1.0, %v1887
          %v1889 = vmul.f32 %v1886, %v1888
          %v1890 = vadd.f32 %v1886, %v1889
          %vm1891 = vweird.f32 %v1870
          %vm1892 = vweird.f32 %v1886
          %vm1893 = vmor %vm1891, %vm1892
          %v1894 = vsel %vm1893, %v1886, %v1890
          %v1895 = vand.u32 2147483647, %v1870
          %vm1896 = vcmp.eq.f32.partialorder %v1895, 8.507059e+37
          %v1897 = vand.u32 %v1870, 2147483648
          %v1898 = vor.u32 1.1754944e-38, %v1897
          %v1899 = vsel %vm1896, %v1898, %v1894
          %v1900 = vmul.f32 1.0, %v1899
          %vm1901 = vcmask 130048
          %1902 = vst.msk [vmem:[%s219] sm:$0xff] %vm1901, %v1885
          %1903 = vst.msk [vmem:[%s219 + $0x8] sm:$0xff] %vm1901, %v1900
        $region52: #{tpu_custom_call.1} parent=31 // pred_fallthru
          _
        %s1904 = sand.u32 %s112, 1
        %s1905 = scalar_lea.sflag [#allocation8], %s1904
        %s1906 = sand.u32 %s112, 1
        %s1907 = smul.addr %s1906, 16
        %s1908 = scalar_lea.vmem [#allocation11], %s1907
        // Predicated region
        $region53: #{tpu_custom_call.1} parent=31 // pred_check
          %p1909 = pneg %p122
        $region54: #{tpu_custom_call.1} parent=31 // pred_check_branch
          %1911 = sbr.rel (%p1909) target = $region56
        $region55: #{tpu_custom_call.1} parent=31 // pred_region
          %1913 = vsyncadd %s1905, 0
          %s1914 = smul.addr %s26, 2
          %s1915 = smul.addr %s1914, 8
          %s1916 = scalar_lea.hbm %s3, %s1915
          %s1917 = sshll.u32 %s1908, 4
          %s1918 = int_to_ptr.vmem [resolvable:$true] %s1917
          %s1919 = sshll.u32 %s1916, 4
          %s1920 = int_to_ptr.hbm [resolvable:$true] %s1919
          %1925 = dma.vmem_to_hbm [thread:$0]  %s1918, 256, %s1920, %s1905, 128, 128, 8
        $region56: #{tpu_custom_call.1} parent=31 // pred_fallthru
          _
      $region32: #{tpu_custom_call.1} parent=5 // pred_fallthru
        _
      %p1926 = scmp.le.s32.totalorder 2, %s17
      // Predicated region
      $region57: #{tpu_custom_call.1} parent=5 // pred_check
        %p1927 = pneg %p1926
      $region58: #{tpu_custom_call.1} parent=5 // pred_check_branch
        %1929 = sbr.rel (%p1927) target = $region60
      $region59: #{tpu_custom_call.1} parent=5 // pred_region
        %s1930 = ssub.s32 %s17, 2
        // Predicated region
        $region61: #{tpu_custom_call.1} parent=59 // pred_check
          %p1931 = pneg %p128
        $region62: #{tpu_custom_call.1} parent=59 // pred_check_branch
          %1933 = sbr.rel (%p1931) target = $region64
        $region63: #{tpu_custom_call.1} parent=59 // pred_region
          %s1934 = sand.u32 %s113, 1
          %s1935 = scalar_lea.sflag [#allocation8], %s1934
          %s1936 = sand.u32 %s113, 1
          %s1937 = smul.addr %s1936, 16
          %s1938 = scalar_lea.vmem [#allocation11], %s1937
          %1940 = dma.done %s1935, 256
        $region64: #{tpu_custom_call.1} parent=59 // pred_fallthru
          _
      $region60: #{tpu_custom_call.1} parent=5 // pred_fallthru
        _
    $region6: #{tpu_custom_call.1} parent=1 // loop_footer
      %s21 = sadd.s32 1, %s17
    $region7: #{tpu_custom_call.1} parent=1 // loop_footer_branch
      %16 = sbr.rel target = $region3
    $region8: #{tpu_custom_call.1} parent=1 // loop_exit
      _
    %1941 = vsyncpa [#allocation7], 1
    %s1942 = scalar_lea.sflag [#allocation7], 1
    %1943 = vsyncpa %s1942, 1
    %1944 = vsyncpa [#allocation8], 1
    %s1945 = scalar_lea.sflag [#allocation8], 1
    %1946 = vsyncpa %s1945, 1
    %1947 = vsyncpa [#allocation9], 1
    %s1948 = scalar_lea.sflag [#allocation9], 1
    %1949 = vsyncpa %s1948, 1

</llo_original>
